<compile_context>
chip_gen: v5e
topology: v5e:2x2
jax: 0.10.0
libtpu: 0.0.40
codegen_flags: <defaults>
</compile_context>

<pallas_src>
import functools

import jax
import jax.numpy as jnp
from jax.experimental import pallas as pl
from jax.experimental.pallas import tpu as pltpu

EPS = 1e-5


def _round_up(a, b):
    return (a + b - 1) // b * b


# ---------------------------------------------------------------------------
# Fast path: whole problem resident in VMEM -> one kernel, one x read, one
# out write, centered (accurate) variance, no padding / slicing / glue.
# ---------------------------------------------------------------------------
def _fused_kernel(x_ref, w_ref, gamma_ref, beta_ref, o_ref):
    y = jnp.dot(x_ref[...], w_ref[...], preferred_element_type=jnp.float32)
    mean = jnp.mean(y, axis=0, keepdims=True)
    d = y - mean
    var = jnp.mean(d * d, axis=0, keepdims=True)       # biased, like BN training
    scale = gamma_ref[...] * jax.lax.rsqrt(var + EPS)
    o_ref[...] = jnp.maximum(d * scale + beta_ref[...], 0.0)


# ---------------------------------------------------------------------------
# Large-N path, pass 1: running batch-stat accumulation over N tiles; the
# last grid step folds BN into per-channel (scale, shift).  Ragged edge tile
# is masked in-kernel (no host-side jnp.pad of x).
# ---------------------------------------------------------------------------
def _stats_kernel(x_ref, w_ref, gamma_ref, beta_ref, scale_ref, shift_ref,
                  sum_acc, sq_acc, *, n_rows, tile_n):
    i = pl.program_id(0)

    @pl.when(i == 0)
    def _():
        sum_acc[...] = jnp.zeros_like(sum_acc)
        sq_acc[...] = jnp.zeros_like(sq_acc)

    y = jnp.dot(x_ref[...], w_ref[...], preferred_element_type=jnp.float32)
    row = i * tile_n + jax.lax.broadcasted_iota(jnp.int32, y.shape, 0)
    y = jnp.where(row < n_rows, y, 0.0)                # mask ragged edge rows
    sum_acc[...] += jnp.sum(y, axis=0, keepdims=True)
    sq_acc[...] += jnp.sum(y * y, axis=0, keepdims=True)

    @pl.when(i == pl.num_programs(0) - 1)
    def _():
        inv_n = jnp.float32(1.0 / n_rows)
        mean = sum_acc[...] * inv_n
        # Guard the single-pass E[y^2]-E[y]^2 form against cancellation.
        var = jnp.maximum(sq_acc[...] * inv_n - mean * mean, 0.0)
        sc = gamma_ref[...] * jax.lax.rsqrt(var + EPS)
        scale_ref[...] = sc
        shift_ref[...] = beta_ref[...] - mean * sc


# ---------------------------------------------------------------------------
# Large-N path, pass 2: fused matmul + folded-BN affine + ReLU per N tile.
# ---------------------------------------------------------------------------
def _apply_kernel(x_ref, w_ref, scale_ref, shift_ref, o_ref):
    y = jnp.dot(x_ref[...], w_ref[...], preferred_element_type=jnp.float32)
    o_ref[...] = jnp.maximum(y * scale_ref[...] + shift_ref[...], 0.0)


def transition_down_stride1(p, x, o, weight, gamma, beta, *,
                            tile_n=1024,
                            compute_dtype=jnp.float32,
                            fused_vmem_limit=12 * 2**20):
    """TransitionDown.forward for stride == 1: [p, relu(bn(x @ W)), o]."""
    n, cin = x.shape
    cout = weight.shape[1]

    x_in = x.astype(compute_dtype)                 # MXU operands (f32 or bf16)
    w_in = weight.astype(compute_dtype)
    gamma2 = gamma.astype(jnp.float32).reshape(1, cout)
    beta2 = beta.astype(jnp.float32).reshape(1, cout)

    # Rough VMEM footprint of the fully fused single-call path
    # (x buffers + out buffers + f32 y temporary).
    bpe = jnp.dtype(compute_dtype).itemsize
    est = n * (2 * cin * bpe + 2 * cout * 4 + cout * 4)

    if est <= fused_vmem_limit:
        out = pl.pallas_call(
            _fused_kernel,
            out_shape=jax.ShapeDtypeStruct((n, cout), jnp.float32),
            grid_spec=pltpu.PrefetchScalarGridSpec(
                num_scalar_prefetch=0,
                grid=(1,),
                in_specs=[
                    pl.BlockSpec((n, cin), lambda i: (0, 0)),
                    pl.BlockSpec((cin, cout), lambda i: (0, 0)),
                    pl.BlockSpec((1, cout), lambda i: (0, 0)),
                    pl.BlockSpec((1, cout), lambda i: (0, 0)),
                ],
                out_specs=pl.BlockSpec((n, cout), lambda i: (0, 0)),
            ),
            compiler_params=pltpu.CompilerParams(
                dimension_semantics=("arbitrary",)),
        )(x_in, w_in, gamma2, beta2)
        return [p, out, o]

    # ------------------------- Large-N: two passes -------------------------
    tile_n = max(8, _round_up(min(int(tile_n), n), 8))
    num_tiles = pl.cdiv(n, tile_n)

    stats = functools.partial(_stats_kernel, n_rows=n, tile_n=tile_n)
    scale, shift = pl.pallas_call(
        stats,
        out_shape=(jax.ShapeDtypeStruct((1, cout), jnp.float32),
                   jax.ShapeDtypeStruct((1, cout), jnp.float32)),
        grid_spec=pltpu.PrefetchScalarGridSpec(
            num_scalar_prefetch=0,
            grid=(num_tiles,),
            in_specs=[
                pl.BlockSpec((tile_n, cin), lambda i: (i, 0)),
                pl.BlockSpec((cin, cout), lambda i: (0, 0)),   # resident weight
                pl.BlockSpec((1, cout), lambda i: (0, 0)),
                pl.BlockSpec((1, cout), lambda i: (0, 0)),
            ],
            out_specs=(pl.BlockSpec((1, cout), lambda i: (0, 0)),
                       pl.BlockSpec((1, cout), lambda i: (0, 0))),
            scratch_shapes=[pltpu.VMEM((1, cout), jnp.float32),
                            pltpu.VMEM((1, cout), jnp.float32)],
        ),
        compiler_params=pltpu.CompilerParams(
            dimension_semantics=("arbitrary",)),
    )(x_in, w_in, gamma2, beta2)

    out = pl.pallas_call(
        _apply_kernel,
        out_shape=jax.ShapeDtypeStruct((n, cout), jnp.float32),
        grid_spec=pltpu.PrefetchScalarGridSpec(
            num_scalar_prefetch=0,
            grid=(num_tiles,),
            in_specs=[
                pl.BlockSpec((tile_n, cin), lambda i: (i, 0)),
                pl.BlockSpec((cin, cout), lambda i: (0, 0)),
                pl.BlockSpec((1, cout), lambda i: (0, 0)),
                pl.BlockSpec((1, cout), lambda i: (0, 0)),
            ],
            out_specs=pl.BlockSpec((tile_n, cout), lambda i: (i, 0)),
        ),
        compiler_params=pltpu.CompilerParams(
            dimension_semantics=("parallel",)),
    )(x_in, w_in, scale, shift)

    return [p, out, o]


def _reference(x, weight, gamma, beta):
    y = x.astype(jnp.float32) @ weight.astype(jnp.float32)
    mean = jnp.mean(y, axis=0, keepdims=True)
    var = jnp.mean((y - mean) ** 2, axis=0, keepdims=True)   # biased, like BN
    y_hat = (y - mean) * jax.lax.rsqrt(var + EPS)
    return jnp.maximum(y_hat * gamma[None, :] + beta[None, :], 0.0)


if __name__ == "__main__":
    # Small shapes consistent with enc1's TransitionDown: in_planes=32,
    # out_planes=planes[0]=32*expansion -> use 64, stride=1.
    N, IN_PLANES, OUT_PLANES = 2048, 32, 64

    key = jax.random.PRNGKey(0)
    kp, kx, kw, kg, kb = jax.random.split(key, 5)

    p = jax.random.normal(kp, (N, 3), dtype=jnp.float32)          # xyz coords
    x = jax.random.normal(kx, (N, IN_PLANES), dtype=jnp.float32)  # features
    o = jnp.array([N // 2, N], dtype=jnp.int32)                   # batch offsets

    # Deterministic parameter init (synthetic, not a checkpoint).
    weight = 0.1 * jax.random.normal(kw, (IN_PLANES, OUT_PLANES), jnp.float32)
    gamma = 1.0 + 0.1 * jax.random.normal(kg, (OUT_PLANES,), jnp.float32)
    beta = 0.1 * jax.random.normal(kb, (OUT_PLANES,), jnp.float32)

    ref = _reference(x, weight, gamma, beta)

    # 1) Fully fused single-kernel fast path (the common case at these sizes).
    p_out, x_fused, o_out = transition_down_stride1(p, x, o, weight, gamma, beta)
    # 2) Large-N two-pass path, forced, with a ragged last tile (2048 = 2*768 + 512).
    _, x_tiled, _ = transition_down_stride1(
        p, x, o, weight, gamma, beta, tile_n=768, fused_vmem_limit=0)
    # 3) bf16 MXU operands (f32 stats / affine / output).
    _, x_bf16, _ = transition_down_stride1(
        p, x, o, weight, gamma, beta, compute_dtype=jnp.bfloat16)
    jax.block_until_ready((x_fused, x_tiled, x_bf16))

    assert x_fused.shape == (N, OUT_PLANES) and x_fused.dtype == jnp.float32
    assert jnp.allclose(x_fused, ref, atol=1e-3, rtol=1e-3), "fused path mismatch"
    assert jnp.allclose(x_tiled, ref, atol=1e-3, rtol=1e-3), "two-pass path mismatch"
    assert jnp.allclose(x_bf16, ref, atol=5e-2, rtol=5e-2), "bf16 path mismatch"
    assert jnp.array_equal(p_out, p) and jnp.array_equal(o_out, o)

    print("KERNEL_OK")
</pallas_src>

<mosaic_0001>
module attributes {stable_mosaic.version = 11 : i64} {
  func.func @_fused_kernel(%arg0: i32, %arg1: memref<2048x32xf32, #tpu.memory_space<vmem>>, %arg2: memref<32x64xf32, #tpu.memory_space<vmem>>, %arg3: memref<1x64xf32, #tpu.memory_space<vmem>>, %arg4: memref<1x64xf32, #tpu.memory_space<vmem>>, %arg5: memref<2048x64xf32, #tpu.memory_space<vmem>>) attributes {dimension_semantics = [#tpu.dimension_semantics<arbitrary>], iteration_bounds = array<i64: 1>, scalar_prefetch = 0 : i64, scratch_operands = 0 : i64, tpu.core_type = #tpu.core_type<tc>, window_params = [{pipeline_mode = #tpu.pipeline_mode<synchronous>, transform_indices = @transform_0, window_bounds = array<i64: 2048, 32>}, {pipeline_mode = #tpu.pipeline_mode<synchronous>, transform_indices = @transform_1, window_bounds = array<i64: 32, 64>}, {pipeline_mode = #tpu.pipeline_mode<synchronous>, transform_indices = @transform_2, window_bounds = array<i64: 1, 64>}, {pipeline_mode = #tpu.pipeline_mode<synchronous>, transform_indices = @transform_3, window_bounds = array<i64: 1, 64>}, {pipeline_mode = #tpu.pipeline_mode<synchronous>, transform_indices = @transform_4, window_bounds = array<i64: 2048, 64>}]} {
    %c0 = arith.constant 0 : index
    %c0_0 = arith.constant 0 : index
    %0 = vector.load %arg1[%c0, %c0_0] : memref<2048x32xf32, #tpu.memory_space<vmem>>, vector<2048x32xf32>
    %c0_1 = arith.constant 0 : index
    %c0_2 = arith.constant 0 : index
    %1 = vector.load %arg2[%c0_1, %c0_2] : memref<32x64xf32, #tpu.memory_space<vmem>>, vector<32x64xf32>
    %cst = arith.constant dense<0.000000e+00> : vector<2048x64xf32>
    %2 = tpu.matmul %0, %1, %cst {dimension_numbers = #tpu.dot_dimension_numbers<[1], [0], [0], [1], [0, 0, 1, 1], [], []>} : vector<2048x32xf32>, vector<32x64xf32>, vector<2048x64xf32> -> vector<2048x64xf32>
    %cst_3 = arith.constant dense<0.000000e+00> : vector<64xf32>
    %3 = vector.multi_reduction <add>, %2, %cst_3 [0] : vector<2048x64xf32> to vector<64xf32>
    %4 = vector.shape_cast %3 : vector<64xf32> to vector<1x64xf32>
    %cst_4 = arith.constant 2.048000e+03 : f32
    %5 = vector.broadcast %cst_4 : f32 to vector<1x64xf32>
    %6 = arith.divf %4, %5 : vector<1x64xf32>
    %7 = vector.broadcast %6 : vector<1x64xf32> to vector<2048x64xf32>
    %8 = arith.subf %2, %7 : vector<2048x64xf32>
    %9 = arith.mulf %8, %8 : vector<2048x64xf32>
    %cst_5 = arith.constant dense<0.000000e+00> : vector<64xf32>
    %10 = vector.multi_reduction <add>, %9, %cst_5 [0] : vector<2048x64xf32> to vector<64xf32>
    %11 = vector.shape_cast %10 : vector<64xf32> to vector<1x64xf32>
    %cst_6 = arith.constant 2.048000e+03 : f32
    %12 = vector.broadcast %cst_6 : f32 to vector<1x64xf32>
    %13 = arith.divf %11, %12 : vector<1x64xf32>
    %c0_7 = arith.constant 0 : index
    %c0_8 = arith.constant 0 : index
    %14 = vector.load %arg3[%c0_7, %c0_8] : memref<1x64xf32, #tpu.memory_space<vmem>>, vector<1x64xf32>
    %cst_9 = arith.constant 9.99999974E-6 : f32
    %15 = vector.broadcast %cst_9 : f32 to vector<1x64xf32>
    %16 = arith.addf %13, %15 : vector<1x64xf32>
    %17 = math.rsqrt %16 : vector<1x64xf32>
    %18 = arith.mulf %14, %17 : vector<1x64xf32>
    %19 = vector.broadcast %18 : vector<1x64xf32> to vector<2048x64xf32>
    %20 = arith.mulf %8, %19 : vector<2048x64xf32>
    %c0_10 = arith.constant 0 : index
    %c0_11 = arith.constant 0 : index
    %21 = vector.load %arg4[%c0_10, %c0_11] : memref<1x64xf32, #tpu.memory_space<vmem>>, vector<1x64xf32>
    %22 = vector.broadcast %21 : vector<1x64xf32> to vector<2048x64xf32>
    %23 = arith.addf %20, %22 : vector<2048x64xf32>
    %cst_12 = arith.constant 0.000000e+00 : f32
    %24 = vector.broadcast %cst_12 : f32 to vector<2048x64xf32>
    %25 = arith.maximumf %23, %24 : vector<2048x64xf32>
    %c0_13 = arith.constant 0 : index
    %c0_14 = arith.constant 0 : index
    %26 = vector.load %arg5[%c0_13, %c0_14] : memref<2048x64xf32, #tpu.memory_space<vmem>>, vector<2048x64xf32>
    tpu.vector_store %arg5[%c0_13, %c0_14], %25 {strides = array<i32>} : memref<2048x64xf32, #tpu.memory_space<vmem>>, vector<2048x64xf32>,
    return
  }
  func.func @transform_0(%arg0: i32) -> (i32, i32) {
    %c0_i32 = arith.constant 0 : i32
    %c0_i32_0 = arith.constant 0 : i32
    %c0_i32_1 = arith.constant 0 : i32
    return %c0_i32, %c0_i32_0 : i32, i32
  }
  func.func @transform_1(%arg0: i32) -> (i32, i32) {
    %c0_i32 = arith.constant 0 : i32
    %c0_i32_0 = arith.constant 0 : i32
    %c0_i32_1 = arith.constant 0 : i32
    return %c0_i32, %c0_i32_0 : i32, i32
  }
  func.func @transform_2(%arg0: i32) -> (i32, i32) {
    %c0_i32 = arith.constant 0 : i32
    %c0_i32_0 = arith.constant 0 : i32
    %c0_i32_1 = arith.constant 0 : i32
    return %c0_i32, %c0_i32_0 : i32, i32
  }
  func.func @transform_3(%arg0: i32) -> (i32, i32) {
    %c0_i32 = arith.constant 0 : i32
    %c0_i32_0 = arith.constant 0 : i32
    %c0_i32_1 = arith.constant 0 : i32
    return %c0_i32, %c0_i32_0 : i32, i32
  }
  func.func @transform_4(%arg0: i32) -> (i32, i32) {
    %c0_i32 = arith.constant 0 : i32
    %c0_i32_0 = arith.constant 0 : i32
    %c0_i32_1 = arith.constant 0 : i32
    return %c0_i32, %c0_i32_0 : i32, i32
  }
}

</mosaic_0001>

<llo_original>
// kernel: tpu_custom_call.1
$region0: #{tpu_custom_call.1}
  #allocation0 [shape = 'u32[]', space=smem, size = 0x4, offset = 0x4, fixed_abs, tag = 'smem constant byte address 0x4 - core index']
  #allocation1 [shape = 'u32[72,128]{1,0:T(1,128)}', space=vmem, size = 0x9000, scoped, tag = 'internal scratch']
  %s0 = inlined_call_operand.vmem [shape: f32[2048,32], index: 0, kind: input, shape index: {}]
  %s1 = inlined_call_operand.vmem [shape: f32[32,64], index: 1, kind: input, shape index: {}]
  %s2 = inlined_call_operand.vmem [shape: f32[1,64], index: 2, kind: input, shape index: {}]
  %s3 = inlined_call_operand.vmem [shape: f32[1,64], index: 3, kind: input, shape index: {}]
  %s4 = inlined_call_operand.vmem [shape: f32[2048,64], index: 4, kind: output, shape index: {}]
  %s5 = sld [smem:[#allocation0]]
  $region26: #{tpu_custom_call.1} parent=0
    _
  %s7 = ssub.s32 1, %s5
  %s8 = scalar_select 0, %s7, %s5
  // Predicated region
  $region2: #{tpu_custom_call.1} parent=0 // pred_check
    _
  $region3: #{tpu_custom_call.1} parent=0 // pred_check_branch
    %10 = sbr.rel (0) target = $region5
  $region4: #{tpu_custom_call.1} parent=0 // pred_region
    _
  $region5: #{tpu_custom_call.1} parent=0 // pred_fallthru
    _
  // Predicated region
  $region6: #{tpu_custom_call.1} parent=0 // pred_check
    _
  $region7: #{tpu_custom_call.1} parent=0 // pred_check_branch
    %12 = sbr.rel (0) target = $region9
  $region8: #{tpu_custom_call.1} parent=0 // pred_region
    _
  $region9: #{tpu_custom_call.1} parent=0 // pred_fallthru
    _
  // Predicated region
  $region10: #{tpu_custom_call.1} parent=0 // pred_check
    _
  $region11: #{tpu_custom_call.1} parent=0 // pred_check_branch
    %14 = sbr.rel (0) target = $region13
  $region12: #{tpu_custom_call.1} parent=0 // pred_region
    _
  $region13: #{tpu_custom_call.1} parent=0 // pred_fallthru
    _
  // Predicated region
  $region14: #{tpu_custom_call.1} parent=0 // pred_check
    _
  $region15: #{tpu_custom_call.1} parent=0 // pred_check_branch
    %16 = sbr.rel (0) target = $region17
  $region16: #{tpu_custom_call.1} parent=0 // pred_region
    _
  $region17: #{tpu_custom_call.1} parent=0 // pred_fallthru
    _
  %v17 = vld [vmem:[%s0] sm:$0xff]
  %v18 = vld [vmem:[%s0 + $0x8] sm:$0xff]
  %v19 = vld [vmem:[%s0 + $0x10] sm:$0xff]
  %v20 = vld [vmem:[%s0 + $0x18] sm:$0xff]
  %v21 = vld [vmem:[%s0 + $0x20] sm:$0xff]
  %v22 = vld [vmem:[%s0 + $0x28] sm:$0xff]
  %v23 = vld [vmem:[%s0 + $0x30] sm:$0xff]
  %v24 = vld [vmem:[%s0 + $0x38] sm:$0xff]
  %v25 = vld [vmem:[%s0 + $0x40] sm:$0xff]
  %v26 = vld [vmem:[%s0 + $0x48] sm:$0xff]
  %v27 = vld [vmem:[%s0 + $0x50] sm:$0xff]
  %v28 = vld [vmem:[%s0 + $0x58] sm:$0xff]
  %v29 = vld [vmem:[%s0 + $0x60] sm:$0xff]
  %v30 = vld [vmem:[%s0 + $0x68] sm:$0xff]
  %v31 = vld [vmem:[%s0 + $0x70] sm:$0xff]
  %v32 = vld [vmem:[%s0 + $0x78] sm:$0xff]
  %v33 = vld [vmem:[%s0 + $0x80] sm:$0xff]
  %v34 = vld [vmem:[%s0 + $0x88] sm:$0xff]
  %v35 = vld [vmem:[%s0 + $0x90] sm:$0xff]
  %v36 = vld [vmem:[%s0 + $0x98] sm:$0xff]
  %v37 = vld [vmem:[%s0 + $0xa0] sm:$0xff]
  %v38 = vld [vmem:[%s0 + $0xa8] sm:$0xff]
  %v39 = vld [vmem:[%s0 + $0xb0] sm:$0xff]
  %v40 = vld [vmem:[%s0 + $0xb8] sm:$0xff]
  %v41 = vld [vmem:[%s0 + $0xc0] sm:$0xff]
  %v42 = vld [vmem:[%s0 + $0xc8] sm:$0xff]
  %v43 = vld [vmem:[%s0 + $0xd0] sm:$0xff]
  %v44 = vld [vmem:[%s0 + $0xd8] sm:$0xff]
  %v45 = vld [vmem:[%s0 + $0xe0] sm:$0xff]
  %v46 = vld [vmem:[%s0 + $0xe8] sm:$0xff]
  %v47 = vld [vmem:[%s0 + $0xf0] sm:$0xff]
  %v48 = vld [vmem:[%s0 + $0xf8] sm:$0xff]
  %v49 = vld [vmem:[%s0 + $0x100] sm:$0xff]
  %v50 = vld [vmem:[%s0 + $0x108] sm:$0xff]
  %v51 = vld [vmem:[%s0 + $0x110] sm:$0xff]
  %v52 = vld [vmem:[%s0 + $0x118] sm:$0xff]
  %v53 = vld [vmem:[%s0 + $0x120] sm:$0xff]
  %v54 = vld [vmem:[%s0 + $0x128] sm:$0xff]
  %v55 = vld [vmem:[%s0 + $0x130] sm:$0xff]
  %v56 = vld [vmem:[%s0 + $0x138] sm:$0xff]
  %v57 = vld [vmem:[%s0 + $0x140] sm:$0xff]
  %v58 = vld [vmem:[%s0 + $0x148] sm:$0xff]
  %v59 = vld [vmem:[%s0 + $0x150] sm:$0xff]
  %v60 = vld [vmem:[%s0 + $0x158] sm:$0xff]
  %v61 = vld [vmem:[%s0 + $0x160] sm:$0xff]
  %v62 = vld [vmem:[%s0 + $0x168] sm:$0xff]
  %v63 = vld [vmem:[%s0 + $0x170] sm:$0xff]
  %v64 = vld [vmem:[%s0 + $0x178] sm:$0xff]
  %v65 = vld [vmem:[%s0 + $0x180] sm:$0xff]
  %v66 = vld [vmem:[%s0 + $0x188] sm:$0xff]
  %v67 = vld [vmem:[%s0 + $0x190] sm:$0xff]
  %v68 = vld [vmem:[%s0 + $0x198] sm:$0xff]
  %v69 = vld [vmem:[%s0 + $0x1a0] sm:$0xff]
  %v70 = vld [vmem:[%s0 + $0x1a8] sm:$0xff]
  %v71 = vld [vmem:[%s0 + $0x1b0] sm:$0xff]
  %v72 = vld [vmem:[%s0 + $0x1b8] sm:$0xff]
  %v73 = vld [vmem:[%s0 + $0x1c0] sm:$0xff]
  %v74 = vld [vmem:[%s0 + $0x1c8] sm:$0xff]
  %v75 = vld [vmem:[%s0 + $0x1d0] sm:$0xff]
  %v76 = vld [vmem:[%s0 + $0x1d8] sm:$0xff]
  %v77 = vld [vmem:[%s0 + $0x1e0] sm:$0xff]
  %v78 = vld [vmem:[%s0 + $0x1e8] sm:$0xff]
  %v79 = vld [vmem:[%s0 + $0x1f0] sm:$0xff]
  %v80 = vld [vmem:[%s0 + $0x1f8] sm:$0xff]
  %v81 = vld [vmem:[%s0 + $0x200] sm:$0xff]
  %v82 = vld [vmem:[%s0 + $0x208] sm:$0xff]
  %v83 = vld [vmem:[%s0 + $0x210] sm:$0xff]
  %v84 = vld [vmem:[%s0 + $0x218] sm:$0xff]
  %v85 = vld [vmem:[%s0 + $0x220] sm:$0xff]
  %v86 = vld [vmem:[%s0 + $0x228] sm:$0xff]
  %v87 = vld [vmem:[%s0 + $0x230] sm:$0xff]
  %v88 = vld [vmem:[%s0 + $0x238] sm:$0xff]
  %v89 = vld [vmem:[%s0 + $0x240] sm:$0xff]
  %v90 = vld [vmem:[%s0 + $0x248] sm:$0xff]
  %v91 = vld [vmem:[%s0 + $0x250] sm:$0xff]
  %v92 = vld [vmem:[%s0 + $0x258] sm:$0xff]
  %v93 = vld [vmem:[%s0 + $0x260] sm:$0xff]
  %v94 = vld [vmem:[%s0 + $0x268] sm:$0xff]
  %v95 = vld [vmem:[%s0 + $0x270] sm:$0xff]
  %v96 = vld [vmem:[%s0 + $0x278] sm:$0xff]
  %v97 = vld [vmem:[%s0 + $0x280] sm:$0xff]
  %v98 = vld [vmem:[%s0 + $0x288] sm:$0xff]
  %v99 = vld [vmem:[%s0 + $0x290] sm:$0xff]
  %v100 = vld [vmem:[%s0 + $0x298] sm:$0xff]
  %v101 = vld [vmem:[%s0 + $0x2a0] sm:$0xff]
  %v102 = vld [vmem:[%s0 + $0x2a8] sm:$0xff]
  %v103 = vld [vmem:[%s0 + $0x2b0] sm:$0xff]
  %v104 = vld [vmem:[%s0 + $0x2b8] sm:$0xff]
  %v105 = vld [vmem:[%s0 + $0x2c0] sm:$0xff]
  %v106 = vld [vmem:[%s0 + $0x2c8] sm:$0xff]
  %v107 = vld [vmem:[%s0 + $0x2d0] sm:$0xff]
  %v108 = vld [vmem:[%s0 + $0x2d8] sm:$0xff]
  %v109 = vld [vmem:[%s0 + $0x2e0] sm:$0xff]
  %v110 = vld [vmem:[%s0 + $0x2e8] sm:$0xff]
  %v111 = vld [vmem:[%s0 + $0x2f0] sm:$0xff]
  %v112 = vld [vmem:[%s0 + $0x2f8] sm:$0xff]
  %v113 = vld [vmem:[%s0 + $0x300] sm:$0xff]
  %v114 = vld [vmem:[%s0 + $0x308] sm:$0xff]
  %v115 = vld [vmem:[%s0 + $0x310] sm:$0xff]
  %v116 = vld [vmem:[%s0 + $0x318] sm:$0xff]
  %v117 = vld [vmem:[%s0 + $0x320] sm:$0xff]
  %v118 = vld [vmem:[%s0 + $0x328] sm:$0xff]
  %v119 = vld [vmem:[%s0 + $0x330] sm:$0xff]
  %v120 = vld [vmem:[%s0 + $0x338] sm:$0xff]
  %v121 = vld [vmem:[%s0 + $0x340] sm:$0xff]
  %v122 = vld [vmem:[%s0 + $0x348] sm:$0xff]
  %v123 = vld [vmem:[%s0 + $0x350] sm:$0xff]
  %v124 = vld [vmem:[%s0 + $0x358] sm:$0xff]
  %v125 = vld [vmem:[%s0 + $0x360] sm:$0xff]
  %v126 = vld [vmem:[%s0 + $0x368] sm:$0xff]
  %v127 = vld [vmem:[%s0 + $0x370] sm:$0xff]
  %v128 = vld [vmem:[%s0 + $0x378] sm:$0xff]
  %v129 = vld [vmem:[%s0 + $0x380] sm:$0xff]
  %v130 = vld [vmem:[%s0 + $0x388] sm:$0xff]
  %v131 = vld [vmem:[%s0 + $0x390] sm:$0xff]
  %v132 = vld [vmem:[%s0 + $0x398] sm:$0xff]
  %v133 = vld [vmem:[%s0 + $0x3a0] sm:$0xff]
  %v134 = vld [vmem:[%s0 + $0x3a8] sm:$0xff]
  %v135 = vld [vmem:[%s0 + $0x3b0] sm:$0xff]
  %v136 = vld [vmem:[%s0 + $0x3b8] sm:$0xff]
  %v137 = vld [vmem:[%s0 + $0x3c0] sm:$0xff]
  %v138 = vld [vmem:[%s0 + $0x3c8] sm:$0xff]
  %v139 = vld [vmem:[%s0 + $0x3d0] sm:$0xff]
  %v140 = vld [vmem:[%s0 + $0x3d8] sm:$0xff]
  %v141 = vld [vmem:[%s0 + $0x3e0] sm:$0xff]
  %v142 = vld [vmem:[%s0 + $0x3e8] sm:$0xff]
  %v143 = vld [vmem:[%s0 + $0x3f0] sm:$0xff]
  %v144 = vld [vmem:[%s0 + $0x3f8] sm:$0xff]
  %v145 = vld [vmem:[%s0 + $0x400] sm:$0xff]
  %v146 = vld [vmem:[%s0 + $0x408] sm:$0xff]
  %v147 = vld [vmem:[%s0 + $0x410] sm:$0xff]
  %v148 = vld [vmem:[%s0 + $0x418] sm:$0xff]
  %v149 = vld [vmem:[%s0 + $0x420] sm:$0xff]
  %v150 = vld [vmem:[%s0 + $0x428] sm:$0xff]
  %v151 = vld [vmem:[%s0 + $0x430] sm:$0xff]
  %v152 = vld [vmem:[%s0 + $0x438] sm:$0xff]
  %v153 = vld [vmem:[%s0 + $0x440] sm:$0xff]
  %v154 = vld [vmem:[%s0 + $0x448] sm:$0xff]
  %v155 = vld [vmem:[%s0 + $0x450] sm:$0xff]
  %v156 = vld [vmem:[%s0 + $0x458] sm:$0xff]
  %v157 = vld [vmem:[%s0 + $0x460] sm:$0xff]
  %v158 = vld [vmem:[%s0 + $0x468] sm:$0xff]
  %v159 = vld [vmem:[%s0 + $0x470] sm:$0xff]
  %v160 = vld [vmem:[%s0 + $0x478] sm:$0xff]
  %v161 = vld [vmem:[%s0 + $0x480] sm:$0xff]
  %v162 = vld [vmem:[%s0 + $0x488] sm:$0xff]
  %v163 = vld [vmem:[%s0 + $0x490] sm:$0xff]
  %v164 = vld [vmem:[%s0 + $0x498] sm:$0xff]
  %v165 = vld [vmem:[%s0 + $0x4a0] sm:$0xff]
  %v166 = vld [vmem:[%s0 + $0x4a8] sm:$0xff]
  %v167 = vld [vmem:[%s0 + $0x4b0] sm:$0xff]
  %v168 = vld [vmem:[%s0 + $0x4b8] sm:$0xff]
  %v169 = vld [vmem:[%s0 + $0x4c0] sm:$0xff]
  %v170 = vld [vmem:[%s0 + $0x4c8] sm:$0xff]
  %v171 = vld [vmem:[%s0 + $0x4d0] sm:$0xff]
  %v172 = vld [vmem:[%s0 + $0x4d8] sm:$0xff]
  %v173 = vld [vmem:[%s0 + $0x4e0] sm:$0xff]
  %v174 = vld [vmem:[%s0 + $0x4e8] sm:$0xff]
  %v175 = vld [vmem:[%s0 + $0x4f0] sm:$0xff]
  %v176 = vld [vmem:[%s0 + $0x4f8] sm:$0xff]
  %v177 = vld [vmem:[%s0 + $0x500] sm:$0xff]
  %v178 = vld [vmem:[%s0 + $0x508] sm:$0xff]
  %v179 = vld [vmem:[%s0 + $0x510] sm:$0xff]
  %v180 = vld [vmem:[%s0 + $0x518] sm:$0xff]
  %v181 = vld [vmem:[%s0 + $0x520] sm:$0xff]
  %v182 = vld [vmem:[%s0 + $0x528] sm:$0xff]
  %v183 = vld [vmem:[%s0 + $0x530] sm:$0xff]
  %v184 = vld [vmem:[%s0 + $0x538] sm:$0xff]
  %v185 = vld [vmem:[%s0 + $0x540] sm:$0xff]
  %v186 = vld [vmem:[%s0 + $0x548] sm:$0xff]
  %v187 = vld [vmem:[%s0 + $0x550] sm:$0xff]
  %v188 = vld [vmem:[%s0 + $0x558] sm:$0xff]
  %v189 = vld [vmem:[%s0 + $0x560] sm:$0xff]
  %v190 = vld [vmem:[%s0 + $0x568] sm:$0xff]
  %v191 = vld [vmem:[%s0 + $0x570] sm:$0xff]
  %v192 = vld [vmem:[%s0 + $0x578] sm:$0xff]
  %v193 = vld [vmem:[%s0 + $0x580] sm:$0xff]
  %v194 = vld [vmem:[%s0 + $0x588] sm:$0xff]
  %v195 = vld [vmem:[%s0 + $0x590] sm:$0xff]
  %v196 = vld [vmem:[%s0 + $0x598] sm:$0xff]
  %v197 = vld [vmem:[%s0 + $0x5a0] sm:$0xff]
  %v198 = vld [vmem:[%s0 + $0x5a8] sm:$0xff]
  %v199 = vld [vmem:[%s0 + $0x5b0] sm:$0xff]
  %v200 = vld [vmem:[%s0 + $0x5b8] sm:$0xff]
  %v201 = vld [vmem:[%s0 + $0x5c0] sm:$0xff]
  %v202 = vld [vmem:[%s0 + $0x5c8] sm:$0xff]
  %v203 = vld [vmem:[%s0 + $0x5d0] sm:$0xff]
  %v204 = vld [vmem:[%s0 + $0x5d8] sm:$0xff]
  %v205 = vld [vmem:[%s0 + $0x5e0] sm:$0xff]
  %v206 = vld [vmem:[%s0 + $0x5e8] sm:$0xff]
  %v207 = vld [vmem:[%s0 + $0x5f0] sm:$0xff]
  %v208 = vld [vmem:[%s0 + $0x5f8] sm:$0xff]
  %v209 = vld [vmem:[%s0 + $0x600] sm:$0xff]
  %v210 = vld [vmem:[%s0 + $0x608] sm:$0xff]
  %v211 = vld [vmem:[%s0 + $0x610] sm:$0xff]
  %v212 = vld [vmem:[%s0 + $0x618] sm:$0xff]
  %v213 = vld [vmem:[%s0 + $0x620] sm:$0xff]
  %v214 = vld [vmem:[%s0 + $0x628] sm:$0xff]
  %v215 = vld [vmem:[%s0 + $0x630] sm:$0xff]
  %v216 = vld [vmem:[%s0 + $0x638] sm:$0xff]
  %v217 = vld [vmem:[%s0 + $0x640] sm:$0xff]
  %v218 = vld [vmem:[%s0 + $0x648] sm:$0xff]
  %v219 = vld [vmem:[%s0 + $0x650] sm:$0xff]
  %v220 = vld [vmem:[%s0 + $0x658] sm:$0xff]
  %v221 = vld [vmem:[%s0 + $0x660] sm:$0xff]
  %v222 = vld [vmem:[%s0 + $0x668] sm:$0xff]
  %v223 = vld [vmem:[%s0 + $0x670] sm:$0xff]
  %v224 = vld [vmem:[%s0 + $0x678] sm:$0xff]
  %v225 = vld [vmem:[%s0 + $0x680] sm:$0xff]
  %v226 = vld [vmem:[%s0 + $0x688] sm:$0xff]
  %v227 = vld [vmem:[%s0 + $0x690] sm:$0xff]
  %v228 = vld [vmem:[%s0 + $0x698] sm:$0xff]
  %v229 = vld [vmem:[%s0 + $0x6a0] sm:$0xff]
  %v230 = vld [vmem:[%s0 + $0x6a8] sm:$0xff]
  %v231 = vld [vmem:[%s0 + $0x6b0] sm:$0xff]
  %v232 = vld [vmem:[%s0 + $0x6b8] sm:$0xff]
  %v233 = vld [vmem:[%s0 + $0x6c0] sm:$0xff]
  %v234 = vld [vmem:[%s0 + $0x6c8] sm:$0xff]
  %v235 = vld [vmem:[%s0 + $0x6d0] sm:$0xff]
  %v236 = vld [vmem:[%s0 + $0x6d8] sm:$0xff]
  %v237 = vld [vmem:[%s0 + $0x6e0] sm:$0xff]
  %v238 = vld [vmem:[%s0 + $0x6e8] sm:$0xff]
  %v239 = vld [vmem:[%s0 + $0x6f0] sm:$0xff]
  %v240 = vld [vmem:[%s0 + $0x6f8] sm:$0xff]
  %v241 = vld [vmem:[%s0 + $0x700] sm:$0xff]
  %v242 = vld [vmem:[%s0 + $0x708] sm:$0xff]
  %v243 = vld [vmem:[%s0 + $0x710] sm:$0xff]
  %v244 = vld [vmem:[%s0 + $0x718] sm:$0xff]
  %v245 = vld [vmem:[%s0 + $0x720] sm:$0xff]
  %v246 = vld [vmem:[%s0 + $0x728] sm:$0xff]
  %v247 = vld [vmem:[%s0 + $0x730] sm:$0xff]
  %v248 = vld [vmem:[%s0 + $0x738] sm:$0xff]
  %v249 = vld [vmem:[%s0 + $0x740] sm:$0xff]
  %v250 = vld [vmem:[%s0 + $0x748] sm:$0xff]
  %v251 = vld [vmem:[%s0 + $0x750] sm:$0xff]
  %v252 = vld [vmem:[%s0 + $0x758] sm:$0xff]
  %v253 = vld [vmem:[%s0 + $0x760] sm:$0xff]
  %v254 = vld [vmem:[%s0 + $0x768] sm:$0xff]
  %v255 = vld [vmem:[%s0 + $0x770] sm:$0xff]
  %v256 = vld [vmem:[%s0 + $0x778] sm:$0xff]
  %v257 = vld [vmem:[%s0 + $0x780] sm:$0xff]
  %v258 = vld [vmem:[%s0 + $0x788] sm:$0xff]
  %v259 = vld [vmem:[%s0 + $0x790] sm:$0xff]
  %v260 = vld [vmem:[%s0 + $0x798] sm:$0xff]
  %v261 = vld [vmem:[%s0 + $0x7a0] sm:$0xff]
  %v262 = vld [vmem:[%s0 + $0x7a8] sm:$0xff]
  %v263 = vld [vmem:[%s0 + $0x7b0] sm:$0xff]
  %v264 = vld [vmem:[%s0 + $0x7b8] sm:$0xff]
  %v265 = vld [vmem:[%s0 + $0x7c0] sm:$0xff]
  %v266 = vld [vmem:[%s0 + $0x7c8] sm:$0xff]
  %v267 = vld [vmem:[%s0 + $0x7d0] sm:$0xff]
  %v268 = vld [vmem:[%s0 + $0x7d8] sm:$0xff]
  %v269 = vld [vmem:[%s0 + $0x7e0] sm:$0xff]
  %v270 = vld [vmem:[%s0 + $0x7e8] sm:$0xff]
  %v271 = vld [vmem:[%s0 + $0x7f0] sm:$0xff]
  %v272 = vld [vmem:[%s0 + $0x7f8] sm:$0xff]
  %v273 = vld [vmem:[%s1] sm:$0xff]
  %v274 = vld [vmem:[%s1 + $0x8] sm:$0xff]
  %v275 = vld [vmem:[%s1 + $0x10] sm:$0xff]
  %v276 = vld [vmem:[%s1 + $0x18] sm:$0xff]
  %vm277 = vcmask 261120
  %v279 = vsel %vm277, %v17, 0
  %v282 = vsel %vm277, %v18, 0
  %v285 = vsel %vm277, %v19, 0
  %v288 = vsel %vm277, %v20, 0
  %v291 = vsel %vm277, %v21, 0
  %v294 = vsel %vm277, %v22, 0
  %v297 = vsel %vm277, %v23, 0
  %v300 = vsel %vm277, %v24, 0
  %v303 = vsel %vm277, %v25, 0
  %v306 = vsel %vm277, %v26, 0
  %v309 = vsel %vm277, %v27, 0
  %v312 = vsel %vm277, %v28, 0
  %v315 = vsel %vm277, %v29, 0
  %v318 = vsel %vm277, %v30, 0
  %v321 = vsel %vm277, %v31, 0
  %v324 = vsel %vm277, %v32, 0
  %v327 = vsel %vm277, %v33, 0
  %v330 = vsel %vm277, %v34, 0
  %v333 = vsel %vm277, %v35, 0
  %v336 = vsel %vm277, %v36, 0
  %v339 = vsel %vm277, %v37, 0
  %v342 = vsel %vm277, %v38, 0
  %v345 = vsel %vm277, %v39, 0
  %v348 = vsel %vm277, %v40, 0
  %v351 = vsel %vm277, %v41, 0
  %v354 = vsel %vm277, %v42, 0
  %v357 = vsel %vm277, %v43, 0
  %v360 = vsel %vm277, %v44, 0
  %v363 = vsel %vm277, %v45, 0
  %v366 = vsel %vm277, %v46, 0
  %v369 = vsel %vm277, %v47, 0
  %v372 = vsel %vm277, %v48, 0
  %v375 = vsel %vm277, %v49, 0
  %v378 = vsel %vm277, %v50, 0
  %v381 = vsel %vm277, %v51, 0
  %v384 = vsel %vm277, %v52, 0
  %v387 = vsel %vm277, %v53, 0
  %v390 = vsel %vm277, %v54, 0
  %v393 = vsel %vm277, %v55, 0
  %v396 = vsel %vm277, %v56, 0
  %v399 = vsel %vm277, %v57, 0
  %v402 = vsel %vm277, %v58, 0
  %v405 = vsel %vm277, %v59, 0
  %v408 = vsel %vm277, %v60, 0
  %v411 = vsel %vm277, %v61, 0
  %v414 = vsel %vm277, %v62, 0
  %v417 = vsel %vm277, %v63, 0
  %v420 = vsel %vm277, %v64, 0
  %v423 = vsel %vm277, %v65, 0
  %v426 = vsel %vm277, %v66, 0
  %v429 = vsel %vm277, %v67, 0
  %v432 = vsel %vm277, %v68, 0
  %v435 = vsel %vm277, %v69, 0
  %v438 = vsel %vm277, %v70, 0
  %v441 = vsel %vm277, %v71, 0
  %v444 = vsel %vm277, %v72, 0
  %v447 = vsel %vm277, %v73, 0
  %v450 = vsel %vm277, %v74, 0
  %v453 = vsel %vm277, %v75, 0
  %v456 = vsel %vm277, %v76, 0
  %v459 = vsel %vm277, %v77, 0
  %v462 = vsel %vm277, %v78, 0
  %v465 = vsel %vm277, %v79, 0
  %v468 = vsel %vm277, %v80, 0
  %v471 = vsel %vm277, %v81, 0
  %v474 = vsel %vm277, %v82, 0
  %v477 = vsel %vm277, %v83, 0
  %v480 = vsel %vm277, %v84, 0
  %v483 = vsel %vm277, %v85, 0
  %v486 = vsel %vm277, %v86, 0
  %v489 = vsel %vm277, %v87, 0
  %v492 = vsel %vm277, %v88, 0
  %v495 = vsel %vm277, %v89, 0
  %v498 = vsel %vm277, %v90, 0
  %v501 = vsel %vm277, %v91, 0
  %v504 = vsel %vm277, %v92, 0
  %v507 = vsel %vm277, %v93, 0
  %v510 = vsel %vm277, %v94, 0
  %v513 = vsel %vm277, %v95, 0
  %v516 = vsel %vm277, %v96, 0
  %v519 = vsel %vm277, %v97, 0
  %v522 = vsel %vm277, %v98, 0
  %v525 = vsel %vm277, %v99, 0
  %v528 = vsel %vm277, %v100, 0
  %v531 = vsel %vm277, %v101, 0
  %v534 = vsel %vm277, %v102, 0
  %v537 = vsel %vm277, %v103, 0
  %v540 = vsel %vm277, %v104, 0
  %v543 = vsel %vm277, %v105, 0
  %v546 = vsel %vm277, %v106, 0
  %v549 = vsel %vm277, %v107, 0
  %v552 = vsel %vm277, %v108, 0
  %v555 = vsel %vm277, %v109, 0
  %v558 = vsel %vm277, %v110, 0
  %v561 = vsel %vm277, %v111, 0
  %v564 = vsel %vm277, %v112, 0
  %v567 = vsel %vm277, %v113, 0
  %v570 = vsel %vm277, %v114, 0
  %v573 = vsel %vm277, %v115, 0
  %v576 = vsel %vm277, %v116, 0
  %v579 = vsel %vm277, %v117, 0
  %v582 = vsel %vm277, %v118, 0
  %v585 = vsel %vm277, %v119, 0
  %v588 = vsel %vm277, %v120, 0
  %v591 = vsel %vm277, %v121, 0
  %v594 = vsel %vm277, %v122, 0
  %v597 = vsel %vm277, %v123, 0
  %v600 = vsel %vm277, %v124, 0
  %v603 = vsel %vm277, %v125, 0
  %v606 = vsel %vm277, %v126, 0
  %v609 = vsel %vm277, %v127, 0
  %v612 = vsel %vm277, %v128, 0
  %v615 = vsel %vm277, %v129, 0
  %v618 = vsel %vm277, %v130, 0
  %v621 = vsel %vm277, %v131, 0
  %v624 = vsel %vm277, %v132, 0
  %v627 = vsel %vm277, %v133, 0
  %v630 = vsel %vm277, %v134, 0
  %v633 = vsel %vm277, %v135, 0
  %v636 = vsel %vm277, %v136, 0
  %v639 = vsel %vm277, %v137, 0
  %v642 = vsel %vm277, %v138, 0
  %v645 = vsel %vm277, %v139, 0
  %v648 = vsel %vm277, %v140, 0
  %v651 = vsel %vm277, %v141, 0
  %v654 = vsel %vm277, %v142, 0
  %v657 = vsel %vm277, %v143, 0
  %v660 = vsel %vm277, %v144, 0
  %v663 = vsel %vm277, %v145, 0
  %v666 = vsel %vm277, %v146, 0
  %v669 = vsel %vm277, %v147, 0
  %v672 = vsel %vm277, %v148, 0
  %v675 = vsel %vm277, %v149, 0
  %v678 = vsel %vm277, %v150, 0
  %v681 = vsel %vm277, %v151, 0
  %v684 = vsel %vm277, %v152, 0
  %v687 = vsel %vm277, %v153, 0
  %v690 = vsel %vm277, %v154, 0
  %v693 = vsel %vm277, %v155, 0
  %v696 = vsel %vm277, %v156, 0
  %v699 = vsel %vm277, %v157, 0
  %v702 = vsel %vm277, %v158, 0
  %v705 = vsel %vm277, %v159, 0
  %v708 = vsel %vm277, %v160, 0
  %v711 = vsel %vm277, %v161, 0
  %v714 = vsel %vm277, %v162, 0
  %v717 = vsel %vm277, %v163, 0
  %v720 = vsel %vm277, %v164, 0
  %v723 = vsel %vm277, %v165, 0
  %v726 = vsel %vm277, %v166, 0
  %v729 = vsel %vm277, %v167, 0
  %v732 = vsel %vm277, %v168, 0
  %v735 = vsel %vm277, %v169, 0
  %v738 = vsel %vm277, %v170, 0
  %v741 = vsel %vm277, %v171, 0
  %v744 = vsel %vm277, %v172, 0
  %v747 = vsel %vm277, %v173, 0
  %v750 = vsel %vm277, %v174, 0
  %v753 = vsel %vm277, %v175, 0
  %v756 = vsel %vm277, %v176, 0
  %v759 = vsel %vm277, %v177, 0
  %v762 = vsel %vm277, %v178, 0
  %v765 = vsel %vm277, %v179, 0
  %v768 = vsel %vm277, %v180, 0
  %v771 = vsel %vm277, %v181, 0
  %v774 = vsel %vm277, %v182, 0
  %v777 = vsel %vm277, %v183, 0
  %v780 = vsel %vm277, %v184, 0
  %v783 = vsel %vm277, %v185, 0
  %v786 = vsel %vm277, %v186, 0
  %v789 = vsel %vm277, %v187, 0
  %v792 = vsel %vm277, %v188, 0
  %v795 = vsel %vm277, %v189, 0
  %v798 = vsel %vm277, %v190, 0
  %v801 = vsel %vm277, %v191, 0
  %v804 = vsel %vm277, %v192, 0
  %v807 = vsel %vm277, %v193, 0
  %v810 = vsel %vm277, %v194, 0
  %v813 = vsel %vm277, %v195, 0
  %v816 = vsel %vm277, %v196, 0
  %v819 = vsel %vm277, %v197, 0
  %v822 = vsel %vm277, %v198, 0
  %v825 = vsel %vm277, %v199, 0
  %v828 = vsel %vm277, %v200, 0
  %v831 = vsel %vm277, %v201, 0
  %v834 = vsel %vm277, %v202, 0
  %v837 = vsel %vm277, %v203, 0
  %v840 = vsel %vm277, %v204, 0
  %v843 = vsel %vm277, %v205, 0
  %v846 = vsel %vm277, %v206, 0
  %v849 = vsel %vm277, %v207, 0
  %v852 = vsel %vm277, %v208, 0
  %v855 = vsel %vm277, %v209, 0
  %v858 = vsel %vm277, %v210, 0
  %v861 = vsel %vm277, %v211, 0
  %v864 = vsel %vm277, %v212, 0
  %v867 = vsel %vm277, %v213, 0
  %v870 = vsel %vm277, %v214, 0
  %v873 = vsel %vm277, %v215, 0
  %v876 = vsel %vm277, %v216, 0
  %v879 = vsel %vm277, %v217, 0
  %v882 = vsel %vm277, %v218, 0
  %v885 = vsel %vm277, %v219, 0
  %v888 = vsel %vm277, %v220, 0
  %v891 = vsel %vm277, %v221, 0
  %v894 = vsel %vm277, %v222, 0
  %v897 = vsel %vm277, %v223, 0
  %v900 = vsel %vm277, %v224, 0
  %v903 = vsel %vm277, %v225, 0
  %v906 = vsel %vm277, %v226, 0
  %v909 = vsel %vm277, %v227, 0
  %v912 = vsel %vm277, %v228, 0
  %v915 = vsel %vm277, %v229, 0
  %v918 = vsel %vm277, %v230, 0
  %v921 = vsel %vm277, %v231, 0
  %v924 = vsel %vm277, %v232, 0
  %v927 = vsel %vm277, %v233, 0
  %v930 = vsel %vm277, %v234, 0
  %v933 = vsel %vm277, %v235, 0
  %v936 = vsel %vm277, %v236, 0
  %v939 = vsel %vm277, %v237, 0
  %v942 = vsel %vm277, %v238, 0
  %v945 = vsel %vm277, %v239, 0
  %v948 = vsel %vm277, %v240, 0
  %v951 = vsel %vm277, %v241, 0
  %v954 = vsel %vm277, %v242, 0
  %v957 = vsel %vm277, %v243, 0
  %v960 = vsel %vm277, %v244, 0
  %v963 = vsel %vm277, %v245, 0
  %v966 = vsel %vm277, %v246, 0
  %v969 = vsel %vm277, %v247, 0
  %v972 = vsel %vm277, %v248, 0
  %v975 = vsel %vm277, %v249, 0
  %v978 = vsel %vm277, %v250, 0
  %v981 = vsel %vm277, %v251, 0
  %v984 = vsel %vm277, %v252, 0
  %v987 = vsel %vm277, %v253, 0
  %v990 = vsel %vm277, %v254, 0
  %v993 = vsel %vm277, %v255, 0
  %v996 = vsel %vm277, %v256, 0
  %v999 = vsel %vm277, %v257, 0
  %v1002 = vsel %vm277, %v258, 0
  %v1005 = vsel %vm277, %v259, 0
  %v1008 = vsel %vm277, %v260, 0
  %v1011 = vsel %vm277, %v261, 0
  %v1014 = vsel %vm277, %v262, 0
  %v1017 = vsel %vm277, %v263, 0
  %v1020 = vsel %vm277, %v264, 0
  %v1023 = vsel %vm277, %v265, 0
  %v1026 = vsel %vm277, %v266, 0
  %v1029 = vsel %vm277, %v267, 0
  %v1032 = vsel %vm277, %v268, 0
  %v1035 = vsel %vm277, %v269, 0
  %v1038 = vsel %vm277, %v270, 0
  %v1041 = vsel %vm277, %v271, 0
  %v1044 = vsel %vm277, %v272, 0
  %1046 = vmatpush.msra.mxu0 0.0
  %1047 = vmatpush.msra.mxu0 0.0
  %1048 = vmatpush.msra.mxu0 0.0
  %1049 = vmatpush.msra.mxu0 0.0
  %1050 = vmatpush.msra.mxu0 0.0
  %1051 = vmatpush.msra.mxu0 0.0
  %1052 = vmatpush.msra.mxu0 0.0
  %1053 = vmatpush.msra.mxu0 0.0
  %1054 = vmatpush.msra.mxu0 0.0
  %1055 = vmatpush.msra.mxu0 0.0
  %1056 = vmatpush.msra.mxu0 0.0
  %1057 = vmatpush.msra.mxu0 0.0
  %1058 = vmatpush.msra.mxu0 %v276
  %1059 = vmatpush.msra.mxu0 %v275
  %1060 = vmatpush.msra.mxu0 %v274
  %1061 = vmatpush.msra.mxu0 %v273
  %1062 = vmatmul.f32.gmra.mxu0 %v279
  %v1063 = vpop.f32.mrf.mxu0
  %v1064 = vadd.f32 0.0, %v1063
  %1065 = vmatmul.f32.gmra.mxu0 %v282
  %v1066 = vpop.f32.mrf.mxu0
  %v1067 = vadd.f32 0.0, %v1066
  %1068 = vmatmul.f32.gmra.mxu0 %v285
  %v1069 = vpop.f32.mrf.mxu0
  %v1070 = vadd.f32 0.0, %v1069
  %1071 = vmatmul.f32.gmra.mxu0 %v288
  %v1072 = vpop.f32.mrf.mxu0
  %v1073 = vadd.f32 0.0, %v1072
  %1074 = vmatmul.f32.gmra.mxu0 %v291
  %v1075 = vpop.f32.mrf.mxu0
  %v1076 = vadd.f32 0.0, %v1075
  %1077 = vmatmul.f32.gmra.mxu0 %v294
  %v1078 = vpop.f32.mrf.mxu0
  %v1079 = vadd.f32 0.0, %v1078
  %1080 = vmatmul.f32.gmra.mxu0 %v297
  %v1081 = vpop.f32.mrf.mxu0
  %v1082 = vadd.f32 0.0, %v1081
  %1083 = vmatmul.f32.gmra.mxu0 %v300
  %v1084 = vpop.f32.mrf.mxu0
  %v1085 = vadd.f32 0.0, %v1084
  %1086 = vmatmul.f32.gmra.mxu0 %v303
  %v1087 = vpop.f32.mrf.mxu0
  %v1088 = vadd.f32 0.0, %v1087
  %1089 = vmatmul.f32.gmra.mxu0 %v306
  %v1090 = vpop.f32.mrf.mxu0
  %v1091 = vadd.f32 0.0, %v1090
  %1092 = vmatmul.f32.gmra.mxu0 %v309
  %v1093 = vpop.f32.mrf.mxu0
  %v1094 = vadd.f32 0.0, %v1093
  %1095 = vmatmul.f32.gmra.mxu0 %v312
  %v1096 = vpop.f32.mrf.mxu0
  %v1097 = vadd.f32 0.0, %v1096
  %1098 = vmatmul.f32.gmra.mxu0 %v315
  %v1099 = vpop.f32.mrf.mxu0
  %v1100 = vadd.f32 0.0, %v1099
  %1101 = vmatmul.f32.gmra.mxu0 %v318
  %v1102 = vpop.f32.mrf.mxu0
  %v1103 = vadd.f32 0.0, %v1102
  %1104 = vmatmul.f32.gmra.mxu0 %v321
  %v1105 = vpop.f32.mrf.mxu0
  %v1106 = vadd.f32 0.0, %v1105
  %1107 = vmatmul.f32.gmra.mxu0 %v324
  %v1108 = vpop.f32.mrf.mxu0
  %v1109 = vadd.f32 0.0, %v1108
  %1110 = vmatmul.f32.gmra.mxu0 %v327
  %v1111 = vpop.f32.mrf.mxu0
  %v1112 = vadd.f32 0.0, %v1111
  %1113 = vmatmul.f32.gmra.mxu0 %v330
  %v1114 = vpop.f32.mrf.mxu0
  %v1115 = vadd.f32 0.0, %v1114
  %1116 = vmatmul.f32.gmra.mxu0 %v333
  %v1117 = vpop.f32.mrf.mxu0
  %v1118 = vadd.f32 0.0, %v1117
  %1119 = vmatmul.f32.gmra.mxu0 %v336
  %v1120 = vpop.f32.mrf.mxu0
  %v1121 = vadd.f32 0.0, %v1120
  %1122 = vmatmul.f32.gmra.mxu0 %v339
  %v1123 = vpop.f32.mrf.mxu0
  %v1124 = vadd.f32 0.0, %v1123
  %1125 = vmatmul.f32.gmra.mxu0 %v342
  %v1126 = vpop.f32.mrf.mxu0
  %v1127 = vadd.f32 0.0, %v1126
  %1128 = vmatmul.f32.gmra.mxu0 %v345
  %v1129 = vpop.f32.mrf.mxu0
  %v1130 = vadd.f32 0.0, %v1129
  %1131 = vmatmul.f32.gmra.mxu0 %v348
  %v1132 = vpop.f32.mrf.mxu0
  %v1133 = vadd.f32 0.0, %v1132
  %1134 = vmatmul.f32.gmra.mxu0 %v351
  %v1135 = vpop.f32.mrf.mxu0
  %v1136 = vadd.f32 0.0, %v1135
  %1137 = vmatmul.f32.gmra.mxu0 %v354
  %v1138 = vpop.f32.mrf.mxu0
  %v1139 = vadd.f32 0.0, %v1138
  %1140 = vmatmul.f32.gmra.mxu0 %v357
  %v1141 = vpop.f32.mrf.mxu0
  %v1142 = vadd.f32 0.0, %v1141
  %1143 = vmatmul.f32.gmra.mxu0 %v360
  %v1144 = vpop.f32.mrf.mxu0
  %v1145 = vadd.f32 0.0, %v1144
  %1146 = vmatmul.f32.gmra.mxu0 %v363
  %v1147 = vpop.f32.mrf.mxu0
  %v1148 = vadd.f32 0.0, %v1147
  %1149 = vmatmul.f32.gmra.mxu0 %v366
  %v1150 = vpop.f32.mrf.mxu0
  %v1151 = vadd.f32 0.0, %v1150
  %1152 = vmatmul.f32.gmra.mxu0 %v369
  %v1153 = vpop.f32.mrf.mxu0
  %v1154 = vadd.f32 0.0, %v1153
  %1155 = vmatmul.f32.gmra.mxu0 %v372
  %v1156 = vpop.f32.mrf.mxu0
  %v1157 = vadd.f32 0.0, %v1156
  %1158 = vmatmul.f32.gmra.mxu0 %v375
  %v1159 = vpop.f32.mrf.mxu0
  %v1160 = vadd.f32 0.0, %v1159
  %1161 = vmatmul.f32.gmra.mxu0 %v378
  %v1162 = vpop.f32.mrf.mxu0
  %v1163 = vadd.f32 0.0, %v1162
  %1164 = vmatmul.f32.gmra.mxu0 %v381
  %v1165 = vpop.f32.mrf.mxu0
  %v1166 = vadd.f32 0.0, %v1165
  %1167 = vmatmul.f32.gmra.mxu0 %v384
  %v1168 = vpop.f32.mrf.mxu0
  %v1169 = vadd.f32 0.0, %v1168
  %1170 = vmatmul.f32.gmra.mxu0 %v387
  %v1171 = vpop.f32.mrf.mxu0
  %v1172 = vadd.f32 0.0, %v1171
  %1173 = vmatmul.f32.gmra.mxu0 %v390
  %v1174 = vpop.f32.mrf.mxu0
  %v1175 = vadd.f32 0.0, %v1174
  %1176 = vmatmul.f32.gmra.mxu0 %v393
  %v1177 = vpop.f32.mrf.mxu0
  %v1178 = vadd.f32 0.0, %v1177
  %1179 = vmatmul.f32.gmra.mxu0 %v396
  %v1180 = vpop.f32.mrf.mxu0
  %v1181 = vadd.f32 0.0, %v1180
  %1182 = vmatmul.f32.gmra.mxu0 %v399
  %v1183 = vpop.f32.mrf.mxu0
  %v1184 = vadd.f32 0.0, %v1183
  %1185 = vmatmul.f32.gmra.mxu0 %v402
  %v1186 = vpop.f32.mrf.mxu0
  %v1187 = vadd.f32 0.0, %v1186
  %1188 = vmatmul.f32.gmra.mxu0 %v405
  %v1189 = vpop.f32.mrf.mxu0
  %v1190 = vadd.f32 0.0, %v1189
  %1191 = vmatmul.f32.gmra.mxu0 %v408
  %v1192 = vpop.f32.mrf.mxu0
  %v1193 = vadd.f32 0.0, %v1192
  %1194 = vmatmul.f32.gmra.mxu0 %v411
  %v1195 = vpop.f32.mrf.mxu0
  %v1196 = vadd.f32 0.0, %v1195
  %1197 = vmatmul.f32.gmra.mxu0 %v414
  %v1198 = vpop.f32.mrf.mxu0
  %v1199 = vadd.f32 0.0, %v1198
  %1200 = vmatmul.f32.gmra.mxu0 %v417
  %v1201 = vpop.f32.mrf.mxu0
  %v1202 = vadd.f32 0.0, %v1201
  %1203 = vmatmul.f32.gmra.mxu0 %v420
  %v1204 = vpop.f32.mrf.mxu0
  %v1205 = vadd.f32 0.0, %v1204
  %1206 = vmatmul.f32.gmra.mxu0 %v423
  %v1207 = vpop.f32.mrf.mxu0
  %v1208 = vadd.f32 0.0, %v1207
  %1209 = vmatmul.f32.gmra.mxu0 %v426
  %v1210 = vpop.f32.mrf.mxu0
  %v1211 = vadd.f32 0.0, %v1210
  %1212 = vmatmul.f32.gmra.mxu0 %v429
  %v1213 = vpop.f32.mrf.mxu0
  %v1214 = vadd.f32 0.0, %v1213
  %1215 = vmatmul.f32.gmra.mxu0 %v432
  %v1216 = vpop.f32.mrf.mxu0
  %v1217 = vadd.f32 0.0, %v1216
  %1218 = vmatmul.f32.gmra.mxu0 %v435
  %v1219 = vpop.f32.mrf.mxu0
  %v1220 = vadd.f32 0.0, %v1219
  %1221 = vmatmul.f32.gmra.mxu0 %v438
  %v1222 = vpop.f32.mrf.mxu0
  %v1223 = vadd.f32 0.0, %v1222
  %1224 = vmatmul.f32.gmra.mxu0 %v441
  %v1225 = vpop.f32.mrf.mxu0
  %v1226 = vadd.f32 0.0, %v1225
  %1227 = vmatmul.f32.gmra.mxu0 %v444
  %v1228 = vpop.f32.mrf.mxu0
  %v1229 = vadd.f32 0.0, %v1228
  %1230 = vmatmul.f32.gmra.mxu0 %v447
  %v1231 = vpop.f32.mrf.mxu0
  %v1232 = vadd.f32 0.0, %v1231
  %1233 = vmatmul.f32.gmra.mxu0 %v450
  %v1234 = vpop.f32.mrf.mxu0
  %v1235 = vadd.f32 0.0, %v1234
  %1236 = vmatmul.f32.gmra.mxu0 %v453
  %v1237 = vpop.f32.mrf.mxu0
  %v1238 = vadd.f32 0.0, %v1237
  %1239 = vmatmul.f32.gmra.mxu0 %v456
  %v1240 = vpop.f32.mrf.mxu0
  %v1241 = vadd.f32 0.0, %v1240
  %1242 = vmatmul.f32.gmra.mxu0 %v459
  %v1243 = vpop.f32.mrf.mxu0
  %v1244 = vadd.f32 0.0, %v1243
  %1245 = vmatmul.f32.gmra.mxu0 %v462
  %v1246 = vpop.f32.mrf.mxu0
  %v1247 = vadd.f32 0.0, %v1246
  %1248 = vmatmul.f32.gmra.mxu0 %v465
  %v1249 = vpop.f32.mrf.mxu0
  %v1250 = vadd.f32 0.0, %v1249
  %1251 = vmatmul.f32.gmra.mxu0 %v468
  %v1252 = vpop.f32.mrf.mxu0
  %v1253 = vadd.f32 0.0, %v1252
  %1254 = vmatmul.f32.gmra.mxu0 %v471
  %v1255 = vpop.f32.mrf.mxu0
  %v1256 = vadd.f32 0.0, %v1255
  %1257 = vmatmul.f32.gmra.mxu0 %v474
  %v1258 = vpop.f32.mrf.mxu0
  %v1259 = vadd.f32 0.0, %v1258
  %1260 = vmatmul.f32.gmra.mxu0 %v477
  %v1261 = vpop.f32.mrf.mxu0
  %v1262 = vadd.f32 0.0, %v1261
  %1263 = vmatmul.f32.gmra.mxu0 %v480
  %v1264 = vpop.f32.mrf.mxu0
  %v1265 = vadd.f32 0.0, %v1264
  %1266 = vmatmul.f32.gmra.mxu0 %v483
  %v1267 = vpop.f32.mrf.mxu0
  %v1268 = vadd.f32 0.0, %v1267
  %1269 = vmatmul.f32.gmra.mxu0 %v486
  %v1270 = vpop.f32.mrf.mxu0
  %v1271 = vadd.f32 0.0, %v1270
  %1272 = vmatmul.f32.gmra.mxu0 %v489
  %v1273 = vpop.f32.mrf.mxu0
  %v1274 = vadd.f32 0.0, %v1273
  %1275 = vmatmul.f32.gmra.mxu0 %v492
  %v1276 = vpop.f32.mrf.mxu0
  %v1277 = vadd.f32 0.0, %v1276
  %1278 = vmatmul.f32.gmra.mxu0 %v495
  %v1279 = vpop.f32.mrf.mxu0
  %v1280 = vadd.f32 0.0, %v1279
  %1281 = vmatmul.f32.gmra.mxu0 %v498
  %v1282 = vpop.f32.mrf.mxu0
  %v1283 = vadd.f32 0.0, %v1282
  %1284 = vmatmul.f32.gmra.mxu0 %v501
  %v1285 = vpop.f32.mrf.mxu0
  %v1286 = vadd.f32 0.0, %v1285
  %1287 = vmatmul.f32.gmra.mxu0 %v504
  %v1288 = vpop.f32.mrf.mxu0
  %v1289 = vadd.f32 0.0, %v1288
  %1290 = vmatmul.f32.gmra.mxu0 %v507
  %v1291 = vpop.f32.mrf.mxu0
  %v1292 = vadd.f32 0.0, %v1291
  %1293 = vmatmul.f32.gmra.mxu0 %v510
  %v1294 = vpop.f32.mrf.mxu0
  %v1295 = vadd.f32 0.0, %v1294
  %1296 = vmatmul.f32.gmra.mxu0 %v513
  %v1297 = vpop.f32.mrf.mxu0
  %v1298 = vadd.f32 0.0, %v1297
  %1299 = vmatmul.f32.gmra.mxu0 %v516
  %v1300 = vpop.f32.mrf.mxu0
  %v1301 = vadd.f32 0.0, %v1300
  %1302 = vmatmul.f32.gmra.mxu0 %v519
  %v1303 = vpop.f32.mrf.mxu0
  %v1304 = vadd.f32 0.0, %v1303
  %1305 = vmatmul.f32.gmra.mxu0 %v522
  %v1306 = vpop.f32.mrf.mxu0
  %v1307 = vadd.f32 0.0, %v1306
  %1308 = vmatmul.f32.gmra.mxu0 %v525
  %v1309 = vpop.f32.mrf.mxu0
  %v1310 = vadd.f32 0.0, %v1309
  %1311 = vmatmul.f32.gmra.mxu0 %v528
  %v1312 = vpop.f32.mrf.mxu0
  %v1313 = vadd.f32 0.0, %v1312
  %1314 = vmatmul.f32.gmra.mxu0 %v531
  %v1315 = vpop.f32.mrf.mxu0
  %v1316 = vadd.f32 0.0, %v1315
  %1317 = vmatmul.f32.gmra.mxu0 %v534
  %v1318 = vpop.f32.mrf.mxu0
  %v1319 = vadd.f32 0.0, %v1318
  %1320 = vmatmul.f32.gmra.mxu0 %v537
  %v1321 = vpop.f32.mrf.mxu0
  %v1322 = vadd.f32 0.0, %v1321
  %1323 = vmatmul.f32.gmra.mxu0 %v540
  %v1324 = vpop.f32.mrf.mxu0
  %v1325 = vadd.f32 0.0, %v1324
  %1326 = vmatmul.f32.gmra.mxu0 %v543
  %v1327 = vpop.f32.mrf.mxu0
  %v1328 = vadd.f32 0.0, %v1327
  %1329 = vmatmul.f32.gmra.mxu0 %v546
  %v1330 = vpop.f32.mrf.mxu0
  %v1331 = vadd.f32 0.0, %v1330
  %1332 = vmatmul.f32.gmra.mxu0 %v549
  %v1333 = vpop.f32.mrf.mxu0
  %v1334 = vadd.f32 0.0, %v1333
  %1335 = vmatmul.f32.gmra.mxu0 %v552
  %v1336 = vpop.f32.mrf.mxu0
  %v1337 = vadd.f32 0.0, %v1336
  %1338 = vmatmul.f32.gmra.mxu0 %v555
  %v1339 = vpop.f32.mrf.mxu0
  %v1340 = vadd.f32 0.0, %v1339
  %1341 = vmatmul.f32.gmra.mxu0 %v558
  %v1342 = vpop.f32.mrf.mxu0
  %v1343 = vadd.f32 0.0, %v1342
  %1344 = vmatmul.f32.gmra.mxu0 %v561
  %v1345 = vpop.f32.mrf.mxu0
  %v1346 = vadd.f32 0.0, %v1345
  %1347 = vmatmul.f32.gmra.mxu0 %v564
  %v1348 = vpop.f32.mrf.mxu0
  %v1349 = vadd.f32 0.0, %v1348
  %1350 = vmatmul.f32.gmra.mxu0 %v567
  %v1351 = vpop.f32.mrf.mxu0
  %v1352 = vadd.f32 0.0, %v1351
  %1353 = vmatmul.f32.gmra.mxu0 %v570
  %v1354 = vpop.f32.mrf.mxu0
  %v1355 = vadd.f32 0.0, %v1354
  %1356 = vmatmul.f32.gmra.mxu0 %v573
  %v1357 = vpop.f32.mrf.mxu0
  %v1358 = vadd.f32 0.0, %v1357
  %1359 = vmatmul.f32.gmra.mxu0 %v576
  %v1360 = vpop.f32.mrf.mxu0
  %v1361 = vadd.f32 0.0, %v1360
  %1362 = vmatmul.f32.gmra.mxu0 %v579
  %v1363 = vpop.f32.mrf.mxu0
  %v1364 = vadd.f32 0.0, %v1363
  %1365 = vmatmul.f32.gmra.mxu0 %v582
  %v1366 = vpop.f32.mrf.mxu0
  %v1367 = vadd.f32 0.0, %v1366
  %1368 = vmatmul.f32.gmra.mxu0 %v585
  %v1369 = vpop.f32.mrf.mxu0
  %v1370 = vadd.f32 0.0, %v1369
  %1371 = vmatmul.f32.gmra.mxu0 %v588
  %v1372 = vpop.f32.mrf.mxu0
  %v1373 = vadd.f32 0.0, %v1372
  %1374 = vmatmul.f32.gmra.mxu0 %v591
  %v1375 = vpop.f32.mrf.mxu0
  %v1376 = vadd.f32 0.0, %v1375
  %1377 = vmatmul.f32.gmra.mxu0 %v594
  %v1378 = vpop.f32.mrf.mxu0
  %v1379 = vadd.f32 0.0, %v1378
  %1380 = vmatmul.f32.gmra.mxu0 %v597
  %v1381 = vpop.f32.mrf.mxu0
  %v1382 = vadd.f32 0.0, %v1381
  %1383 = vmatmul.f32.gmra.mxu0 %v600
  %v1384 = vpop.f32.mrf.mxu0
  %v1385 = vadd.f32 0.0, %v1384
  %1386 = vmatmul.f32.gmra.mxu0 %v603
  %v1387 = vpop.f32.mrf.mxu0
  %v1388 = vadd.f32 0.0, %v1387
  %1389 = vmatmul.f32.gmra.mxu0 %v606
  %v1390 = vpop.f32.mrf.mxu0
  %v1391 = vadd.f32 0.0, %v1390
  %1392 = vmatmul.f32.gmra.mxu0 %v609
  %v1393 = vpop.f32.mrf.mxu0
  %v1394 = vadd.f32 0.0, %v1393
  %1395 = vmatmul.f32.gmra.mxu0 %v612
  %v1396 = vpop.f32.mrf.mxu0
  %v1397 = vadd.f32 0.0, %v1396
  %1398 = vmatmul.f32.gmra.mxu0 %v615
  %v1399 = vpop.f32.mrf.mxu0
  %v1400 = vadd.f32 0.0, %v1399
  %1401 = vmatmul.f32.gmra.mxu0 %v618
  %v1402 = vpop.f32.mrf.mxu0
  %v1403 = vadd.f32 0.0, %v1402
  %1404 = vmatmul.f32.gmra.mxu0 %v621
  %v1405 = vpop.f32.mrf.mxu0
  %v1406 = vadd.f32 0.0, %v1405
  %1407 = vmatmul.f32.gmra.mxu0 %v624
  %v1408 = vpop.f32.mrf.mxu0
  %v1409 = vadd.f32 0.0, %v1408
  %1410 = vmatmul.f32.gmra.mxu0 %v627
  %v1411 = vpop.f32.mrf.mxu0
  %v1412 = vadd.f32 0.0, %v1411
  %1413 = vmatmul.f32.gmra.mxu0 %v630
  %v1414 = vpop.f32.mrf.mxu0
  %v1415 = vadd.f32 0.0, %v1414
  %1416 = vmatmul.f32.gmra.mxu0 %v633
  %v1417 = vpop.f32.mrf.mxu0
  %v1418 = vadd.f32 0.0, %v1417
  %1419 = vmatmul.f32.gmra.mxu0 %v636
  %v1420 = vpop.f32.mrf.mxu0
  %v1421 = vadd.f32 0.0, %v1420
  %1422 = vmatmul.f32.gmra.mxu0 %v639
  %v1423 = vpop.f32.mrf.mxu0
  %v1424 = vadd.f32 0.0, %v1423
  %1425 = vmatmul.f32.gmra.mxu0 %v642
  %v1426 = vpop.f32.mrf.mxu0
  %v1427 = vadd.f32 0.0, %v1426
  %1428 = vmatmul.f32.gmra.mxu0 %v645
  %v1429 = vpop.f32.mrf.mxu0
  %v1430 = vadd.f32 0.0, %v1429
  %1431 = vmatmul.f32.gmra.mxu0 %v648
  %v1432 = vpop.f32.mrf.mxu0
  %v1433 = vadd.f32 0.0, %v1432
  %1434 = vmatmul.f32.gmra.mxu0 %v651
  %v1435 = vpop.f32.mrf.mxu0
  %v1436 = vadd.f32 0.0, %v1435
  %1437 = vmatmul.f32.gmra.mxu0 %v654
  %v1438 = vpop.f32.mrf.mxu0
  %v1439 = vadd.f32 0.0, %v1438
  %1440 = vmatmul.f32.gmra.mxu0 %v657
  %v1441 = vpop.f32.mrf.mxu0
  %v1442 = vadd.f32 0.0, %v1441
  %1443 = vmatmul.f32.gmra.mxu0 %v660
  %v1444 = vpop.f32.mrf.mxu0
  %v1445 = vadd.f32 0.0, %v1444
  %1446 = vmatmul.f32.gmra.mxu0 %v663
  %v1447 = vpop.f32.mrf.mxu0
  %v1448 = vadd.f32 0.0, %v1447
  %1449 = vmatmul.f32.gmra.mxu0 %v666
  %v1450 = vpop.f32.mrf.mxu0
  %v1451 = vadd.f32 0.0, %v1450
  %1452 = vmatmul.f32.gmra.mxu0 %v669
  %v1453 = vpop.f32.mrf.mxu0
  %v1454 = vadd.f32 0.0, %v1453
  %1455 = vmatmul.f32.gmra.mxu0 %v672
  %v1456 = vpop.f32.mrf.mxu0
  %v1457 = vadd.f32 0.0, %v1456
  %1458 = vmatmul.f32.gmra.mxu0 %v675
  %v1459 = vpop.f32.mrf.mxu0
  %v1460 = vadd.f32 0.0, %v1459
  %1461 = vmatmul.f32.gmra.mxu0 %v678
  %v1462 = vpop.f32.mrf.mxu0
  %v1463 = vadd.f32 0.0, %v1462
  %1464 = vmatmul.f32.gmra.mxu0 %v681
  %v1465 = vpop.f32.mrf.mxu0
  %v1466 = vadd.f32 0.0, %v1465
  %1467 = vmatmul.f32.gmra.mxu0 %v684
  %v1468 = vpop.f32.mrf.mxu0
  %v1469 = vadd.f32 0.0, %v1468
  %1470 = vmatmul.f32.gmra.mxu0 %v687
  %v1471 = vpop.f32.mrf.mxu0
  %v1472 = vadd.f32 0.0, %v1471
  %1473 = vmatmul.f32.gmra.mxu0 %v690
  %v1474 = vpop.f32.mrf.mxu0
  %v1475 = vadd.f32 0.0, %v1474
  %1476 = vmatmul.f32.gmra.mxu0 %v693
  %v1477 = vpop.f32.mrf.mxu0
  %v1478 = vadd.f32 0.0, %v1477
  %1479 = vmatmul.f32.gmra.mxu0 %v696
  %v1480 = vpop.f32.mrf.mxu0
  %v1481 = vadd.f32 0.0, %v1480
  %1482 = vmatmul.f32.gmra.mxu0 %v699
  %v1483 = vpop.f32.mrf.mxu0
  %v1484 = vadd.f32 0.0, %v1483
  %1485 = vmatmul.f32.gmra.mxu0 %v702
  %v1486 = vpop.f32.mrf.mxu0
  %v1487 = vadd.f32 0.0, %v1486
  %1488 = vmatmul.f32.gmra.mxu0 %v705
  %v1489 = vpop.f32.mrf.mxu0
  %v1490 = vadd.f32 0.0, %v1489
  %1491 = vmatmul.f32.gmra.mxu0 %v708
  %v1492 = vpop.f32.mrf.mxu0
  %v1493 = vadd.f32 0.0, %v1492
  %1494 = vmatmul.f32.gmra.mxu0 %v711
  %v1495 = vpop.f32.mrf.mxu0
  %v1496 = vadd.f32 0.0, %v1495
  %1497 = vmatmul.f32.gmra.mxu0 %v714
  %v1498 = vpop.f32.mrf.mxu0
  %v1499 = vadd.f32 0.0, %v1498
  %1500 = vmatmul.f32.gmra.mxu0 %v717
  %v1501 = vpop.f32.mrf.mxu0
  %v1502 = vadd.f32 0.0, %v1501
  %1503 = vmatmul.f32.gmra.mxu0 %v720
  %v1504 = vpop.f32.mrf.mxu0
  %v1505 = vadd.f32 0.0, %v1504
  %1506 = vmatmul.f32.gmra.mxu0 %v723
  %v1507 = vpop.f32.mrf.mxu0
  %v1508 = vadd.f32 0.0, %v1507
  %1509 = vmatmul.f32.gmra.mxu0 %v726
  %v1510 = vpop.f32.mrf.mxu0
  %v1511 = vadd.f32 0.0, %v1510
  %1512 = vmatmul.f32.gmra.mxu0 %v729
  %v1513 = vpop.f32.mrf.mxu0
  %v1514 = vadd.f32 0.0, %v1513
  %1515 = vmatmul.f32.gmra.mxu0 %v732
  %v1516 = vpop.f32.mrf.mxu0
  %v1517 = vadd.f32 0.0, %v1516
  %1518 = vmatmul.f32.gmra.mxu0 %v735
  %v1519 = vpop.f32.mrf.mxu0
  %v1520 = vadd.f32 0.0, %v1519
  %1521 = vmatmul.f32.gmra.mxu0 %v738
  %v1522 = vpop.f32.mrf.mxu0
  %v1523 = vadd.f32 0.0, %v1522
  %1524 = vmatmul.f32.gmra.mxu0 %v741
  %v1525 = vpop.f32.mrf.mxu0
  %v1526 = vadd.f32 0.0, %v1525
  %1527 = vmatmul.f32.gmra.mxu0 %v744
  %v1528 = vpop.f32.mrf.mxu0
  %v1529 = vadd.f32 0.0, %v1528
  %1530 = vmatmul.f32.gmra.mxu0 %v747
  %v1531 = vpop.f32.mrf.mxu0
  %v1532 = vadd.f32 0.0, %v1531
  %1533 = vmatmul.f32.gmra.mxu0 %v750
  %v1534 = vpop.f32.mrf.mxu0
  %v1535 = vadd.f32 0.0, %v1534
  %1536 = vmatmul.f32.gmra.mxu0 %v753
  %v1537 = vpop.f32.mrf.mxu0
  %v1538 = vadd.f32 0.0, %v1537
  %1539 = vmatmul.f32.gmra.mxu0 %v756
  %v1540 = vpop.f32.mrf.mxu0
  %v1541 = vadd.f32 0.0, %v1540
  %1542 = vmatmul.f32.gmra.mxu0 %v759
  %v1543 = vpop.f32.mrf.mxu0
  %v1544 = vadd.f32 0.0, %v1543
  %1545 = vmatmul.f32.gmra.mxu0 %v762
  %v1546 = vpop.f32.mrf.mxu0
  %v1547 = vadd.f32 0.0, %v1546
  %1548 = vmatmul.f32.gmra.mxu0 %v765
  %v1549 = vpop.f32.mrf.mxu0
  %v1550 = vadd.f32 0.0, %v1549
  %1551 = vmatmul.f32.gmra.mxu0 %v768
  %v1552 = vpop.f32.mrf.mxu0
  %v1553 = vadd.f32 0.0, %v1552
  %1554 = vmatmul.f32.gmra.mxu0 %v771
  %v1555 = vpop.f32.mrf.mxu0
  %v1556 = vadd.f32 0.0, %v1555
  %1557 = vmatmul.f32.gmra.mxu0 %v774
  %v1558 = vpop.f32.mrf.mxu0
  %v1559 = vadd.f32 0.0, %v1558
  %1560 = vmatmul.f32.gmra.mxu0 %v777
  %v1561 = vpop.f32.mrf.mxu0
  %v1562 = vadd.f32 0.0, %v1561
  %1563 = vmatmul.f32.gmra.mxu0 %v780
  %v1564 = vpop.f32.mrf.mxu0
  %v1565 = vadd.f32 0.0, %v1564
  %1566 = vmatmul.f32.gmra.mxu0 %v783
  %v1567 = vpop.f32.mrf.mxu0
  %v1568 = vadd.f32 0.0, %v1567
  %1569 = vmatmul.f32.gmra.mxu0 %v786
  %v1570 = vpop.f32.mrf.mxu0
  %v1571 = vadd.f32 0.0, %v1570
  %1572 = vmatmul.f32.gmra.mxu0 %v789
  %v1573 = vpop.f32.mrf.mxu0
  %v1574 = vadd.f32 0.0, %v1573
  %1575 = vmatmul.f32.gmra.mxu0 %v792
  %v1576 = vpop.f32.mrf.mxu0
  %v1577 = vadd.f32 0.0, %v1576
  %1578 = vmatmul.f32.gmra.mxu0 %v795
  %v1579 = vpop.f32.mrf.mxu0
  %v1580 = vadd.f32 0.0, %v1579
  %1581 = vmatmul.f32.gmra.mxu0 %v798
  %v1582 = vpop.f32.mrf.mxu0
  %v1583 = vadd.f32 0.0, %v1582
  %1584 = vmatmul.f32.gmra.mxu0 %v801
  %v1585 = vpop.f32.mrf.mxu0
  %v1586 = vadd.f32 0.0, %v1585
  %1587 = vmatmul.f32.gmra.mxu0 %v804
  %v1588 = vpop.f32.mrf.mxu0
  %v1589 = vadd.f32 0.0, %v1588
  %1590 = vmatmul.f32.gmra.mxu0 %v807
  %v1591 = vpop.f32.mrf.mxu0
  %v1592 = vadd.f32 0.0, %v1591
  %1593 = vmatmul.f32.gmra.mxu0 %v810
  %v1594 = vpop.f32.mrf.mxu0
  %v1595 = vadd.f32 0.0, %v1594
  %1596 = vmatmul.f32.gmra.mxu0 %v813
  %v1597 = vpop.f32.mrf.mxu0
  %v1598 = vadd.f32 0.0, %v1597
  %1599 = vmatmul.f32.gmra.mxu0 %v816
  %v1600 = vpop.f32.mrf.mxu0
  %v1601 = vadd.f32 0.0, %v1600
  %1602 = vmatmul.f32.gmra.mxu0 %v819
  %v1603 = vpop.f32.mrf.mxu0
  %v1604 = vadd.f32 0.0, %v1603
  %1605 = vmatmul.f32.gmra.mxu0 %v822
  %v1606 = vpop.f32.mrf.mxu0
  %v1607 = vadd.f32 0.0, %v1606
  %1608 = vmatmul.f32.gmra.mxu0 %v825
  %v1609 = vpop.f32.mrf.mxu0
  %v1610 = vadd.f32 0.0, %v1609
  %1611 = vmatmul.f32.gmra.mxu0 %v828
  %v1612 = vpop.f32.mrf.mxu0
  %v1613 = vadd.f32 0.0, %v1612
  %1614 = vmatmul.f32.gmra.mxu0 %v831
  %v1615 = vpop.f32.mrf.mxu0
  %v1616 = vadd.f32 0.0, %v1615
  %1617 = vmatmul.f32.gmra.mxu0 %v834
  %v1618 = vpop.f32.mrf.mxu0
  %v1619 = vadd.f32 0.0, %v1618
  %1620 = vmatmul.f32.gmra.mxu0 %v837
  %v1621 = vpop.f32.mrf.mxu0
  %v1622 = vadd.f32 0.0, %v1621
  %1623 = vmatmul.f32.gmra.mxu0 %v840
  %v1624 = vpop.f32.mrf.mxu0
  %v1625 = vadd.f32 0.0, %v1624
  %1626 = vmatmul.f32.gmra.mxu0 %v843
  %v1627 = vpop.f32.mrf.mxu0
  %v1628 = vadd.f32 0.0, %v1627
  %1629 = vmatmul.f32.gmra.mxu0 %v846
  %v1630 = vpop.f32.mrf.mxu0
  %v1631 = vadd.f32 0.0, %v1630
  %1632 = vmatmul.f32.gmra.mxu0 %v849
  %v1633 = vpop.f32.mrf.mxu0
  %v1634 = vadd.f32 0.0, %v1633
  %1635 = vmatmul.f32.gmra.mxu0 %v852
  %v1636 = vpop.f32.mrf.mxu0
  %v1637 = vadd.f32 0.0, %v1636
  %1638 = vmatmul.f32.gmra.mxu0 %v855
  %v1639 = vpop.f32.mrf.mxu0
  %v1640 = vadd.f32 0.0, %v1639
  %1641 = vmatmul.f32.gmra.mxu0 %v858
  %v1642 = vpop.f32.mrf.mxu0
  %v1643 = vadd.f32 0.0, %v1642
  %1644 = vmatmul.f32.gmra.mxu0 %v861
  %v1645 = vpop.f32.mrf.mxu0
  %v1646 = vadd.f32 0.0, %v1645
  %1647 = vmatmul.f32.gmra.mxu0 %v864
  %v1648 = vpop.f32.mrf.mxu0
  %v1649 = vadd.f32 0.0, %v1648
  %1650 = vmatmul.f32.gmra.mxu0 %v867
  %v1651 = vpop.f32.mrf.mxu0
  %v1652 = vadd.f32 0.0, %v1651
  %1653 = vmatmul.f32.gmra.mxu0 %v870
  %v1654 = vpop.f32.mrf.mxu0
  %v1655 = vadd.f32 0.0, %v1654
  %1656 = vmatmul.f32.gmra.mxu0 %v873
  %v1657 = vpop.f32.mrf.mxu0
  %v1658 = vadd.f32 0.0, %v1657
  %1659 = vmatmul.f32.gmra.mxu0 %v876
  %v1660 = vpop.f32.mrf.mxu0
  %v1661 = vadd.f32 0.0, %v1660
  %1662 = vmatmul.f32.gmra.mxu0 %v879
  %v1663 = vpop.f32.mrf.mxu0
  %v1664 = vadd.f32 0.0, %v1663
  %1665 = vmatmul.f32.gmra.mxu0 %v882
  %v1666 = vpop.f32.mrf.mxu0
  %v1667 = vadd.f32 0.0, %v1666
  %1668 = vmatmul.f32.gmra.mxu0 %v885
  %v1669 = vpop.f32.mrf.mxu0
  %v1670 = vadd.f32 0.0, %v1669
  %1671 = vmatmul.f32.gmra.mxu0 %v888
  %v1672 = vpop.f32.mrf.mxu0
  %v1673 = vadd.f32 0.0, %v1672
  %1674 = vmatmul.f32.gmra.mxu0 %v891
  %v1675 = vpop.f32.mrf.mxu0
  %v1676 = vadd.f32 0.0, %v1675
  %1677 = vmatmul.f32.gmra.mxu0 %v894
  %v1678 = vpop.f32.mrf.mxu0
  %v1679 = vadd.f32 0.0, %v1678
  %1680 = vmatmul.f32.gmra.mxu0 %v897
  %v1681 = vpop.f32.mrf.mxu0
  %v1682 = vadd.f32 0.0, %v1681
  %1683 = vmatmul.f32.gmra.mxu0 %v900
  %v1684 = vpop.f32.mrf.mxu0
  %v1685 = vadd.f32 0.0, %v1684
  %1686 = vmatmul.f32.gmra.mxu0 %v903
  %v1687 = vpop.f32.mrf.mxu0
  %v1688 = vadd.f32 0.0, %v1687
  %1689 = vmatmul.f32.gmra.mxu0 %v906
  %v1690 = vpop.f32.mrf.mxu0
  %v1691 = vadd.f32 0.0, %v1690
  %1692 = vmatmul.f32.gmra.mxu0 %v909
  %v1693 = vpop.f32.mrf.mxu0
  %v1694 = vadd.f32 0.0, %v1693
  %1695 = vmatmul.f32.gmra.mxu0 %v912
  %v1696 = vpop.f32.mrf.mxu0
  %v1697 = vadd.f32 0.0, %v1696
  %1698 = vmatmul.f32.gmra.mxu0 %v915
  %v1699 = vpop.f32.mrf.mxu0
  %v1700 = vadd.f32 0.0, %v1699
  %1701 = vmatmul.f32.gmra.mxu0 %v918
  %v1702 = vpop.f32.mrf.mxu0
  %v1703 = vadd.f32 0.0, %v1702
  %1704 = vmatmul.f32.gmra.mxu0 %v921
  %v1705 = vpop.f32.mrf.mxu0
  %v1706 = vadd.f32 0.0, %v1705
  %1707 = vmatmul.f32.gmra.mxu0 %v924
  %v1708 = vpop.f32.mrf.mxu0
  %v1709 = vadd.f32 0.0, %v1708
  %1710 = vmatmul.f32.gmra.mxu0 %v927
  %v1711 = vpop.f32.mrf.mxu0
  %v1712 = vadd.f32 0.0, %v1711
  %1713 = vmatmul.f32.gmra.mxu0 %v930
  %v1714 = vpop.f32.mrf.mxu0
  %v1715 = vadd.f32 0.0, %v1714
  %1716 = vmatmul.f32.gmra.mxu0 %v933
  %v1717 = vpop.f32.mrf.mxu0
  %v1718 = vadd.f32 0.0, %v1717
  %1719 = vmatmul.f32.gmra.mxu0 %v936
  %v1720 = vpop.f32.mrf.mxu0
  %v1721 = vadd.f32 0.0, %v1720
  %1722 = vmatmul.f32.gmra.mxu0 %v939
  %v1723 = vpop.f32.mrf.mxu0
  %v1724 = vadd.f32 0.0, %v1723
  %1725 = vmatmul.f32.gmra.mxu0 %v942
  %v1726 = vpop.f32.mrf.mxu0
  %v1727 = vadd.f32 0.0, %v1726
  %1728 = vmatmul.f32.gmra.mxu0 %v945
  %v1729 = vpop.f32.mrf.mxu0
  %v1730 = vadd.f32 0.0, %v1729
  %1731 = vmatmul.f32.gmra.mxu0 %v948
  %v1732 = vpop.f32.mrf.mxu0
  %v1733 = vadd.f32 0.0, %v1732
  %1734 = vmatmul.f32.gmra.mxu0 %v951
  %v1735 = vpop.f32.mrf.mxu0
  %v1736 = vadd.f32 0.0, %v1735
  %1737 = vmatmul.f32.gmra.mxu0 %v954
  %v1738 = vpop.f32.mrf.mxu0
  %v1739 = vadd.f32 0.0, %v1738
  %1740 = vmatmul.f32.gmra.mxu0 %v957
  %v1741 = vpop.f32.mrf.mxu0
  %v1742 = vadd.f32 0.0, %v1741
  %1743 = vmatmul.f32.gmra.mxu0 %v960
  %v1744 = vpop.f32.mrf.mxu0
  %v1745 = vadd.f32 0.0, %v1744
  %1746 = vmatmul.f32.gmra.mxu0 %v963
  %v1747 = vpop.f32.mrf.mxu0
  %v1748 = vadd.f32 0.0, %v1747
  %1749 = vmatmul.f32.gmra.mxu0 %v966
  %v1750 = vpop.f32.mrf.mxu0
  %v1751 = vadd.f32 0.0, %v1750
  %1752 = vmatmul.f32.gmra.mxu0 %v969
  %v1753 = vpop.f32.mrf.mxu0
  %v1754 = vadd.f32 0.0, %v1753
  %1755 = vmatmul.f32.gmra.mxu0 %v972
  %v1756 = vpop.f32.mrf.mxu0
  %v1757 = vadd.f32 0.0, %v1756
  %1758 = vmatmul.f32.gmra.mxu0 %v975
  %v1759 = vpop.f32.mrf.mxu0
  %v1760 = vadd.f32 0.0, %v1759
  %1761 = vmatmul.f32.gmra.mxu0 %v978
  %v1762 = vpop.f32.mrf.mxu0
  %v1763 = vadd.f32 0.0, %v1762
  %1764 = vmatmul.f32.gmra.mxu0 %v981
  %v1765 = vpop.f32.mrf.mxu0
  %v1766 = vadd.f32 0.0, %v1765
  %1767 = vmatmul.f32.gmra.mxu0 %v984
  %v1768 = vpop.f32.mrf.mxu0
  %v1769 = vadd.f32 0.0, %v1768
  %1770 = vmatmul.f32.gmra.mxu0 %v987
  %v1771 = vpop.f32.mrf.mxu0
  %v1772 = vadd.f32 0.0, %v1771
  %1773 = vmatmul.f32.gmra.mxu0 %v990
  %v1774 = vpop.f32.mrf.mxu0
  %v1775 = vadd.f32 0.0, %v1774
  %1776 = vmatmul.f32.gmra.mxu0 %v993
  %v1777 = vpop.f32.mrf.mxu0
  %v1778 = vadd.f32 0.0, %v1777
  %1779 = vmatmul.f32.gmra.mxu0 %v996
  %v1780 = vpop.f32.mrf.mxu0
  %v1781 = vadd.f32 0.0, %v1780
  %1782 = vmatmul.f32.gmra.mxu0 %v999
  %v1783 = vpop.f32.mrf.mxu0
  %v1784 = vadd.f32 0.0, %v1783
  %1785 = vmatmul.f32.gmra.mxu0 %v1002
  %v1786 = vpop.f32.mrf.mxu0
  %v1787 = vadd.f32 0.0, %v1786
  %1788 = vmatmul.f32.gmra.mxu0 %v1005
  %v1789 = vpop.f32.mrf.mxu0
  %v1790 = vadd.f32 0.0, %v1789
  %1791 = vmatmul.f32.gmra.mxu0 %v1008
  %v1792 = vpop.f32.mrf.mxu0
  %v1793 = vadd.f32 0.0, %v1792
  %1794 = vmatmul.f32.gmra.mxu0 %v1011
  %v1795 = vpop.f32.mrf.mxu0
  %v1796 = vadd.f32 0.0, %v1795
  %1797 = vmatmul.f32.gmra.mxu0 %v1014
  %v1798 = vpop.f32.mrf.mxu0
  %v1799 = vadd.f32 0.0, %v1798
  %1800 = vmatmul.f32.gmra.mxu0 %v1017
  %v1801 = vpop.f32.mrf.mxu0
  %v1802 = vadd.f32 0.0, %v1801
  %1803 = vmatmul.f32.gmra.mxu0 %v1020
  %v1804 = vpop.f32.mrf.mxu0
  %v1805 = vadd.f32 0.0, %v1804
  %1806 = vmatmul.f32.gmra.mxu0 %v1023
  %v1807 = vpop.f32.mrf.mxu0
  %v1808 = vadd.f32 0.0, %v1807
  %1809 = vmatmul.f32.gmra.mxu0 %v1026
  %v1810 = vpop.f32.mrf.mxu0
  %v1811 = vadd.f32 0.0, %v1810
  %1812 = vmatmul.f32.gmra.mxu0 %v1029
  %v1813 = vpop.f32.mrf.mxu0
  %v1814 = vadd.f32 0.0, %v1813
  %1815 = vmatmul.f32.gmra.mxu0 %v1032
  %v1816 = vpop.f32.mrf.mxu0
  %v1817 = vadd.f32 0.0, %v1816
  %1818 = vmatmul.f32.gmra.mxu0 %v1035
  %v1819 = vpop.f32.mrf.mxu0
  %v1820 = vadd.f32 0.0, %v1819
  %1821 = vmatmul.f32.gmra.mxu0 %v1038
  %v1822 = vpop.f32.mrf.mxu0
  %v1823 = vadd.f32 0.0, %v1822
  %1824 = vmatmul.f32.gmra.mxu0 %v1041
  %v1825 = vpop.f32.mrf.mxu0
  %v1826 = vadd.f32 0.0, %v1825
  %1827 = vmatmul.f32.gmra.mxu0 %v1044
  %v1828 = vpop.f32.mrf.mxu0
  %v1829 = vadd.f32 0.0, %v1828
  %1830 = vdwg.mxu0
  %vm1831 = vcmask 523264
  %v1832 = vsel %vm1831, %v1064, 0.0
  %v1833 = vsel %vm1831, %v1067, 0.0
  %v1834 = vadd.f32 %v1832, %v1833
  %v1835 = vsel %vm1831, %v1070, 0.0
  %v1836 = vadd.f32 %v1834, %v1835
  %v1837 = vsel %vm1831, %v1073, 0.0
  %v1838 = vadd.f32 %v1836, %v1837
  %v1839 = vsel %vm1831, %v1076, 0.0
  %v1840 = vadd.f32 %v1838, %v1839
  %v1841 = vsel %vm1831, %v1079, 0.0
  %v1842 = vadd.f32 %v1840, %v1841
  %v1843 = vsel %vm1831, %v1082, 0.0
  %v1844 = vadd.f32 %v1842, %v1843
  %v1845 = vsel %vm1831, %v1085, 0.0
  %v1846 = vadd.f32 %v1844, %v1845
  %v1847 = vsel %vm1831, %v1088, 0.0
  %v1848 = vadd.f32 %v1846, %v1847
  %v1849 = vsel %vm1831, %v1091, 0.0
  %v1850 = vadd.f32 %v1848, %v1849
  %v1851 = vsel %vm1831, %v1094, 0.0
  %v1852 = vadd.f32 %v1850, %v1851
  %v1853 = vsel %vm1831, %v1097, 0.0
  %v1854 = vadd.f32 %v1852, %v1853
  %v1855 = vsel %vm1831, %v1100, 0.0
  %v1856 = vadd.f32 %v1854, %v1855
  %v1857 = vsel %vm1831, %v1103, 0.0
  %v1858 = vadd.f32 %v1856, %v1857
  %v1859 = vsel %vm1831, %v1106, 0.0
  %v1860 = vadd.f32 %v1858, %v1859
  %v1861 = vsel %vm1831, %v1109, 0.0
  %v1862 = vadd.f32 %v1860, %v1861
  %v1863 = vsel %vm1831, %v1112, 0.0
  %v1864 = vadd.f32 %v1862, %v1863
  %v1865 = vsel %vm1831, %v1115, 0.0
  %v1866 = vadd.f32 %v1864, %v1865
  %v1867 = vsel %vm1831, %v1118, 0.0
  %v1868 = vadd.f32 %v1866, %v1867
  %v1869 = vsel %vm1831, %v1121, 0.0
  %v1870 = vadd.f32 %v1868, %v1869
  %v1871 = vsel %vm1831, %v1124, 0.0
  %v1872 = vadd.f32 %v1870, %v1871
  %v1873 = vsel %vm1831, %v1127, 0.0
  %v1874 = vadd.f32 %v1872, %v1873
  %v1875 = vsel %vm1831, %v1130, 0.0
  %v1876 = vadd.f32 %v1874, %v1875
  %v1877 = vsel %vm1831, %v1133, 0.0
  %v1878 = vadd.f32 %v1876, %v1877
  %v1879 = vsel %vm1831, %v1136, 0.0
  %v1880 = vadd.f32 %v1878, %v1879
  %v1881 = vsel %vm1831, %v1139, 0.0
  %v1882 = vadd.f32 %v1880, %v1881
  %v1883 = vsel %vm1831, %v1142, 0.0
  %v1884 = vadd.f32 %v1882, %v1883
  %v1885 = vsel %vm1831, %v1145, 0.0
  %v1886 = vadd.f32 %v1884, %v1885
  %v1887 = vsel %vm1831, %v1148, 0.0
  %v1888 = vadd.f32 %v1886, %v1887
  %v1889 = vsel %vm1831, %v1151, 0.0
  %v1890 = vadd.f32 %v1888, %v1889
  %v1891 = vsel %vm1831, %v1154, 0.0
  %v1892 = vadd.f32 %v1890, %v1891
  %v1893 = vsel %vm1831, %v1157, 0.0
  %v1894 = vadd.f32 %v1892, %v1893
  %v1895 = vsel %vm1831, %v1160, 0.0
  %v1896 = vadd.f32 %v1894, %v1895
  %v1897 = vsel %vm1831, %v1163, 0.0
  %v1898 = vadd.f32 %v1896, %v1897
  %v1899 = vsel %vm1831, %v1166, 0.0
  %v1900 = vadd.f32 %v1898, %v1899
  %v1901 = vsel %vm1831, %v1169, 0.0
  %v1902 = vadd.f32 %v1900, %v1901
  %v1903 = vsel %vm1831, %v1172, 0.0
  %v1904 = vadd.f32 %v1902, %v1903
  %v1905 = vsel %vm1831, %v1175, 0.0
  %v1906 = vadd.f32 %v1904, %v1905
  %v1907 = vsel %vm1831, %v1178, 0.0
  %v1908 = vadd.f32 %v1906, %v1907
  %v1909 = vsel %vm1831, %v1181, 0.0
  %v1910 = vadd.f32 %v1908, %v1909
  %v1911 = vsel %vm1831, %v1184, 0.0
  %v1912 = vadd.f32 %v1910, %v1911
  %v1913 = vsel %vm1831, %v1187, 0.0
  %v1914 = vadd.f32 %v1912, %v1913
  %v1915 = vsel %vm1831, %v1190, 0.0
  %v1916 = vadd.f32 %v1914, %v1915
  %v1917 = vsel %vm1831, %v1193, 0.0
  %v1918 = vadd.f32 %v1916, %v1917
  %v1919 = vsel %vm1831, %v1196, 0.0
  %v1920 = vadd.f32 %v1918, %v1919
  %v1921 = vsel %vm1831, %v1199, 0.0
  %v1922 = vadd.f32 %v1920, %v1921
  %v1923 = vsel %vm1831, %v1202, 0.0
  %v1924 = vadd.f32 %v1922, %v1923
  %v1925 = vsel %vm1831, %v1205, 0.0
  %v1926 = vadd.f32 %v1924, %v1925
  %v1927 = vsel %vm1831, %v1208, 0.0
  %v1928 = vadd.f32 %v1926, %v1927
  %v1929 = vsel %vm1831, %v1211, 0.0
  %v1930 = vadd.f32 %v1928, %v1929
  %v1931 = vsel %vm1831, %v1214, 0.0
  %v1932 = vadd.f32 %v1930, %v1931
  %v1933 = vsel %vm1831, %v1217, 0.0
  %v1934 = vadd.f32 %v1932, %v1933
  %v1935 = vsel %vm1831, %v1220, 0.0
  %v1936 = vadd.f32 %v1934, %v1935
  %v1937 = vsel %vm1831, %v1223, 0.0
  %v1938 = vadd.f32 %v1936, %v1937
  %v1939 = vsel %vm1831, %v1226, 0.0
  %v1940 = vadd.f32 %v1938, %v1939
  %v1941 = vsel %vm1831, %v1229, 0.0
  %v1942 = vadd.f32 %v1940, %v1941
  %v1943 = vsel %vm1831, %v1232, 0.0
  %v1944 = vadd.f32 %v1942, %v1943
  %v1945 = vsel %vm1831, %v1235, 0.0
  %v1946 = vadd.f32 %v1944, %v1945
  %v1947 = vsel %vm1831, %v1238, 0.0
  %v1948 = vadd.f32 %v1946, %v1947
  %v1949 = vsel %vm1831, %v1241, 0.0
  %v1950 = vadd.f32 %v1948, %v1949
  %v1951 = vsel %vm1831, %v1244, 0.0
  %v1952 = vadd.f32 %v1950, %v1951
  %v1953 = vsel %vm1831, %v1247, 0.0
  %v1954 = vadd.f32 %v1952, %v1953
  %v1955 = vsel %vm1831, %v1250, 0.0
  %v1956 = vadd.f32 %v1954, %v1955
  %v1957 = vsel %vm1831, %v1253, 0.0
  %v1958 = vadd.f32 %v1956, %v1957
  %v1959 = vsel %vm1831, %v1256, 0.0
  %v1960 = vadd.f32 %v1958, %v1959
  %v1961 = vsel %vm1831, %v1259, 0.0
  %v1962 = vadd.f32 %v1960, %v1961
  %v1963 = vsel %vm1831, %v1262, 0.0
  %v1964 = vadd.f32 %v1962, %v1963
  %v1965 = vsel %vm1831, %v1265, 0.0
  %v1966 = vadd.f32 %v1964, %v1965
  %v1967 = vsel %vm1831, %v1268, 0.0
  %v1968 = vadd.f32 %v1966, %v1967
  %v1969 = vsel %vm1831, %v1271, 0.0
  %v1970 = vadd.f32 %v1968, %v1969
  %v1971 = vsel %vm1831, %v1274, 0.0
  %v1972 = vadd.f32 %v1970, %v1971
  %v1973 = vsel %vm1831, %v1277, 0.0
  %v1974 = vadd.f32 %v1972, %v1973
  %v1975 = vsel %vm1831, %v1280, 0.0
  %v1976 = vadd.f32 %v1974, %v1975
  %v1977 = vsel %vm1831, %v1283, 0.0
  %v1978 = vadd.f32 %v1976, %v1977
  %v1979 = vsel %vm1831, %v1286, 0.0
  %v1980 = vadd.f32 %v1978, %v1979
  %v1981 = vsel %vm1831, %v1289, 0.0
  %v1982 = vadd.f32 %v1980, %v1981
  %v1983 = vsel %vm1831, %v1292, 0.0
  %v1984 = vadd.f32 %v1982, %v1983
  %v1985 = vsel %vm1831, %v1295, 0.0
  %v1986 = vadd.f32 %v1984, %v1985
  %v1987 = vsel %vm1831, %v1298, 0.0
  %v1988 = vadd.f32 %v1986, %v1987
  %v1989 = vsel %vm1831, %v1301, 0.0
  %v1990 = vadd.f32 %v1988, %v1989
  %v1991 = vsel %vm1831, %v1304, 0.0
  %v1992 = vadd.f32 %v1990, %v1991
  %v1993 = vsel %vm1831, %v1307, 0.0
  %v1994 = vadd.f32 %v1992, %v1993
  %v1995 = vsel %vm1831, %v1310, 0.0
  %v1996 = vadd.f32 %v1994, %v1995
  %v1997 = vsel %vm1831, %v1313, 0.0
  %v1998 = vadd.f32 %v1996, %v1997
  %v1999 = vsel %vm1831, %v1316, 0.0
  %v2000 = vadd.f32 %v1998, %v1999
  %v2001 = vsel %vm1831, %v1319, 0.0
  %v2002 = vadd.f32 %v2000, %v2001
  %v2003 = vsel %vm1831, %v1322, 0.0
  %v2004 = vadd.f32 %v2002, %v2003
  %v2005 = vsel %vm1831, %v1325, 0.0
  %v2006 = vadd.f32 %v2004, %v2005
  %v2007 = vsel %vm1831, %v1328, 0.0
  %v2008 = vadd.f32 %v2006, %v2007
  %v2009 = vsel %vm1831, %v1331, 0.0
  %v2010 = vadd.f32 %v2008, %v2009
  %v2011 = vsel %vm1831, %v1334, 0.0
  %v2012 = vadd.f32 %v2010, %v2011
  %v2013 = vsel %vm1831, %v1337, 0.0
  %v2014 = vadd.f32 %v2012, %v2013
  %v2015 = vsel %vm1831, %v1340, 0.0
  %v2016 = vadd.f32 %v2014, %v2015
  %v2017 = vsel %vm1831, %v1343, 0.0
  %v2018 = vadd.f32 %v2016, %v2017
  %v2019 = vsel %vm1831, %v1346, 0.0
  %v2020 = vadd.f32 %v2018, %v2019
  %v2021 = vsel %vm1831, %v1349, 0.0
  %v2022 = vadd.f32 %v2020, %v2021
  %v2023 = vsel %vm1831, %v1352, 0.0
  %v2024 = vadd.f32 %v2022, %v2023
  %v2025 = vsel %vm1831, %v1355, 0.0
  %v2026 = vadd.f32 %v2024, %v2025
  %v2027 = vsel %vm1831, %v1358, 0.0
  %v2028 = vadd.f32 %v2026, %v2027
  %v2029 = vsel %vm1831, %v1361, 0.0
  %v2030 = vadd.f32 %v2028, %v2029
  %v2031 = vsel %vm1831, %v1364, 0.0
  %v2032 = vadd.f32 %v2030, %v2031
  %v2033 = vsel %vm1831, %v1367, 0.0
  %v2034 = vadd.f32 %v2032, %v2033
  %v2035 = vsel %vm1831, %v1370, 0.0
  %v2036 = vadd.f32 %v2034, %v2035
  %v2037 = vsel %vm1831, %v1373, 0.0
  %v2038 = vadd.f32 %v2036, %v2037
  %v2039 = vsel %vm1831, %v1376, 0.0
  %v2040 = vadd.f32 %v2038, %v2039
  %v2041 = vsel %vm1831, %v1379, 0.0
  %v2042 = vadd.f32 %v2040, %v2041
  %v2043 = vsel %vm1831, %v1382, 0.0
  %v2044 = vadd.f32 %v2042, %v2043
  %v2045 = vsel %vm1831, %v1385, 0.0
  %v2046 = vadd.f32 %v2044, %v2045
  %v2047 = vsel %vm1831, %v1388, 0.0
  %v2048 = vadd.f32 %v2046, %v2047
  %v2049 = vsel %vm1831, %v1391, 0.0
  %v2050 = vadd.f32 %v2048, %v2049
  %v2051 = vsel %vm1831, %v1394, 0.0
  %v2052 = vadd.f32 %v2050, %v2051
  %v2053 = vsel %vm1831, %v1397, 0.0
  %v2054 = vadd.f32 %v2052, %v2053
  %v2055 = vsel %vm1831, %v1400, 0.0
  %v2056 = vadd.f32 %v2054, %v2055
  %v2057 = vsel %vm1831, %v1403, 0.0
  %v2058 = vadd.f32 %v2056, %v2057
  %v2059 = vsel %vm1831, %v1406, 0.0
  %v2060 = vadd.f32 %v2058, %v2059
  %v2061 = vsel %vm1831, %v1409, 0.0
  %v2062 = vadd.f32 %v2060, %v2061
  %v2063 = vsel %vm1831, %v1412, 0.0
  %v2064 = vadd.f32 %v2062, %v2063
  %v2065 = vsel %vm1831, %v1415, 0.0
  %v2066 = vadd.f32 %v2064, %v2065
  %v2067 = vsel %vm1831, %v1418, 0.0
  %v2068 = vadd.f32 %v2066, %v2067
  %v2069 = vsel %vm1831, %v1421, 0.0
  %v2070 = vadd.f32 %v2068, %v2069
  %v2071 = vsel %vm1831, %v1424, 0.0
  %v2072 = vadd.f32 %v2070, %v2071
  %v2073 = vsel %vm1831, %v1427, 0.0
  %v2074 = vadd.f32 %v2072, %v2073
  %v2075 = vsel %vm1831, %v1430, 0.0
  %v2076 = vadd.f32 %v2074, %v2075
  %v2077 = vsel %vm1831, %v1433, 0.0
  %v2078 = vadd.f32 %v2076, %v2077
  %v2079 = vsel %vm1831, %v1436, 0.0
  %v2080 = vadd.f32 %v2078, %v2079
  %v2081 = vsel %vm1831, %v1439, 0.0
  %v2082 = vadd.f32 %v2080, %v2081
  %v2083 = vsel %vm1831, %v1442, 0.0
  %v2084 = vadd.f32 %v2082, %v2083
  %v2085 = vsel %vm1831, %v1445, 0.0
  %v2086 = vadd.f32 %v2084, %v2085
  %v2087 = vsel %vm1831, %v1448, 0.0
  %v2088 = vadd.f32 %v2086, %v2087
  %v2089 = vsel %vm1831, %v1451, 0.0
  %v2090 = vadd.f32 %v2088, %v2089
  %v2091 = vsel %vm1831, %v1454, 0.0
  %v2092 = vadd.f32 %v2090, %v2091
  %v2093 = vsel %vm1831, %v1457, 0.0
  %v2094 = vadd.f32 %v2092, %v2093
  %v2095 = vsel %vm1831, %v1460, 0.0
  %v2096 = vadd.f32 %v2094, %v2095
  %v2097 = vsel %vm1831, %v1463, 0.0
  %v2098 = vadd.f32 %v2096, %v2097
  %v2099 = vsel %vm1831, %v1466, 0.0
  %v2100 = vadd.f32 %v2098, %v2099
  %v2101 = vsel %vm1831, %v1469, 0.0
  %v2102 = vadd.f32 %v2100, %v2101
  %v2103 = vsel %vm1831, %v1472, 0.0
  %v2104 = vadd.f32 %v2102, %v2103
  %v2105 = vsel %vm1831, %v1475, 0.0
  %v2106 = vadd.f32 %v2104, %v2105
  %v2107 = vsel %vm1831, %v1478, 0.0
  %v2108 = vadd.f32 %v2106, %v2107
  %v2109 = vsel %vm1831, %v1481, 0.0
  %v2110 = vadd.f32 %v2108, %v2109
  %v2111 = vsel %vm1831, %v1484, 0.0
  %v2112 = vadd.f32 %v2110, %v2111
  %v2113 = vsel %vm1831, %v1487, 0.0
  %v2114 = vadd.f32 %v2112, %v2113
  %v2115 = vsel %vm1831, %v1490, 0.0
  %v2116 = vadd.f32 %v2114, %v2115
  %v2117 = vsel %vm1831, %v1493, 0.0
  %v2118 = vadd.f32 %v2116, %v2117
  %v2119 = vsel %vm1831, %v1496, 0.0
  %v2120 = vadd.f32 %v2118, %v2119
  %v2121 = vsel %vm1831, %v1499, 0.0
  %v2122 = vadd.f32 %v2120, %v2121
  %v2123 = vsel %vm1831, %v1502, 0.0
  %v2124 = vadd.f32 %v2122, %v2123
  %v2125 = vsel %vm1831, %v1505, 0.0
  %v2126 = vadd.f32 %v2124, %v2125
  %v2127 = vsel %vm1831, %v1508, 0.0
  %v2128 = vadd.f32 %v2126, %v2127
  %v2129 = vsel %vm1831, %v1511, 0.0
  %v2130 = vadd.f32 %v2128, %v2129
  %v2131 = vsel %vm1831, %v1514, 0.0
  %v2132 = vadd.f32 %v2130, %v2131
  %v2133 = vsel %vm1831, %v1517, 0.0
  %v2134 = vadd.f32 %v2132, %v2133
  %v2135 = vsel %vm1831, %v1520, 0.0
  %v2136 = vadd.f32 %v2134, %v2135
  %v2137 = vsel %vm1831, %v1523, 0.0
  %v2138 = vadd.f32 %v2136, %v2137
  %v2139 = vsel %vm1831, %v1526, 0.0
  %v2140 = vadd.f32 %v2138, %v2139
  %v2141 = vsel %vm1831, %v1529, 0.0
  %v2142 = vadd.f32 %v2140, %v2141
  %v2143 = vsel %vm1831, %v1532, 0.0
  %v2144 = vadd.f32 %v2142, %v2143
  %v2145 = vsel %vm1831, %v1535, 0.0
  %v2146 = vadd.f32 %v2144, %v2145
  %v2147 = vsel %vm1831, %v1538, 0.0
  %v2148 = vadd.f32 %v2146, %v2147
  %v2149 = vsel %vm1831, %v1541, 0.0
  %v2150 = vadd.f32 %v2148, %v2149
  %v2151 = vsel %vm1831, %v1544, 0.0
  %v2152 = vadd.f32 %v2150, %v2151
  %v2153 = vsel %vm1831, %v1547, 0.0
  %v2154 = vadd.f32 %v2152, %v2153
  %v2155 = vsel %vm1831, %v1550, 0.0
  %v2156 = vadd.f32 %v2154, %v2155
  %v2157 = vsel %vm1831, %v1553, 0.0
  %v2158 = vadd.f32 %v2156, %v2157
  %v2159 = vsel %vm1831, %v1556, 0.0
  %v2160 = vadd.f32 %v2158, %v2159
  %v2161 = vsel %vm1831, %v1559, 0.0
  %v2162 = vadd.f32 %v2160, %v2161
  %v2163 = vsel %vm1831, %v1562, 0.0
  %v2164 = vadd.f32 %v2162, %v2163
  %v2165 = vsel %vm1831, %v1565, 0.0
  %v2166 = vadd.f32 %v2164, %v2165
  %v2167 = vsel %vm1831, %v1568, 0.0
  %v2168 = vadd.f32 %v2166, %v2167
  %v2169 = vsel %vm1831, %v1571, 0.0
  %v2170 = vadd.f32 %v2168, %v2169
  %v2171 = vsel %vm1831, %v1574, 0.0
  %v2172 = vadd.f32 %v2170, %v2171
  %v2173 = vsel %vm1831, %v1577, 0.0
  %v2174 = vadd.f32 %v2172, %v2173
  %v2175 = vsel %vm1831, %v1580, 0.0
  %v2176 = vadd.f32 %v2174, %v2175
  %v2177 = vsel %vm1831, %v1583, 0.0
  %v2178 = vadd.f32 %v2176, %v2177
  %v2179 = vsel %vm1831, %v1586, 0.0
  %v2180 = vadd.f32 %v2178, %v2179
  %v2181 = vsel %vm1831, %v1589, 0.0
  %v2182 = vadd.f32 %v2180, %v2181
  %v2183 = vsel %vm1831, %v1592, 0.0
  %v2184 = vadd.f32 %v2182, %v2183
  %v2185 = vsel %vm1831, %v1595, 0.0
  %v2186 = vadd.f32 %v2184, %v2185
  %v2187 = vsel %vm1831, %v1598, 0.0
  %v2188 = vadd.f32 %v2186, %v2187
  %v2189 = vsel %vm1831, %v1601, 0.0
  %v2190 = vadd.f32 %v2188, %v2189
  %v2191 = vsel %vm1831, %v1604, 0.0
  %v2192 = vadd.f32 %v2190, %v2191
  %v2193 = vsel %vm1831, %v1607, 0.0
  %v2194 = vadd.f32 %v2192, %v2193
  %v2195 = vsel %vm1831, %v1610, 0.0
  %v2196 = vadd.f32 %v2194, %v2195
  %v2197 = vsel %vm1831, %v1613, 0.0
  %v2198 = vadd.f32 %v2196, %v2197
  %v2199 = vsel %vm1831, %v1616, 0.0
  %v2200 = vadd.f32 %v2198, %v2199
  %v2201 = vsel %vm1831, %v1619, 0.0
  %v2202 = vadd.f32 %v2200, %v2201
  %v2203 = vsel %vm1831, %v1622, 0.0
  %v2204 = vadd.f32 %v2202, %v2203
  %v2205 = vsel %vm1831, %v1625, 0.0
  %v2206 = vadd.f32 %v2204, %v2205
  %v2207 = vsel %vm1831, %v1628, 0.0
  %v2208 = vadd.f32 %v2206, %v2207
  %v2209 = vsel %vm1831, %v1631, 0.0
  %v2210 = vadd.f32 %v2208, %v2209
  %v2211 = vsel %vm1831, %v1634, 0.0
  %v2212 = vadd.f32 %v2210, %v2211
  %v2213 = vsel %vm1831, %v1637, 0.0
  %v2214 = vadd.f32 %v2212, %v2213
  %v2215 = vsel %vm1831, %v1640, 0.0
  %v2216 = vadd.f32 %v2214, %v2215
  %v2217 = vsel %vm1831, %v1643, 0.0
  %v2218 = vadd.f32 %v2216, %v2217
  %v2219 = vsel %vm1831, %v1646, 0.0
  %v2220 = vadd.f32 %v2218, %v2219
  %v2221 = vsel %vm1831, %v1649, 0.0
  %v2222 = vadd.f32 %v2220, %v2221
  %v2223 = vsel %vm1831, %v1652, 0.0
  %v2224 = vadd.f32 %v2222, %v2223
  %v2225 = vsel %vm1831, %v1655, 0.0
  %v2226 = vadd.f32 %v2224, %v2225
  %v2227 = vsel %vm1831, %v1658, 0.0
  %v2228 = vadd.f32 %v2226, %v2227
  %v2229 = vsel %vm1831, %v1661, 0.0
  %v2230 = vadd.f32 %v2228, %v2229
  %v2231 = vsel %vm1831, %v1664, 0.0
  %v2232 = vadd.f32 %v2230, %v2231
  %v2233 = vsel %vm1831, %v1667, 0.0
  %v2234 = vadd.f32 %v2232, %v2233
  %v2235 = vsel %vm1831, %v1670, 0.0
  %v2236 = vadd.f32 %v2234, %v2235
  %v2237 = vsel %vm1831, %v1673, 0.0
  %v2238 = vadd.f32 %v2236, %v2237
  %v2239 = vsel %vm1831, %v1676, 0.0
  %v2240 = vadd.f32 %v2238, %v2239
  %v2241 = vsel %vm1831, %v1679, 0.0
  %v2242 = vadd.f32 %v2240, %v2241
  %v2243 = vsel %vm1831, %v1682, 0.0
  %v2244 = vadd.f32 %v2242, %v2243
  %v2245 = vsel %vm1831, %v1685, 0.0
  %v2246 = vadd.f32 %v2244, %v2245
  %v2247 = vsel %vm1831, %v1688, 0.0
  %v2248 = vadd.f32 %v2246, %v2247
  %v2249 = vsel %vm1831, %v1691, 0.0
  %v2250 = vadd.f32 %v2248, %v2249
  %v2251 = vsel %vm1831, %v1694, 0.0
  %v2252 = vadd.f32 %v2250, %v2251
  %v2253 = vsel %vm1831, %v1697, 0.0
  %v2254 = vadd.f32 %v2252, %v2253
  %v2255 = vsel %vm1831, %v1700, 0.0
  %v2256 = vadd.f32 %v2254, %v2255
  %v2257 = vsel %vm1831, %v1703, 0.0
  %v2258 = vadd.f32 %v2256, %v2257
  %v2259 = vsel %vm1831, %v1706, 0.0
  %v2260 = vadd.f32 %v2258, %v2259
  %v2261 = vsel %vm1831, %v1709, 0.0
  %v2262 = vadd.f32 %v2260, %v2261
  %v2263 = vsel %vm1831, %v1712, 0.0
  %v2264 = vadd.f32 %v2262, %v2263
  %v2265 = vsel %vm1831, %v1715, 0.0
  %v2266 = vadd.f32 %v2264, %v2265
  %v2267 = vsel %vm1831, %v1718, 0.0
  %v2268 = vadd.f32 %v2266, %v2267
  %v2269 = vsel %vm1831, %v1721, 0.0
  %v2270 = vadd.f32 %v2268, %v2269
  %v2271 = vsel %vm1831, %v1724, 0.0
  %v2272 = vadd.f32 %v2270, %v2271
  %v2273 = vsel %vm1831, %v1727, 0.0
  %v2274 = vadd.f32 %v2272, %v2273
  %v2275 = vsel %vm1831, %v1730, 0.0
  %v2276 = vadd.f32 %v2274, %v2275
  %v2277 = vsel %vm1831, %v1733, 0.0
  %v2278 = vadd.f32 %v2276, %v2277
  %v2279 = vsel %vm1831, %v1736, 0.0
  %v2280 = vadd.f32 %v2278, %v2279
  %v2281 = vsel %vm1831, %v1739, 0.0
  %v2282 = vadd.f32 %v2280, %v2281
  %v2283 = vsel %vm1831, %v1742, 0.0
  %v2284 = vadd.f32 %v2282, %v2283
  %v2285 = vsel %vm1831, %v1745, 0.0
  %v2286 = vadd.f32 %v2284, %v2285
  %v2287 = vsel %vm1831, %v1748, 0.0
  %v2288 = vadd.f32 %v2286, %v2287
  %v2289 = vsel %vm1831, %v1751, 0.0
  %v2290 = vadd.f32 %v2288, %v2289
  %v2291 = vsel %vm1831, %v1754, 0.0
  %v2292 = vadd.f32 %v2290, %v2291
  %v2293 = vsel %vm1831, %v1757, 0.0
  %v2294 = vadd.f32 %v2292, %v2293
  %v2295 = vsel %vm1831, %v1760, 0.0
  %v2296 = vadd.f32 %v2294, %v2295
  %v2297 = vsel %vm1831, %v1763, 0.0
  %v2298 = vadd.f32 %v2296, %v2297
  %v2299 = vsel %vm1831, %v1766, 0.0
  %v2300 = vadd.f32 %v2298, %v2299
  %v2301 = vsel %vm1831, %v1769, 0.0
  %v2302 = vadd.f32 %v2300, %v2301
  %v2303 = vsel %vm1831, %v1772, 0.0
  %v2304 = vadd.f32 %v2302, %v2303
  %v2305 = vsel %vm1831, %v1775, 0.0
  %v2306 = vadd.f32 %v2304, %v2305
  %v2307 = vsel %vm1831, %v1778, 0.0
  %v2308 = vadd.f32 %v2306, %v2307
  %v2309 = vsel %vm1831, %v1781, 0.0
  %v2310 = vadd.f32 %v2308, %v2309
  %v2311 = vsel %vm1831, %v1784, 0.0
  %v2312 = vadd.f32 %v2310, %v2311
  %v2313 = vsel %vm1831, %v1787, 0.0
  %v2314 = vadd.f32 %v2312, %v2313
  %v2315 = vsel %vm1831, %v1790, 0.0
  %v2316 = vadd.f32 %v2314, %v2315
  %v2317 = vsel %vm1831, %v1793, 0.0
  %v2318 = vadd.f32 %v2316, %v2317
  %v2319 = vsel %vm1831, %v1796, 0.0
  %v2320 = vadd.f32 %v2318, %v2319
  %v2321 = vsel %vm1831, %v1799, 0.0
  %v2322 = vadd.f32 %v2320, %v2321
  %v2323 = vsel %vm1831, %v1802, 0.0
  %v2324 = vadd.f32 %v2322, %v2323
  %v2325 = vsel %vm1831, %v1805, 0.0
  %v2326 = vadd.f32 %v2324, %v2325
  %v2327 = vsel %vm1831, %v1808, 0.0
  %v2328 = vadd.f32 %v2326, %v2327
  %v2329 = vsel %vm1831, %v1811, 0.0
  %v2330 = vadd.f32 %v2328, %v2329
  %v2331 = vsel %vm1831, %v1814, 0.0
  %v2332 = vadd.f32 %v2330, %v2331
  %v2333 = vsel %vm1831, %v1817, 0.0
  %v2334 = vadd.f32 %v2332, %v2333
  %v2335 = vsel %vm1831, %v1820, 0.0
  %v2336 = vadd.f32 %v2334, %v2335
  %v2337 = vsel %vm1831, %v1823, 0.0
  %v2338 = vadd.f32 %v2336, %v2337
  %v2339 = vsel %vm1831, %v1826, 0.0
  %v2340 = vadd.f32 %v2338, %v2339
  %v2341 = vsel %vm1831, %v1829, 0.0
  %v2342 = vadd.f32 %v2340, %v2341
  %v2343 = vrot.slane %v2342, 4
  %v2344 = vadd.f32 %v2342, %v2343
  %v2345 = vrot.slane %v2344, 2
  %v2346 = vadd.f32 %v2344, %v2345
  %v2347 = vrot.slane %v2346, 1
  %v2348 = vadd.f32 %v2346, %v2347
  %v2349 = vrcp.pop 2048.0
  %v2350 = vmul.f32 2048.0, %v2349
  %v2351 = vsub.f32 1.0, %v2350
  %v2352 = vmul.f32 %v2349, %v2351
  %v2353 = vadd.f32 %v2349, %v2352
  %vm2354 = vweird.f32 %v2349
  %v2355 = vsel %vm2354, %v2349, %v2353
  %v2356 = vmul.f32 %v2348, %v2355
  %v2357 = vsub.f32 %v1064, %v2356
  %v2358 = vsub.f32 %v1067, %v2356
  %v2359 = vsub.f32 %v1070, %v2356
  %v2360 = vsub.f32 %v1073, %v2356
  %v2361 = vsub.f32 %v1076, %v2356
  %v2362 = vsub.f32 %v1079, %v2356
  %v2363 = vsub.f32 %v1082, %v2356
  %v2364 = vsub.f32 %v1085, %v2356
  %v2365 = vsub.f32 %v1088, %v2356
  %v2366 = vsub.f32 %v1091, %v2356
  %v2367 = vsub.f32 %v1094, %v2356
  %v2368 = vsub.f32 %v1097, %v2356
  %v2369 = vsub.f32 %v1100, %v2356
  %v2370 = vsub.f32 %v1103, %v2356
  %v2371 = vsub.f32 %v1106, %v2356
  %v2372 = vsub.f32 %v1109, %v2356
  %v2373 = vsub.f32 %v1112, %v2356
  %v2374 = vsub.f32 %v1115, %v2356
  %v2375 = vsub.f32 %v1118, %v2356
  %v2376 = vsub.f32 %v1121, %v2356
  %v2377 = vsub.f32 %v1124, %v2356
  %v2378 = vsub.f32 %v1127, %v2356
  %v2379 = vsub.f32 %v1130, %v2356
  %v2380 = vsub.f32 %v1133, %v2356
  %v2381 = vsub.f32 %v1136, %v2356
  %v2382 = vsub.f32 %v1139, %v2356
  %v2383 = vsub.f32 %v1142, %v2356
  %v2384 = vsub.f32 %v1145, %v2356
  %v2385 = vsub.f32 %v1148, %v2356
  %v2386 = vsub.f32 %v1151, %v2356
  %v2387 = vsub.f32 %v1154, %v2356
  %v2388 = vsub.f32 %v1157, %v2356
  %v2389 = vsub.f32 %v1160, %v2356
  %v2390 = vsub.f32 %v1163, %v2356
  %v2391 = vsub.f32 %v1166, %v2356
  %v2392 = vsub.f32 %v1169, %v2356
  %v2393 = vsub.f32 %v1172, %v2356
  %v2394 = vsub.f32 %v1175, %v2356
  %v2395 = vsub.f32 %v1178, %v2356
  %v2396 = vsub.f32 %v1181, %v2356
  %v2397 = vsub.f32 %v1184, %v2356
  %v2398 = vsub.f32 %v1187, %v2356
  %v2399 = vsub.f32 %v1190, %v2356
  %v2400 = vsub.f32 %v1193, %v2356
  %v2401 = vsub.f32 %v1196, %v2356
  %v2402 = vsub.f32 %v1199, %v2356
  %v2403 = vsub.f32 %v1202, %v2356
  %v2404 = vsub.f32 %v1205, %v2356
  %v2405 = vsub.f32 %v1208, %v2356
  %v2406 = vsub.f32 %v1211, %v2356
  %v2407 = vsub.f32 %v1214, %v2356
  %v2408 = vsub.f32 %v1217, %v2356
  %v2409 = vsub.f32 %v1220, %v2356
  %v2410 = vsub.f32 %v1223, %v2356
  %v2411 = vsub.f32 %v1226, %v2356
  %v2412 = vsub.f32 %v1229, %v2356
  %v2413 = vsub.f32 %v1232, %v2356
  %v2414 = vsub.f32 %v1235, %v2356
  %v2415 = vsub.f32 %v1238, %v2356
  %v2416 = vsub.f32 %v1241, %v2356
  %v2417 = vsub.f32 %v1244, %v2356
  %v2418 = vsub.f32 %v1247, %v2356
  %v2419 = vsub.f32 %v1250, %v2356
  %v2420 = vsub.f32 %v1253, %v2356
  %v2421 = vsub.f32 %v1256, %v2356
  %v2422 = vsub.f32 %v1259, %v2356
  %v2423 = vsub.f32 %v1262, %v2356
  %v2424 = vsub.f32 %v1265, %v2356
  %v2425 = vsub.f32 %v1268, %v2356
  %v2426 = vsub.f32 %v1271, %v2356
  %v2427 = vsub.f32 %v1274, %v2356
  %v2428 = vsub.f32 %v1277, %v2356
  %v2429 = vsub.f32 %v1280, %v2356
  %v2430 = vsub.f32 %v1283, %v2356
  %v2431 = vsub.f32 %v1286, %v2356
  %v2432 = vsub.f32 %v1289, %v2356
  %v2433 = vsub.f32 %v1292, %v2356
  %v2434 = vsub.f32 %v1295, %v2356
  %v2435 = vsub.f32 %v1298, %v2356
  %v2436 = vsub.f32 %v1301, %v2356
  %v2437 = vsub.f32 %v1304, %v2356
  %v2438 = vsub.f32 %v1307, %v2356
  %v2439 = vsub.f32 %v1310, %v2356
  %v2440 = vsub.f32 %v1313, %v2356
  %v2441 = vsub.f32 %v1316, %v2356
  %v2442 = vsub.f32 %v1319, %v2356
  %v2443 = vsub.f32 %v1322, %v2356
  %v2444 = vsub.f32 %v1325, %v2356
  %v2445 = vsub.f32 %v1328, %v2356
  %v2446 = vsub.f32 %v1331, %v2356
  %v2447 = vsub.f32 %v1334, %v2356
  %v2448 = vsub.f32 %v1337, %v2356
  %v2449 = vsub.f32 %v1340, %v2356
  %v2450 = vsub.f32 %v1343, %v2356
  %v2451 = vsub.f32 %v1346, %v2356
  %v2452 = vsub.f32 %v1349, %v2356
  %v2453 = vsub.f32 %v1352, %v2356
  %v2454 = vsub.f32 %v1355, %v2356
  %v2455 = vsub.f32 %v1358, %v2356
  %v2456 = vsub.f32 %v1361, %v2356
  %v2457 = vsub.f32 %v1364, %v2356
  %v2458 = vsub.f32 %v1367, %v2356
  %v2459 = vsub.f32 %v1370, %v2356
  %v2460 = vsub.f32 %v1373, %v2356
  %v2461 = vsub.f32 %v1376, %v2356
  %v2462 = vsub.f32 %v1379, %v2356
  %v2463 = vsub.f32 %v1382, %v2356
  %v2464 = vsub.f32 %v1385, %v2356
  %v2465 = vsub.f32 %v1388, %v2356
  %v2466 = vsub.f32 %v1391, %v2356
  %v2467 = vsub.f32 %v1394, %v2356
  %v2468 = vsub.f32 %v1397, %v2356
  %v2469 = vsub.f32 %v1400, %v2356
  %v2470 = vsub.f32 %v1403, %v2356
  %v2471 = vsub.f32 %v1406, %v2356
  %v2472 = vsub.f32 %v1409, %v2356
  %v2473 = vsub.f32 %v1412, %v2356
  %v2474 = vsub.f32 %v1415, %v2356
  %v2475 = vsub.f32 %v1418, %v2356
  %v2476 = vsub.f32 %v1421, %v2356
  %v2477 = vsub.f32 %v1424, %v2356
  %v2478 = vsub.f32 %v1427, %v2356
  %v2479 = vsub.f32 %v1430, %v2356
  %v2480 = vsub.f32 %v1433, %v2356
  %v2481 = vsub.f32 %v1436, %v2356
  %v2482 = vsub.f32 %v1439, %v2356
  %v2483 = vsub.f32 %v1442, %v2356
  %v2484 = vsub.f32 %v1445, %v2356
  %v2485 = vsub.f32 %v1448, %v2356
  %v2486 = vsub.f32 %v1451, %v2356
  %v2487 = vsub.f32 %v1454, %v2356
  %v2488 = vsub.f32 %v1457, %v2356
  %v2489 = vsub.f32 %v1460, %v2356
  %v2490 = vsub.f32 %v1463, %v2356
  %v2491 = vsub.f32 %v1466, %v2356
  %v2492 = vsub.f32 %v1469, %v2356
  %v2493 = vsub.f32 %v1472, %v2356
  %v2494 = vsub.f32 %v1475, %v2356
  %v2495 = vsub.f32 %v1478, %v2356
  %v2496 = vsub.f32 %v1481, %v2356
  %v2497 = vsub.f32 %v1484, %v2356
  %v2498 = vsub.f32 %v1487, %v2356
  %v2499 = vsub.f32 %v1490, %v2356
  %v2500 = vsub.f32 %v1493, %v2356
  %v2501 = vsub.f32 %v1496, %v2356
  %v2502 = vsub.f32 %v1499, %v2356
  %v2503 = vsub.f32 %v1502, %v2356
  %v2504 = vsub.f32 %v1505, %v2356
  %v2505 = vsub.f32 %v1508, %v2356
  %v2506 = vsub.f32 %v1511, %v2356
  %v2507 = vsub.f32 %v1514, %v2356
  %v2508 = vsub.f32 %v1517, %v2356
  %v2509 = vsub.f32 %v1520, %v2356
  %v2510 = vsub.f32 %v1523, %v2356
  %v2511 = vsub.f32 %v1526, %v2356
  %v2512 = vsub.f32 %v1529, %v2356
  %v2513 = vsub.f32 %v1532, %v2356
  %v2514 = vsub.f32 %v1535, %v2356
  %v2515 = vsub.f32 %v1538, %v2356
  %v2516 = vsub.f32 %v1541, %v2356
  %v2517 = vsub.f32 %v1544, %v2356
  %v2518 = vsub.f32 %v1547, %v2356
  %v2519 = vsub.f32 %v1550, %v2356
  %v2520 = vsub.f32 %v1553, %v2356
  %v2521 = vsub.f32 %v1556, %v2356
  %v2522 = vsub.f32 %v1559, %v2356
  %v2523 = vsub.f32 %v1562, %v2356
  %v2524 = vsub.f32 %v1565, %v2356
  %v2525 = vsub.f32 %v1568, %v2356
  %v2526 = vsub.f32 %v1571, %v2356
  %v2527 = vsub.f32 %v1574, %v2356
  %v2528 = vsub.f32 %v1577, %v2356
  %v2529 = vsub.f32 %v1580, %v2356
  %v2530 = vsub.f32 %v1583, %v2356
  %v2531 = vsub.f32 %v1586, %v2356
  %v2532 = vsub.f32 %v1589, %v2356
  %v2533 = vsub.f32 %v1592, %v2356
  %v2534 = vsub.f32 %v1595, %v2356
  %v2535 = vsub.f32 %v1598, %v2356
  %v2536 = vsub.f32 %v1601, %v2356
  %v2537 = vsub.f32 %v1604, %v2356
  %v2538 = vsub.f32 %v1607, %v2356
  %v2539 = vsub.f32 %v1610, %v2356
  %v2540 = vsub.f32 %v1613, %v2356
  %v2541 = vsub.f32 %v1616, %v2356
  %v2542 = vsub.f32 %v1619, %v2356
  %v2543 = vsub.f32 %v1622, %v2356
  %v2544 = vsub.f32 %v1625, %v2356
  %v2545 = vsub.f32 %v1628, %v2356
  %v2546 = vsub.f32 %v1631, %v2356
  %v2547 = vsub.f32 %v1634, %v2356
  %v2548 = vsub.f32 %v1637, %v2356
  %v2549 = vsub.f32 %v1640, %v2356
  %v2550 = vsub.f32 %v1643, %v2356
  %v2551 = vsub.f32 %v1646, %v2356
  %v2552 = vsub.f32 %v1649, %v2356
  %v2553 = vsub.f32 %v1652, %v2356
  %v2554 = vsub.f32 %v1655, %v2356
  %v2555 = vsub.f32 %v1658, %v2356
  %v2556 = vsub.f32 %v1661, %v2356
  %v2557 = vsub.f32 %v1664, %v2356
  %v2558 = vsub.f32 %v1667, %v2356
  %v2559 = vsub.f32 %v1670, %v2356
  %v2560 = vsub.f32 %v1673, %v2356
  %v2561 = vsub.f32 %v1676, %v2356
  %v2562 = vsub.f32 %v1679, %v2356
  %v2563 = vsub.f32 %v1682, %v2356
  %v2564 = vsub.f32 %v1685, %v2356
  %v2565 = vsub.f32 %v1688, %v2356
  %v2566 = vsub.f32 %v1691, %v2356
  %v2567 = vsub.f32 %v1694, %v2356
  %v2568 = vsub.f32 %v1697, %v2356
  %v2569 = vsub.f32 %v1700, %v2356
  %v2570 = vsub.f32 %v1703, %v2356
  %v2571 = vsub.f32 %v1706, %v2356
  %v2572 = vsub.f32 %v1709, %v2356
  %v2573 = vsub.f32 %v1712, %v2356
  %v2574 = vsub.f32 %v1715, %v2356
  %v2575 = vsub.f32 %v1718, %v2356
  %v2576 = vsub.f32 %v1721, %v2356
  %v2577 = vsub.f32 %v1724, %v2356
  %v2578 = vsub.f32 %v1727, %v2356
  %v2579 = vsub.f32 %v1730, %v2356
  %v2580 = vsub.f32 %v1733, %v2356
  %v2581 = vsub.f32 %v1736, %v2356
  %v2582 = vsub.f32 %v1739, %v2356
  %v2583 = vsub.f32 %v1742, %v2356
  %v2584 = vsub.f32 %v1745, %v2356
  %v2585 = vsub.f32 %v1748, %v2356
  %v2586 = vsub.f32 %v1751, %v2356
  %v2587 = vsub.f32 %v1754, %v2356
  %v2588 = vsub.f32 %v1757, %v2356
  %v2589 = vsub.f32 %v1760, %v2356
  %v2590 = vsub.f32 %v1763, %v2356
  %v2591 = vsub.f32 %v1766, %v2356
  %v2592 = vsub.f32 %v1769, %v2356
  %v2593 = vsub.f32 %v1772, %v2356
  %v2594 = vsub.f32 %v1775, %v2356
  %v2595 = vsub.f32 %v1778, %v2356
  %v2596 = vsub.f32 %v1781, %v2356
  %v2597 = vsub.f32 %v1784, %v2356
  %v2598 = vsub.f32 %v1787, %v2356
  %v2599 = vsub.f32 %v1790, %v2356
  %v2600 = vsub.f32 %v1793, %v2356
  %v2601 = vsub.f32 %v1796, %v2356
  %v2602 = vsub.f32 %v1799, %v2356
  %v2603 = vsub.f32 %v1802, %v2356
  %v2604 = vsub.f32 %v1805, %v2356
  %v2605 = vsub.f32 %v1808, %v2356
  %v2606 = vsub.f32 %v1811, %v2356
  %v2607 = vsub.f32 %v1814, %v2356
  %v2608 = vsub.f32 %v1817, %v2356
  %v2609 = vsub.f32 %v1820, %v2356
  %v2610 = vsub.f32 %v1823, %v2356
  %v2611 = vsub.f32 %v1826, %v2356
  %v2612 = vsub.f32 %v1829, %v2356
  %v2613 = vmul.f32 %v2357, %v2357
  %v2614 = vmul.f32 %v2358, %v2358
  %v2615 = vmul.f32 %v2359, %v2359
  %v2616 = vmul.f32 %v2360, %v2360
  %v2617 = vmul.f32 %v2361, %v2361
  %v2618 = vmul.f32 %v2362, %v2362
  %v2619 = vmul.f32 %v2363, %v2363
  %v2620 = vmul.f32 %v2364, %v2364
  %v2621 = vmul.f32 %v2365, %v2365
  %v2622 = vmul.f32 %v2366, %v2366
  %v2623 = vmul.f32 %v2367, %v2367
  %v2624 = vmul.f32 %v2368, %v2368
  %v2625 = vmul.f32 %v2369, %v2369
  %v2626 = vmul.f32 %v2370, %v2370
  %v2627 = vmul.f32 %v2371, %v2371
  %v2628 = vmul.f32 %v2372, %v2372
  %v2629 = vmul.f32 %v2373, %v2373
  %v2630 = vmul.f32 %v2374, %v2374
  %v2631 = vmul.f32 %v2375, %v2375
  %v2632 = vmul.f32 %v2376, %v2376
  %v2633 = vmul.f32 %v2377, %v2377
  %v2634 = vmul.f32 %v2378, %v2378
  %v2635 = vmul.f32 %v2379, %v2379
  %v2636 = vmul.f32 %v2380, %v2380
  %v2637 = vmul.f32 %v2381, %v2381
  %v2638 = vmul.f32 %v2382, %v2382
  %v2639 = vmul.f32 %v2383, %v2383
  %v2640 = vmul.f32 %v2384, %v2384
  %v2641 = vmul.f32 %v2385, %v2385
  %v2642 = vmul.f32 %v2386, %v2386
  %v2643 = vmul.f32 %v2387, %v2387
  %v2644 = vmul.f32 %v2388, %v2388
  %v2645 = vmul.f32 %v2389, %v2389
  %v2646 = vmul.f32 %v2390, %v2390
  %v2647 = vmul.f32 %v2391, %v2391
  %v2648 = vmul.f32 %v2392, %v2392
  %v2649 = vmul.f32 %v2393, %v2393
  %v2650 = vmul.f32 %v2394, %v2394
  %v2651 = vmul.f32 %v2395, %v2395
  %v2652 = vmul.f32 %v2396, %v2396
  %v2653 = vmul.f32 %v2397, %v2397
  %v2654 = vmul.f32 %v2398, %v2398
  %v2655 = vmul.f32 %v2399, %v2399
  %v2656 = vmul.f32 %v2400, %v2400
  %v2657 = vmul.f32 %v2401, %v2401
  %v2658 = vmul.f32 %v2402, %v2402
  %v2659 = vmul.f32 %v2403, %v2403
  %v2660 = vmul.f32 %v2404, %v2404
  %v2661 = vmul.f32 %v2405, %v2405
  %v2662 = vmul.f32 %v2406, %v2406
  %v2663 = vmul.f32 %v2407, %v2407
  %v2664 = vmul.f32 %v2408, %v2408
  %v2665 = vmul.f32 %v2409, %v2409
  %v2666 = vmul.f32 %v2410, %v2410
  %v2667 = vmul.f32 %v2411, %v2411
  %v2668 = vmul.f32 %v2412, %v2412
  %v2669 = vmul.f32 %v2413, %v2413
  %v2670 = vmul.f32 %v2414, %v2414
  %v2671 = vmul.f32 %v2415, %v2415
  %v2672 = vmul.f32 %v2416, %v2416
  %v2673 = vmul.f32 %v2417, %v2417
  %v2674 = vmul.f32 %v2418, %v2418
  %v2675 = vmul.f32 %v2419, %v2419
  %v2676 = vmul.f32 %v2420, %v2420
  %v2677 = vmul.f32 %v2421, %v2421
  %v2678 = vmul.f32 %v2422, %v2422
  %v2679 = vmul.f32 %v2423, %v2423
  %v2680 = vmul.f32 %v2424, %v2424
  %v2681 = vmul.f32 %v2425, %v2425
  %v2682 = vmul.f32 %v2426, %v2426
  %v2683 = vmul.f32 %v2427, %v2427
  %v2684 = vmul.f32 %v2428, %v2428
  %v2685 = vmul.f32 %v2429, %v2429
  %v2686 = vmul.f32 %v2430, %v2430
  %v2687 = vmul.f32 %v2431, %v2431
  %v2688 = vmul.f32 %v2432, %v2432
  %v2689 = vmul.f32 %v2433, %v2433
  %v2690 = vmul.f32 %v2434, %v2434
  %v2691 = vmul.f32 %v2435, %v2435
  %v2692 = vmul.f32 %v2436, %v2436
  %v2693 = vmul.f32 %v2437, %v2437
  %v2694 = vmul.f32 %v2438, %v2438
  %v2695 = vmul.f32 %v2439, %v2439
  %v2696 = vmul.f32 %v2440, %v2440
  %v2697 = vmul.f32 %v2441, %v2441
  %v2698 = vmul.f32 %v2442, %v2442
  %v2699 = vmul.f32 %v2443, %v2443
  %v2700 = vmul.f32 %v2444, %v2444
  %v2701 = vmul.f32 %v2445, %v2445
  %v2702 = vmul.f32 %v2446, %v2446
  %v2703 = vmul.f32 %v2447, %v2447
  %v2704 = vmul.f32 %v2448, %v2448
  %v2705 = vmul.f32 %v2449, %v2449
  %v2706 = vmul.f32 %v2450, %v2450
  %v2707 = vmul.f32 %v2451, %v2451
  %v2708 = vmul.f32 %v2452, %v2452
  %v2709 = vmul.f32 %v2453, %v2453
  %v2710 = vmul.f32 %v2454, %v2454
  %v2711 = vmul.f32 %v2455, %v2455
  %v2712 = vmul.f32 %v2456, %v2456
  %v2713 = vmul.f32 %v2457, %v2457
  %v2714 = vmul.f32 %v2458, %v2458
  %v2715 = vmul.f32 %v2459, %v2459
  %v2716 = vmul.f32 %v2460, %v2460
  %v2717 = vmul.f32 %v2461, %v2461
  %v2718 = vmul.f32 %v2462, %v2462
  %v2719 = vmul.f32 %v2463, %v2463
  %v2720 = vmul.f32 %v2464, %v2464
  %v2721 = vmul.f32 %v2465, %v2465
  %v2722 = vmul.f32 %v2466, %v2466
  %v2723 = vmul.f32 %v2467, %v2467
  %v2724 = vmul.f32 %v2468, %v2468
  %v2725 = vmul.f32 %v2469, %v2469
  %v2726 = vmul.f32 %v2470, %v2470
  %v2727 = vmul.f32 %v2471, %v2471
  %v2728 = vmul.f32 %v2472, %v2472
  %v2729 = vmul.f32 %v2473, %v2473
  %v2730 = vmul.f32 %v2474, %v2474
  %v2731 = vmul.f32 %v2475, %v2475
  %v2732 = vmul.f32 %v2476, %v2476
  %v2733 = vmul.f32 %v2477, %v2477
  %v2734 = vmul.f32 %v2478, %v2478
  %v2735 = vmul.f32 %v2479, %v2479
  %v2736 = vmul.f32 %v2480, %v2480
  %v2737 = vmul.f32 %v2481, %v2481
  %v2738 = vmul.f32 %v2482, %v2482
  %v2739 = vmul.f32 %v2483, %v2483
  %v2740 = vmul.f32 %v2484, %v2484
  %v2741 = vmul.f32 %v2485, %v2485
  %v2742 = vmul.f32 %v2486, %v2486
  %v2743 = vmul.f32 %v2487, %v2487
  %v2744 = vmul.f32 %v2488, %v2488
  %v2745 = vmul.f32 %v2489, %v2489
  %v2746 = vmul.f32 %v2490, %v2490
  %v2747 = vmul.f32 %v2491, %v2491
  %v2748 = vmul.f32 %v2492, %v2492
  %v2749 = vmul.f32 %v2493, %v2493
  %v2750 = vmul.f32 %v2494, %v2494
  %v2751 = vmul.f32 %v2495, %v2495
  %v2752 = vmul.f32 %v2496, %v2496
  %v2753 = vmul.f32 %v2497, %v2497
  %v2754 = vmul.f32 %v2498, %v2498
  %v2755 = vmul.f32 %v2499, %v2499
  %v2756 = vmul.f32 %v2500, %v2500
  %v2757 = vmul.f32 %v2501, %v2501
  %v2758 = vmul.f32 %v2502, %v2502
  %v2759 = vmul.f32 %v2503, %v2503
  %v2760 = vmul.f32 %v2504, %v2504
  %v2761 = vmul.f32 %v2505, %v2505
  %v2762 = vmul.f32 %v2506, %v2506
  %v2763 = vmul.f32 %v2507, %v2507
  %v2764 = vmul.f32 %v2508, %v2508
  %v2765 = vmul.f32 %v2509, %v2509
  %v2766 = vmul.f32 %v2510, %v2510
  %v2767 = vmul.f32 %v2511, %v2511
  %v2768 = vmul.f32 %v2512, %v2512
  %v2769 = vmul.f32 %v2513, %v2513
  %v2770 = vmul.f32 %v2514, %v2514
  %v2771 = vmul.f32 %v2515, %v2515
  %v2772 = vmul.f32 %v2516, %v2516
  %v2773 = vmul.f32 %v2517, %v2517
  %v2774 = vmul.f32 %v2518, %v2518
  %v2775 = vmul.f32 %v2519, %v2519
  %v2776 = vmul.f32 %v2520, %v2520
  %v2777 = vmul.f32 %v2521, %v2521
  %v2778 = vmul.f32 %v2522, %v2522
  %v2779 = vmul.f32 %v2523, %v2523
  %v2780 = vmul.f32 %v2524, %v2524
  %v2781 = vmul.f32 %v2525, %v2525
  %v2782 = vmul.f32 %v2526, %v2526
  %v2783 = vmul.f32 %v2527, %v2527
  %v2784 = vmul.f32 %v2528, %v2528
  %v2785 = vmul.f32 %v2529, %v2529
  %v2786 = vmul.f32 %v2530, %v2530
  %v2787 = vmul.f32 %v2531, %v2531
  %v2788 = vmul.f32 %v2532, %v2532
  %v2789 = vmul.f32 %v2533, %v2533
  %v2790 = vmul.f32 %v2534, %v2534
  %v2791 = vmul.f32 %v2535, %v2535
  %v2792 = vmul.f32 %v2536, %v2536
  %v2793 = vmul.f32 %v2537, %v2537
  %v2794 = vmul.f32 %v2538, %v2538
  %v2795 = vmul.f32 %v2539, %v2539
  %v2796 = vmul.f32 %v2540, %v2540
  %v2797 = vmul.f32 %v2541, %v2541
  %v2798 = vmul.f32 %v2542, %v2542
  %v2799 = vmul.f32 %v2543, %v2543
  %v2800 = vmul.f32 %v2544, %v2544
  %v2801 = vmul.f32 %v2545, %v2545
  %v2802 = vmul.f32 %v2546, %v2546
  %v2803 = vmul.f32 %v2547, %v2547
  %v2804 = vmul.f32 %v2548, %v2548
  %v2805 = vmul.f32 %v2549, %v2549
  %v2806 = vmul.f32 %v2550, %v2550
  %v2807 = vmul.f32 %v2551, %v2551
  %v2808 = vmul.f32 %v2552, %v2552
  %v2809 = vmul.f32 %v2553, %v2553
  %v2810 = vmul.f32 %v2554, %v2554
  %v2811 = vmul.f32 %v2555, %v2555
  %v2812 = vmul.f32 %v2556, %v2556
  %v2813 = vmul.f32 %v2557, %v2557
  %v2814 = vmul.f32 %v2558, %v2558
  %v2815 = vmul.f32 %v2559, %v2559
  %v2816 = vmul.f32 %v2560, %v2560
  %v2817 = vmul.f32 %v2561, %v2561
  %v2818 = vmul.f32 %v2562, %v2562
  %v2819 = vmul.f32 %v2563, %v2563
  %v2820 = vmul.f32 %v2564, %v2564
  %v2821 = vmul.f32 %v2565, %v2565
  %v2822 = vmul.f32 %v2566, %v2566
  %v2823 = vmul.f32 %v2567, %v2567
  %v2824 = vmul.f32 %v2568, %v2568
  %v2825 = vmul.f32 %v2569, %v2569
  %v2826 = vmul.f32 %v2570, %v2570
  %v2827 = vmul.f32 %v2571, %v2571
  %v2828 = vmul.f32 %v2572, %v2572
  %v2829 = vmul.f32 %v2573, %v2573
  %v2830 = vmul.f32 %v2574, %v2574
  %v2831 = vmul.f32 %v2575, %v2575
  %v2832 = vmul.f32 %v2576, %v2576
  %v2833 = vmul.f32 %v2577, %v2577
  %v2834 = vmul.f32 %v2578, %v2578
  %v2835 = vmul.f32 %v2579, %v2579
  %v2836 = vmul.f32 %v2580, %v2580
  %v2837 = vmul.f32 %v2581, %v2581
  %v2838 = vmul.f32 %v2582, %v2582
  %v2839 = vmul.f32 %v2583, %v2583
  %v2840 = vmul.f32 %v2584, %v2584
  %v2841 = vmul.f32 %v2585, %v2585
  %v2842 = vmul.f32 %v2586, %v2586
  %v2843 = vmul.f32 %v2587, %v2587
  %v2844 = vmul.f32 %v2588, %v2588
  %v2845 = vmul.f32 %v2589, %v2589
  %v2846 = vmul.f32 %v2590, %v2590
  %v2847 = vmul.f32 %v2591, %v2591
  %v2848 = vmul.f32 %v2592, %v2592
  %v2849 = vmul.f32 %v2593, %v2593
  %v2850 = vmul.f32 %v2594, %v2594
  %v2851 = vmul.f32 %v2595, %v2595
  %v2852 = vmul.f32 %v2596, %v2596
  %v2853 = vmul.f32 %v2597, %v2597
  %v2854 = vmul.f32 %v2598, %v2598
  %v2855 = vmul.f32 %v2599, %v2599
  %v2856 = vmul.f32 %v2600, %v2600
  %v2857 = vmul.f32 %v2601, %v2601
  %v2858 = vmul.f32 %v2602, %v2602
  %v2859 = vmul.f32 %v2603, %v2603
  %v2860 = vmul.f32 %v2604, %v2604
  %v2861 = vmul.f32 %v2605, %v2605
  %v2862 = vmul.f32 %v2606, %v2606
  %v2863 = vmul.f32 %v2607, %v2607
  %v2864 = vmul.f32 %v2608, %v2608
  %v2865 = vmul.f32 %v2609, %v2609
  %v2866 = vmul.f32 %v2610, %v2610
  %v2867 = vmul.f32 %v2611, %v2611
  %v2868 = vmul.f32 %v2612, %v2612
  %v2869 = vsel %vm1831, %v2613, 0.0
  %v2870 = vsel %vm1831, %v2614, 0.0
  %v2871 = vadd.f32 %v2869, %v2870
  %v2872 = vsel %vm1831, %v2615, 0.0
  %v2873 = vadd.f32 %v2871, %v2872
  %v2874 = vsel %vm1831, %v2616, 0.0
  %v2875 = vadd.f32 %v2873, %v2874
  %v2876 = vsel %vm1831, %v2617, 0.0
  %v2877 = vadd.f32 %v2875, %v2876
  %v2878 = vsel %vm1831, %v2618, 0.0
  %v2879 = vadd.f32 %v2877, %v2878
  %v2880 = vsel %vm1831, %v2619, 0.0
  %v2881 = vadd.f32 %v2879, %v2880
  %v2882 = vsel %vm1831, %v2620, 0.0
  %v2883 = vadd.f32 %v2881, %v2882
  %v2884 = vsel %vm1831, %v2621, 0.0
  %v2885 = vadd.f32 %v2883, %v2884
  %v2886 = vsel %vm1831, %v2622, 0.0
  %v2887 = vadd.f32 %v2885, %v2886
  %v2888 = vsel %vm1831, %v2623, 0.0
  %v2889 = vadd.f32 %v2887, %v2888
  %v2890 = vsel %vm1831, %v2624, 0.0
  %v2891 = vadd.f32 %v2889, %v2890
  %v2892 = vsel %vm1831, %v2625, 0.0
  %v2893 = vadd.f32 %v2891, %v2892
  %v2894 = vsel %vm1831, %v2626, 0.0
  %v2895 = vadd.f32 %v2893, %v2894
  %v2896 = vsel %vm1831, %v2627, 0.0
  %v2897 = vadd.f32 %v2895, %v2896
  %v2898 = vsel %vm1831, %v2628, 0.0
  %v2899 = vadd.f32 %v2897, %v2898
  %v2900 = vsel %vm1831, %v2629, 0.0
  %v2901 = vadd.f32 %v2899, %v2900
  %v2902 = vsel %vm1831, %v2630, 0.0
  %v2903 = vadd.f32 %v2901, %v2902
  %v2904 = vsel %vm1831, %v2631, 0.0
  %v2905 = vadd.f32 %v2903, %v2904
  %v2906 = vsel %vm1831, %v2632, 0.0
  %v2907 = vadd.f32 %v2905, %v2906
  %v2908 = vsel %vm1831, %v2633, 0.0
  %v2909 = vadd.f32 %v2907, %v2908
  %v2910 = vsel %vm1831, %v2634, 0.0
  %v2911 = vadd.f32 %v2909, %v2910
  %v2912 = vsel %vm1831, %v2635, 0.0
  %v2913 = vadd.f32 %v2911, %v2912
  %v2914 = vsel %vm1831, %v2636, 0.0
  %v2915 = vadd.f32 %v2913, %v2914
  %v2916 = vsel %vm1831, %v2637, 0.0
  %v2917 = vadd.f32 %v2915, %v2916
  %v2918 = vsel %vm1831, %v2638, 0.0
  %v2919 = vadd.f32 %v2917, %v2918
  %v2920 = vsel %vm1831, %v2639, 0.0
  %v2921 = vadd.f32 %v2919, %v2920
  %v2922 = vsel %vm1831, %v2640, 0.0
  %v2923 = vadd.f32 %v2921, %v2922
  %v2924 = vsel %vm1831, %v2641, 0.0
  %v2925 = vadd.f32 %v2923, %v2924
  %v2926 = vsel %vm1831, %v2642, 0.0
  %v2927 = vadd.f32 %v2925, %v2926
  %v2928 = vsel %vm1831, %v2643, 0.0
  %v2929 = vadd.f32 %v2927, %v2928
  %v2930 = vsel %vm1831, %v2644, 0.0
  %v2931 = vadd.f32 %v2929, %v2930
  %v2932 = vsel %vm1831, %v2645, 0.0
  %v2933 = vadd.f32 %v2931, %v2932
  %v2934 = vsel %vm1831, %v2646, 0.0
  %v2935 = vadd.f32 %v2933, %v2934
  %v2936 = vsel %vm1831, %v2647, 0.0
  %v2937 = vadd.f32 %v2935, %v2936
  %v2938 = vsel %vm1831, %v2648, 0.0
  %v2939 = vadd.f32 %v2937, %v2938
  %v2940 = vsel %vm1831, %v2649, 0.0
  %v2941 = vadd.f32 %v2939, %v2940
  %v2942 = vsel %vm1831, %v2650, 0.0
  %v2943 = vadd.f32 %v2941, %v2942
  %v2944 = vsel %vm1831, %v2651, 0.0
  %v2945 = vadd.f32 %v2943, %v2944
  %v2946 = vsel %vm1831, %v2652, 0.0
  %v2947 = vadd.f32 %v2945, %v2946
  %v2948 = vsel %vm1831, %v2653, 0.0
  %v2949 = vadd.f32 %v2947, %v2948
  %v2950 = vsel %vm1831, %v2654, 0.0
  %v2951 = vadd.f32 %v2949, %v2950
  %v2952 = vsel %vm1831, %v2655, 0.0
  %v2953 = vadd.f32 %v2951, %v2952
  %v2954 = vsel %vm1831, %v2656, 0.0
  %v2955 = vadd.f32 %v2953, %v2954
  %v2956 = vsel %vm1831, %v2657, 0.0
  %v2957 = vadd.f32 %v2955, %v2956
  %v2958 = vsel %vm1831, %v2658, 0.0
  %v2959 = vadd.f32 %v2957, %v2958
  %v2960 = vsel %vm1831, %v2659, 0.0
  %v2961 = vadd.f32 %v2959, %v2960
  %v2962 = vsel %vm1831, %v2660, 0.0
  %v2963 = vadd.f32 %v2961, %v2962
  %v2964 = vsel %vm1831, %v2661, 0.0
  %v2965 = vadd.f32 %v2963, %v2964
  %v2966 = vsel %vm1831, %v2662, 0.0
  %v2967 = vadd.f32 %v2965, %v2966
  %v2968 = vsel %vm1831, %v2663, 0.0
  %v2969 = vadd.f32 %v2967, %v2968
  %v2970 = vsel %vm1831, %v2664, 0.0
  %v2971 = vadd.f32 %v2969, %v2970
  %v2972 = vsel %vm1831, %v2665, 0.0
  %v2973 = vadd.f32 %v2971, %v2972
  %v2974 = vsel %vm1831, %v2666, 0.0
  %v2975 = vadd.f32 %v2973, %v2974
  %v2976 = vsel %vm1831, %v2667, 0.0
  %v2977 = vadd.f32 %v2975, %v2976
  %v2978 = vsel %vm1831, %v2668, 0.0
  %v2979 = vadd.f32 %v2977, %v2978
  %v2980 = vsel %vm1831, %v2669, 0.0
  %v2981 = vadd.f32 %v2979, %v2980
  %v2982 = vsel %vm1831, %v2670, 0.0
  %v2983 = vadd.f32 %v2981, %v2982
  %v2984 = vsel %vm1831, %v2671, 0.0
  %v2985 = vadd.f32 %v2983, %v2984
  %v2986 = vsel %vm1831, %v2672, 0.0
  %v2987 = vadd.f32 %v2985, %v2986
  %v2988 = vsel %vm1831, %v2673, 0.0
  %v2989 = vadd.f32 %v2987, %v2988
  %v2990 = vsel %vm1831, %v2674, 0.0
  %v2991 = vadd.f32 %v2989, %v2990
  %v2992 = vsel %vm1831, %v2675, 0.0
  %v2993 = vadd.f32 %v2991, %v2992
  %v2994 = vsel %vm1831, %v2676, 0.0
  %v2995 = vadd.f32 %v2993, %v2994
  %v2996 = vsel %vm1831, %v2677, 0.0
  %v2997 = vadd.f32 %v2995, %v2996
  %v2998 = vsel %vm1831, %v2678, 0.0
  %v2999 = vadd.f32 %v2997, %v2998
  %v3000 = vsel %vm1831, %v2679, 0.0
  %v3001 = vadd.f32 %v2999, %v3000
  %v3002 = vsel %vm1831, %v2680, 0.0
  %v3003 = vadd.f32 %v3001, %v3002
  %v3004 = vsel %vm1831, %v2681, 0.0
  %v3005 = vadd.f32 %v3003, %v3004
  %v3006 = vsel %vm1831, %v2682, 0.0
  %v3007 = vadd.f32 %v3005, %v3006
  %v3008 = vsel %vm1831, %v2683, 0.0
  %v3009 = vadd.f32 %v3007, %v3008
  %v3010 = vsel %vm1831, %v2684, 0.0
  %v3011 = vadd.f32 %v3009, %v3010
  %v3012 = vsel %vm1831, %v2685, 0.0
  %v3013 = vadd.f32 %v3011, %v3012
  %v3014 = vsel %vm1831, %v2686, 0.0
  %v3015 = vadd.f32 %v3013, %v3014
  %v3016 = vsel %vm1831, %v2687, 0.0
  %v3017 = vadd.f32 %v3015, %v3016
  %v3018 = vsel %vm1831, %v2688, 0.0
  %v3019 = vadd.f32 %v3017, %v3018
  %v3020 = vsel %vm1831, %v2689, 0.0
  %v3021 = vadd.f32 %v3019, %v3020
  %v3022 = vsel %vm1831, %v2690, 0.0
  %v3023 = vadd.f32 %v3021, %v3022
  %v3024 = vsel %vm1831, %v2691, 0.0
  %v3025 = vadd.f32 %v3023, %v3024
  %v3026 = vsel %vm1831, %v2692, 0.0
  %v3027 = vadd.f32 %v3025, %v3026
  %v3028 = vsel %vm1831, %v2693, 0.0
  %v3029 = vadd.f32 %v3027, %v3028
  %v3030 = vsel %vm1831, %v2694, 0.0
  %v3031 = vadd.f32 %v3029, %v3030
  %v3032 = vsel %vm1831, %v2695, 0.0
  %v3033 = vadd.f32 %v3031, %v3032
  %v3034 = vsel %vm1831, %v2696, 0.0
  %v3035 = vadd.f32 %v3033, %v3034
  %v3036 = vsel %vm1831, %v2697, 0.0
  %v3037 = vadd.f32 %v3035, %v3036
  %v3038 = vsel %vm1831, %v2698, 0.0
  %v3039 = vadd.f32 %v3037, %v3038
  %v3040 = vsel %vm1831, %v2699, 0.0
  %v3041 = vadd.f32 %v3039, %v3040
  %v3042 = vsel %vm1831, %v2700, 0.0
  %v3043 = vadd.f32 %v3041, %v3042
  %v3044 = vsel %vm1831, %v2701, 0.0
  %v3045 = vadd.f32 %v3043, %v3044
  %v3046 = vsel %vm1831, %v2702, 0.0
  %v3047 = vadd.f32 %v3045, %v3046
  %v3048 = vsel %vm1831, %v2703, 0.0
  %v3049 = vadd.f32 %v3047, %v3048
  %v3050 = vsel %vm1831, %v2704, 0.0
  %v3051 = vadd.f32 %v3049, %v3050
  %v3052 = vsel %vm1831, %v2705, 0.0
  %v3053 = vadd.f32 %v3051, %v3052
  %v3054 = vsel %vm1831, %v2706, 0.0
  %v3055 = vadd.f32 %v3053, %v3054
  %v3056 = vsel %vm1831, %v2707, 0.0
  %v3057 = vadd.f32 %v3055, %v3056
  %v3058 = vsel %vm1831, %v2708, 0.0
  %v3059 = vadd.f32 %v3057, %v3058
  %v3060 = vsel %vm1831, %v2709, 0.0
  %v3061 = vadd.f32 %v3059, %v3060
  %v3062 = vsel %vm1831, %v2710, 0.0
  %v3063 = vadd.f32 %v3061, %v3062
  %v3064 = vsel %vm1831, %v2711, 0.0
  %v3065 = vadd.f32 %v3063, %v3064
  %v3066 = vsel %vm1831, %v2712, 0.0
  %v3067 = vadd.f32 %v3065, %v3066
  %v3068 = vsel %vm1831, %v2713, 0.0
  %v3069 = vadd.f32 %v3067, %v3068
  %v3070 = vsel %vm1831, %v2714, 0.0
  %v3071 = vadd.f32 %v3069, %v3070
  %v3072 = vsel %vm1831, %v2715, 0.0
  %v3073 = vadd.f32 %v3071, %v3072
  %v3074 = vsel %vm1831, %v2716, 0.0
  %v3075 = vadd.f32 %v3073, %v3074
  %v3076 = vsel %vm1831, %v2717, 0.0
  %v3077 = vadd.f32 %v3075, %v3076
  %v3078 = vsel %vm1831, %v2718, 0.0
  %v3079 = vadd.f32 %v3077, %v3078
  %v3080 = vsel %vm1831, %v2719, 0.0
  %v3081 = vadd.f32 %v3079, %v3080
  %v3082 = vsel %vm1831, %v2720, 0.0
  %v3083 = vadd.f32 %v3081, %v3082
  %v3084 = vsel %vm1831, %v2721, 0.0
  %v3085 = vadd.f32 %v3083, %v3084
  %v3086 = vsel %vm1831, %v2722, 0.0
  %v3087 = vadd.f32 %v3085, %v3086
  %v3088 = vsel %vm1831, %v2723, 0.0
  %v3089 = vadd.f32 %v3087, %v3088
  %v3090 = vsel %vm1831, %v2724, 0.0
  %v3091 = vadd.f32 %v3089, %v3090
  %v3092 = vsel %vm1831, %v2725, 0.0
  %v3093 = vadd.f32 %v3091, %v3092
  %v3094 = vsel %vm1831, %v2726, 0.0
  %v3095 = vadd.f32 %v3093, %v3094
  %v3096 = vsel %vm1831, %v2727, 0.0
  %v3097 = vadd.f32 %v3095, %v3096
  %v3098 = vsel %vm1831, %v2728, 0.0
  %v3099 = vadd.f32 %v3097, %v3098
  %v3100 = vsel %vm1831, %v2729, 0.0
  %v3101 = vadd.f32 %v3099, %v3100
  %v3102 = vsel %vm1831, %v2730, 0.0
  %v3103 = vadd.f32 %v3101, %v3102
  %v3104 = vsel %vm1831, %v2731, 0.0
  %v3105 = vadd.f32 %v3103, %v3104
  %v3106 = vsel %vm1831, %v2732, 0.0
  %v3107 = vadd.f32 %v3105, %v3106
  %v3108 = vsel %vm1831, %v2733, 0.0
  %v3109 = vadd.f32 %v3107, %v3108
  %v3110 = vsel %vm1831, %v2734, 0.0
  %v3111 = vadd.f32 %v3109, %v3110
  %v3112 = vsel %vm1831, %v2735, 0.0
  %v3113 = vadd.f32 %v3111, %v3112
  %v3114 = vsel %vm1831, %v2736, 0.0
  %v3115 = vadd.f32 %v3113, %v3114
  %v3116 = vsel %vm1831, %v2737, 0.0
  %v3117 = vadd.f32 %v3115, %v3116
  %v3118 = vsel %vm1831, %v2738, 0.0
  %v3119 = vadd.f32 %v3117, %v3118
  %v3120 = vsel %vm1831, %v2739, 0.0
  %v3121 = vadd.f32 %v3119, %v3120
  %v3122 = vsel %vm1831, %v2740, 0.0
  %v3123 = vadd.f32 %v3121, %v3122
  %v3124 = vsel %vm1831, %v2741, 0.0
  %v3125 = vadd.f32 %v3123, %v3124
  %v3126 = vsel %vm1831, %v2742, 0.0
  %v3127 = vadd.f32 %v3125, %v3126
  %v3128 = vsel %vm1831, %v2743, 0.0
  %v3129 = vadd.f32 %v3127, %v3128
  %v3130 = vsel %vm1831, %v2744, 0.0
  %v3131 = vadd.f32 %v3129, %v3130
  %v3132 = vsel %vm1831, %v2745, 0.0
  %v3133 = vadd.f32 %v3131, %v3132
  %v3134 = vsel %vm1831, %v2746, 0.0
  %v3135 = vadd.f32 %v3133, %v3134
  %v3136 = vsel %vm1831, %v2747, 0.0
  %v3137 = vadd.f32 %v3135, %v3136
  %v3138 = vsel %vm1831, %v2748, 0.0
  %v3139 = vadd.f32 %v3137, %v3138
  %v3140 = vsel %vm1831, %v2749, 0.0
  %v3141 = vadd.f32 %v3139, %v3140
  %v3142 = vsel %vm1831, %v2750, 0.0
  %v3143 = vadd.f32 %v3141, %v3142
  %v3144 = vsel %vm1831, %v2751, 0.0
  %v3145 = vadd.f32 %v3143, %v3144
  %v3146 = vsel %vm1831, %v2752, 0.0
  %v3147 = vadd.f32 %v3145, %v3146
  %v3148 = vsel %vm1831, %v2753, 0.0
  %v3149 = vadd.f32 %v3147, %v3148
  %v3150 = vsel %vm1831, %v2754, 0.0
  %v3151 = vadd.f32 %v3149, %v3150
  %v3152 = vsel %vm1831, %v2755, 0.0
  %v3153 = vadd.f32 %v3151, %v3152
  %v3154 = vsel %vm1831, %v2756, 0.0
  %v3155 = vadd.f32 %v3153, %v3154
  %v3156 = vsel %vm1831, %v2757, 0.0
  %v3157 = vadd.f32 %v3155, %v3156
  %v3158 = vsel %vm1831, %v2758, 0.0
  %v3159 = vadd.f32 %v3157, %v3158
  %v3160 = vsel %vm1831, %v2759, 0.0
  %v3161 = vadd.f32 %v3159, %v3160
  %v3162 = vsel %vm1831, %v2760, 0.0
  %v3163 = vadd.f32 %v3161, %v3162
  %v3164 = vsel %vm1831, %v2761, 0.0
  %v3165 = vadd.f32 %v3163, %v3164
  %v3166 = vsel %vm1831, %v2762, 0.0
  %v3167 = vadd.f32 %v3165, %v3166
  %v3168 = vsel %vm1831, %v2763, 0.0
  %v3169 = vadd.f32 %v3167, %v3168
  %v3170 = vsel %vm1831, %v2764, 0.0
  %v3171 = vadd.f32 %v3169, %v3170
  %v3172 = vsel %vm1831, %v2765, 0.0
  %v3173 = vadd.f32 %v3171, %v3172
  %v3174 = vsel %vm1831, %v2766, 0.0
  %v3175 = vadd.f32 %v3173, %v3174
  %v3176 = vsel %vm1831, %v2767, 0.0
  %v3177 = vadd.f32 %v3175, %v3176
  %v3178 = vsel %vm1831, %v2768, 0.0
  %v3179 = vadd.f32 %v3177, %v3178
  %v3180 = vsel %vm1831, %v2769, 0.0
  %v3181 = vadd.f32 %v3179, %v3180
  %v3182 = vsel %vm1831, %v2770, 0.0
  %v3183 = vadd.f32 %v3181, %v3182
  %v3184 = vsel %vm1831, %v2771, 0.0
  %v3185 = vadd.f32 %v3183, %v3184
  %v3186 = vsel %vm1831, %v2772, 0.0
  %v3187 = vadd.f32 %v3185, %v3186
  %v3188 = vsel %vm1831, %v2773, 0.0
  %v3189 = vadd.f32 %v3187, %v3188
  %v3190 = vsel %vm1831, %v2774, 0.0
  %v3191 = vadd.f32 %v3189, %v3190
  %v3192 = vsel %vm1831, %v2775, 0.0
  %v3193 = vadd.f32 %v3191, %v3192
  %v3194 = vsel %vm1831, %v2776, 0.0
  %v3195 = vadd.f32 %v3193, %v3194
  %v3196 = vsel %vm1831, %v2777, 0.0
  %v3197 = vadd.f32 %v3195, %v3196
  %v3198 = vsel %vm1831, %v2778, 0.0
  %v3199 = vadd.f32 %v3197, %v3198
  %v3200 = vsel %vm1831, %v2779, 0.0
  %v3201 = vadd.f32 %v3199, %v3200
  %v3202 = vsel %vm1831, %v2780, 0.0
  %v3203 = vadd.f32 %v3201, %v3202
  %v3204 = vsel %vm1831, %v2781, 0.0
  %v3205 = vadd.f32 %v3203, %v3204
  %v3206 = vsel %vm1831, %v2782, 0.0
  %v3207 = vadd.f32 %v3205, %v3206
  %v3208 = vsel %vm1831, %v2783, 0.0
  %v3209 = vadd.f32 %v3207, %v3208
  %v3210 = vsel %vm1831, %v2784, 0.0
  %v3211 = vadd.f32 %v3209, %v3210
  %v3212 = vsel %vm1831, %v2785, 0.0
  %v3213 = vadd.f32 %v3211, %v3212
  %v3214 = vsel %vm1831, %v2786, 0.0
  %v3215 = vadd.f32 %v3213, %v3214
  %v3216 = vsel %vm1831, %v2787, 0.0
  %v3217 = vadd.f32 %v3215, %v3216
  %v3218 = vsel %vm1831, %v2788, 0.0
  %v3219 = vadd.f32 %v3217, %v3218
  %v3220 = vsel %vm1831, %v2789, 0.0
  %v3221 = vadd.f32 %v3219, %v3220
  %v3222 = vsel %vm1831, %v2790, 0.0
  %v3223 = vadd.f32 %v3221, %v3222
  %v3224 = vsel %vm1831, %v2791, 0.0
  %v3225 = vadd.f32 %v3223, %v3224
  %v3226 = vsel %vm1831, %v2792, 0.0
  %v3227 = vadd.f32 %v3225, %v3226
  %v3228 = vsel %vm1831, %v2793, 0.0
  %v3229 = vadd.f32 %v3227, %v3228
  %v3230 = vsel %vm1831, %v2794, 0.0
  %v3231 = vadd.f32 %v3229, %v3230
  %v3232 = vsel %vm1831, %v2795, 0.0
  %v3233 = vadd.f32 %v3231, %v3232
  %v3234 = vsel %vm1831, %v2796, 0.0
  %v3235 = vadd.f32 %v3233, %v3234
  %v3236 = vsel %vm1831, %v2797, 0.0
  %v3237 = vadd.f32 %v3235, %v3236
  %v3238 = vsel %vm1831, %v2798, 0.0
  %v3239 = vadd.f32 %v3237, %v3238
  %v3240 = vsel %vm1831, %v2799, 0.0
  %v3241 = vadd.f32 %v3239, %v3240
  %v3242 = vsel %vm1831, %v2800, 0.0
  %v3243 = vadd.f32 %v3241, %v3242
  %v3244 = vsel %vm1831, %v2801, 0.0
  %v3245 = vadd.f32 %v3243, %v3244
  %v3246 = vsel %vm1831, %v2802, 0.0
  %v3247 = vadd.f32 %v3245, %v3246
  %v3248 = vsel %vm1831, %v2803, 0.0
  %v3249 = vadd.f32 %v3247, %v3248
  %v3250 = vsel %vm1831, %v2804, 0.0
  %v3251 = vadd.f32 %v3249, %v3250
  %v3252 = vsel %vm1831, %v2805, 0.0
  %v3253 = vadd.f32 %v3251, %v3252
  %v3254 = vsel %vm1831, %v2806, 0.0
  %v3255 = vadd.f32 %v3253, %v3254
  %v3256 = vsel %vm1831, %v2807, 0.0
  %v3257 = vadd.f32 %v3255, %v3256
  %v3258 = vsel %vm1831, %v2808, 0.0
  %v3259 = vadd.f32 %v3257, %v3258
  %v3260 = vsel %vm1831, %v2809, 0.0
  %v3261 = vadd.f32 %v3259, %v3260
  %v3262 = vsel %vm1831, %v2810, 0.0
  %v3263 = vadd.f32 %v3261, %v3262
  %v3264 = vsel %vm1831, %v2811, 0.0
  %v3265 = vadd.f32 %v3263, %v3264
  %v3266 = vsel %vm1831, %v2812, 0.0
  %v3267 = vadd.f32 %v3265, %v3266
  %v3268 = vsel %vm1831, %v2813, 0.0
  %v3269 = vadd.f32 %v3267, %v3268
  %v3270 = vsel %vm1831, %v2814, 0.0
  %v3271 = vadd.f32 %v3269, %v3270
  %v3272 = vsel %vm1831, %v2815, 0.0
  %v3273 = vadd.f32 %v3271, %v3272
  %v3274 = vsel %vm1831, %v2816, 0.0
  %v3275 = vadd.f32 %v3273, %v3274
  %v3276 = vsel %vm1831, %v2817, 0.0
  %v3277 = vadd.f32 %v3275, %v3276
  %v3278 = vsel %vm1831, %v2818, 0.0
  %v3279 = vadd.f32 %v3277, %v3278
  %v3280 = vsel %vm1831, %v2819, 0.0
  %v3281 = vadd.f32 %v3279, %v3280
  %v3282 = vsel %vm1831, %v2820, 0.0
  %v3283 = vadd.f32 %v3281, %v3282
  %v3284 = vsel %vm1831, %v2821, 0.0
  %v3285 = vadd.f32 %v3283, %v3284
  %v3286 = vsel %vm1831, %v2822, 0.0
  %v3287 = vadd.f32 %v3285, %v3286
  %v3288 = vsel %vm1831, %v2823, 0.0
  %v3289 = vadd.f32 %v3287, %v3288
  %v3290 = vsel %vm1831, %v2824, 0.0
  %v3291 = vadd.f32 %v3289, %v3290
  %v3292 = vsel %vm1831, %v2825, 0.0
  %v3293 = vadd.f32 %v3291, %v3292
  %v3294 = vsel %vm1831, %v2826, 0.0
  %v3295 = vadd.f32 %v3293, %v3294
  %v3296 = vsel %vm1831, %v2827, 0.0
  %v3297 = vadd.f32 %v3295, %v3296
  %v3298 = vsel %vm1831, %v2828, 0.0
  %v3299 = vadd.f32 %v3297, %v3298
  %v3300 = vsel %vm1831, %v2829, 0.0
  %v3301 = vadd.f32 %v3299, %v3300
  %v3302 = vsel %vm1831, %v2830, 0.0
  %v3303 = vadd.f32 %v3301, %v3302
  %v3304 = vsel %vm1831, %v2831, 0.0
  %v3305 = vadd.f32 %v3303, %v3304
  %v3306 = vsel %vm1831, %v2832, 0.0
  %v3307 = vadd.f32 %v3305, %v3306
  %v3308 = vsel %vm1831, %v2833, 0.0
  %v3309 = vadd.f32 %v3307, %v3308
  %v3310 = vsel %vm1831, %v2834, 0.0
  %v3311 = vadd.f32 %v3309, %v3310
  %v3312 = vsel %vm1831, %v2835, 0.0
  %v3313 = vadd.f32 %v3311, %v3312
  %v3314 = vsel %vm1831, %v2836, 0.0
  %v3315 = vadd.f32 %v3313, %v3314
  %v3316 = vsel %vm1831, %v2837, 0.0
  %v3317 = vadd.f32 %v3315, %v3316
  %v3318 = vsel %vm1831, %v2838, 0.0
  %v3319 = vadd.f32 %v3317, %v3318
  %v3320 = vsel %vm1831, %v2839, 0.0
  %v3321 = vadd.f32 %v3319, %v3320
  %v3322 = vsel %vm1831, %v2840, 0.0
  %v3323 = vadd.f32 %v3321, %v3322
  %v3324 = vsel %vm1831, %v2841, 0.0
  %v3325 = vadd.f32 %v3323, %v3324
  %v3326 = vsel %vm1831, %v2842, 0.0
  %v3327 = vadd.f32 %v3325, %v3326
  %v3328 = vsel %vm1831, %v2843, 0.0
  %v3329 = vadd.f32 %v3327, %v3328
  %v3330 = vsel %vm1831, %v2844, 0.0
  %v3331 = vadd.f32 %v3329, %v3330
  %v3332 = vsel %vm1831, %v2845, 0.0
  %v3333 = vadd.f32 %v3331, %v3332
  %v3334 = vsel %vm1831, %v2846, 0.0
  %v3335 = vadd.f32 %v3333, %v3334
  %v3336 = vsel %vm1831, %v2847, 0.0
  %v3337 = vadd.f32 %v3335, %v3336
  %v3338 = vsel %vm1831, %v2848, 0.0
  %v3339 = vadd.f32 %v3337, %v3338
  %v3340 = vsel %vm1831, %v2849, 0.0
  %v3341 = vadd.f32 %v3339, %v3340
  %v3342 = vsel %vm1831, %v2850, 0.0
  %v3343 = vadd.f32 %v3341, %v3342
  %v3344 = vsel %vm1831, %v2851, 0.0
  %v3345 = vadd.f32 %v3343, %v3344
  %v3346 = vsel %vm1831, %v2852, 0.0
  %v3347 = vadd.f32 %v3345, %v3346
  %v3348 = vsel %vm1831, %v2853, 0.0
  %v3349 = vadd.f32 %v3347, %v3348
  %v3350 = vsel %vm1831, %v2854, 0.0
  %v3351 = vadd.f32 %v3349, %v3350
  %v3352 = vsel %vm1831, %v2855, 0.0
  %v3353 = vadd.f32 %v3351, %v3352
  %v3354 = vsel %vm1831, %v2856, 0.0
  %v3355 = vadd.f32 %v3353, %v3354
  %v3356 = vsel %vm1831, %v2857, 0.0
  %v3357 = vadd.f32 %v3355, %v3356
  %v3358 = vsel %vm1831, %v2858, 0.0
  %v3359 = vadd.f32 %v3357, %v3358
  %v3360 = vsel %vm1831, %v2859, 0.0
  %v3361 = vadd.f32 %v3359, %v3360
  %v3362 = vsel %vm1831, %v2860, 0.0
  %v3363 = vadd.f32 %v3361, %v3362
  %v3364 = vsel %vm1831, %v2861, 0.0
  %v3365 = vadd.f32 %v3363, %v3364
  %v3366 = vsel %vm1831, %v2862, 0.0
  %v3367 = vadd.f32 %v3365, %v3366
  %v3368 = vsel %vm1831, %v2863, 0.0
  %v3369 = vadd.f32 %v3367, %v3368
  %v3370 = vsel %vm1831, %v2864, 0.0
  %v3371 = vadd.f32 %v3369, %v3370
  %v3372 = vsel %vm1831, %v2865, 0.0
  %v3373 = vadd.f32 %v3371, %v3372
  %v3374 = vsel %vm1831, %v2866, 0.0
  %v3375 = vadd.f32 %v3373, %v3374
  %v3376 = vsel %vm1831, %v2867, 0.0
  %v3377 = vadd.f32 %v3375, %v3376
  %v3378 = vsel %vm1831, %v2868, 0.0
  %v3379 = vadd.f32 %v3377, %v3378
  %v3380 = vrot.slane %v3379, 4
  %v3381 = vadd.f32 %v3379, %v3380
  %v3382 = vrot.slane %v3381, 2
  %v3383 = vadd.f32 %v3381, %v3382
  %v3384 = vrot.slane %v3383, 1
  %v3385 = vadd.f32 %v3383, %v3384
  %v3386 = vmul.f32 %v3385, %v2355
  %v3387 = vld [vmem:[%s2] sm:$0x1]
  %v3388 = vadd.f32 %v3386, 1e-05
  %v3389 = vrsqrt.pop %v3388
  %v3390 = vmul.f32 %v3389, %v3388
  %v3391 = vmul.f32 %v3390, %v3389
  %v3392 = vmul.f32 0.5, %v3391
  %v3393 = vsub.f32 1.5, %v3392
  %v3394 = vmul.f32 %v3389, %v3393
  %vm3395 = vweird.f32 %v3388
  %vm3396 = vweird.f32 %v3389
  %vm3397 = vmor %vm3395, %vm3396
  %v3398 = vsel %vm3397, %v3389, %v3394
  %v3399 = vmul.f32 %v3387, %v3398
  %v3401 = vperm.slane %v3399, 0
  %v3403 = vmul.f32 %v2357, %v3401
  %v3404 = vmul.f32 %v2358, %v3401
  %v3405 = vmul.f32 %v2359, %v3401
  %v3406 = vmul.f32 %v2360, %v3401
  %v3407 = vmul.f32 %v2361, %v3401
  %v3408 = vmul.f32 %v2362, %v3401
  %v3409 = vmul.f32 %v2363, %v3401
  %v3410 = vmul.f32 %v2364, %v3401
  %v3411 = vmul.f32 %v2365, %v3401
  %v3412 = vmul.f32 %v2366, %v3401
  %v3413 = vmul.f32 %v2367, %v3401
  %v3414 = vmul.f32 %v2368, %v3401
  %v3415 = vmul.f32 %v2369, %v3401
  %v3416 = vmul.f32 %v2370, %v3401
  %v3417 = vmul.f32 %v2371, %v3401
  %v3418 = vmul.f32 %v2372, %v3401
  %v3419 = vmul.f32 %v2373, %v3401
  %v3420 = vmul.f32 %v2374, %v3401
  %v3421 = vmul.f32 %v2375, %v3401
  %v3422 = vmul.f32 %v2376, %v3401
  %v3423 = vmul.f32 %v2377, %v3401
  %v3424 = vmul.f32 %v2378, %v3401
  %v3425 = vmul.f32 %v2379, %v3401
  %v3426 = vmul.f32 %v2380, %v3401
  %v3427 = vmul.f32 %v2381, %v3401
  %v3428 = vmul.f32 %v2382, %v3401
  %v3429 = vmul.f32 %v2383, %v3401
  %v3430 = vmul.f32 %v2384, %v3401
  %v3431 = vmul.f32 %v2385, %v3401
  %v3432 = vmul.f32 %v2386, %v3401
  %v3433 = vmul.f32 %v2387, %v3401
  %v3434 = vmul.f32 %v2388, %v3401
  %v3435 = vmul.f32 %v2389, %v3401
  %v3436 = vmul.f32 %v2390, %v3401
  %v3437 = vmul.f32 %v2391, %v3401
  %v3438 = vmul.f32 %v2392, %v3401
  %v3439 = vmul.f32 %v2393, %v3401
  %v3440 = vmul.f32 %v2394, %v3401
  %v3441 = vmul.f32 %v2395, %v3401
  %v3442 = vmul.f32 %v2396, %v3401
  %v3443 = vmul.f32 %v2397, %v3401
  %v3444 = vmul.f32 %v2398, %v3401
  %v3445 = vmul.f32 %v2399, %v3401
  %v3446 = vmul.f32 %v2400, %v3401
  %v3447 = vmul.f32 %v2401, %v3401
  %v3448 = vmul.f32 %v2402, %v3401
  %v3449 = vmul.f32 %v2403, %v3401
  %v3450 = vmul.f32 %v2404, %v3401
  %v3451 = vmul.f32 %v2405, %v3401
  %v3452 = vmul.f32 %v2406, %v3401
  %v3453 = vmul.f32 %v2407, %v3401
  %v3454 = vmul.f32 %v2408, %v3401
  %v3455 = vmul.f32 %v2409, %v3401
  %v3456 = vmul.f32 %v2410, %v3401
  %v3457 = vmul.f32 %v2411, %v3401
  %v3458 = vmul.f32 %v2412, %v3401
  %v3459 = vmul.f32 %v2413, %v3401
  %v3460 = vmul.f32 %v2414, %v3401
  %v3461 = vmul.f32 %v2415, %v3401
  %v3462 = vmul.f32 %v2416, %v3401
  %v3463 = vmul.f32 %v2417, %v3401
  %v3464 = vmul.f32 %v2418, %v3401
  %v3465 = vmul.f32 %v2419, %v3401
  %v3466 = vmul.f32 %v2420, %v3401
  %v3467 = vmul.f32 %v2421, %v3401
  %v3468 = vmul.f32 %v2422, %v3401
  %v3469 = vmul.f32 %v2423, %v3401
  %v3470 = vmul.f32 %v2424, %v3401
  %v3471 = vmul.f32 %v2425, %v3401
  %v3472 = vmul.f32 %v2426, %v3401
  %v3473 = vmul.f32 %v2427, %v3401
  %v3474 = vmul.f32 %v2428, %v3401
  %v3475 = vmul.f32 %v2429, %v3401
  %v3476 = vmul.f32 %v2430, %v3401
  %v3477 = vmul.f32 %v2431, %v3401
  %v3478 = vmul.f32 %v2432, %v3401
  %v3479 = vmul.f32 %v2433, %v3401
  %v3480 = vmul.f32 %v2434, %v3401
  %v3481 = vmul.f32 %v2435, %v3401
  %v3482 = vmul.f32 %v2436, %v3401
  %v3483 = vmul.f32 %v2437, %v3401
  %v3484 = vmul.f32 %v2438, %v3401
  %v3485 = vmul.f32 %v2439, %v3401
  %v3486 = vmul.f32 %v2440, %v3401
  %v3487 = vmul.f32 %v2441, %v3401
  %v3488 = vmul.f32 %v2442, %v3401
  %v3489 = vmul.f32 %v2443, %v3401
  %v3490 = vmul.f32 %v2444, %v3401
  %v3491 = vmul.f32 %v2445, %v3401
  %v3492 = vmul.f32 %v2446, %v3401
  %v3493 = vmul.f32 %v2447, %v3401
  %v3494 = vmul.f32 %v2448, %v3401
  %v3495 = vmul.f32 %v2449, %v3401
  %v3496 = vmul.f32 %v2450, %v3401
  %v3497 = vmul.f32 %v2451, %v3401
  %v3498 = vmul.f32 %v2452, %v3401
  %v3499 = vmul.f32 %v2453, %v3401
  %v3500 = vmul.f32 %v2454, %v3401
  %v3501 = vmul.f32 %v2455, %v3401
  %v3502 = vmul.f32 %v2456, %v3401
  %v3503 = vmul.f32 %v2457, %v3401
  %v3504 = vmul.f32 %v2458, %v3401
  %v3505 = vmul.f32 %v2459, %v3401
  %v3506 = vmul.f32 %v2460, %v3401
  %v3507 = vmul.f32 %v2461, %v3401
  %v3508 = vmul.f32 %v2462, %v3401
  %v3509 = vmul.f32 %v2463, %v3401
  %v3510 = vmul.f32 %v2464, %v3401
  %v3511 = vmul.f32 %v2465, %v3401
  %v3512 = vmul.f32 %v2466, %v3401
  %v3513 = vmul.f32 %v2467, %v3401
  %v3514 = vmul.f32 %v2468, %v3401
  %v3515 = vmul.f32 %v2469, %v3401
  %v3516 = vmul.f32 %v2470, %v3401
  %v3517 = vmul.f32 %v2471, %v3401
  %v3518 = vmul.f32 %v2472, %v3401
  %v3519 = vmul.f32 %v2473, %v3401
  %v3520 = vmul.f32 %v2474, %v3401
  %v3521 = vmul.f32 %v2475, %v3401
  %v3522 = vmul.f32 %v2476, %v3401
  %v3523 = vmul.f32 %v2477, %v3401
  %v3524 = vmul.f32 %v2478, %v3401
  %v3525 = vmul.f32 %v2479, %v3401
  %v3526 = vmul.f32 %v2480, %v3401
  %v3527 = vmul.f32 %v2481, %v3401
  %v3528 = vmul.f32 %v2482, %v3401
  %v3529 = vmul.f32 %v2483, %v3401
  %v3530 = vmul.f32 %v2484, %v3401
  %v3531 = vmul.f32 %v2485, %v3401
  %v3532 = vmul.f32 %v2486, %v3401
  %v3533 = vmul.f32 %v2487, %v3401
  %v3534 = vmul.f32 %v2488, %v3401
  %v3535 = vmul.f32 %v2489, %v3401
  %v3536 = vmul.f32 %v2490, %v3401
  %v3537 = vmul.f32 %v2491, %v3401
  %v3538 = vmul.f32 %v2492, %v3401
  %v3539 = vmul.f32 %v2493, %v3401
  %v3540 = vmul.f32 %v2494, %v3401
  %v3541 = vmul.f32 %v2495, %v3401
  %v3542 = vmul.f32 %v2496, %v3401
  %v3543 = vmul.f32 %v2497, %v3401
  %v3544 = vmul.f32 %v2498, %v3401
  %v3545 = vmul.f32 %v2499, %v3401
  %v3546 = vmul.f32 %v2500, %v3401
  %v3547 = vmul.f32 %v2501, %v3401
  %v3548 = vmul.f32 %v2502, %v3401
  %v3549 = vmul.f32 %v2503, %v3401
  %v3550 = vmul.f32 %v2504, %v3401
  %v3551 = vmul.f32 %v2505, %v3401
  %v3552 = vmul.f32 %v2506, %v3401
  %v3553 = vmul.f32 %v2507, %v3401
  %v3554 = vmul.f32 %v2508, %v3401
  %v3555 = vmul.f32 %v2509, %v3401
  %v3556 = vmul.f32 %v2510, %v3401
  %v3557 = vmul.f32 %v2511, %v3401
  %v3558 = vmul.f32 %v2512, %v3401
  %v3559 = vmul.f32 %v2513, %v3401
  %v3560 = vmul.f32 %v2514, %v3401
  %v3561 = vmul.f32 %v2515, %v3401
  %v3562 = vmul.f32 %v2516, %v3401
  %v3563 = vmul.f32 %v2517, %v3401
  %v3564 = vmul.f32 %v2518, %v3401
  %v3565 = vmul.f32 %v2519, %v3401
  %v3566 = vmul.f32 %v2520, %v3401
  %v3567 = vmul.f32 %v2521, %v3401
  %v3568 = vmul.f32 %v2522, %v3401
  %v3569 = vmul.f32 %v2523, %v3401
  %v3570 = vmul.f32 %v2524, %v3401
  %v3571 = vmul.f32 %v2525, %v3401
  %v3572 = vmul.f32 %v2526, %v3401
  %v3573 = vmul.f32 %v2527, %v3401
  %v3574 = vmul.f32 %v2528, %v3401
  %v3575 = vmul.f32 %v2529, %v3401
  %v3576 = vmul.f32 %v2530, %v3401
  %v3577 = vmul.f32 %v2531, %v3401
  %v3578 = vmul.f32 %v2532, %v3401
  %v3579 = vmul.f32 %v2533, %v3401
  %v3580 = vmul.f32 %v2534, %v3401
  %v3581 = vmul.f32 %v2535, %v3401
  %v3582 = vmul.f32 %v2536, %v3401
  %v3583 = vmul.f32 %v2537, %v3401
  %v3584 = vmul.f32 %v2538, %v3401
  %v3585 = vmul.f32 %v2539, %v3401
  %v3586 = vmul.f32 %v2540, %v3401
  %v3587 = vmul.f32 %v2541, %v3401
  %v3588 = vmul.f32 %v2542, %v3401
  %v3589 = vmul.f32 %v2543, %v3401
  %v3590 = vmul.f32 %v2544, %v3401
  %v3591 = vmul.f32 %v2545, %v3401
  %v3592 = vmul.f32 %v2546, %v3401
  %v3593 = vmul.f32 %v2547, %v3401
  %v3594 = vmul.f32 %v2548, %v3401
  %v3595 = vmul.f32 %v2549, %v3401
  %v3596 = vmul.f32 %v2550, %v3401
  %v3597 = vmul.f32 %v2551, %v3401
  %v3598 = vmul.f32 %v2552, %v3401
  %v3599 = vmul.f32 %v2553, %v3401
  %v3600 = vmul.f32 %v2554, %v3401
  %v3601 = vmul.f32 %v2555, %v3401
  %v3602 = vmul.f32 %v2556, %v3401
  %v3603 = vmul.f32 %v2557, %v3401
  %v3604 = vmul.f32 %v2558, %v3401
  %v3605 = vmul.f32 %v2559, %v3401
  %v3606 = vmul.f32 %v2560, %v3401
  %v3607 = vmul.f32 %v2561, %v3401
  %v3608 = vmul.f32 %v2562, %v3401
  %v3609 = vmul.f32 %v2563, %v3401
  %v3610 = vmul.f32 %v2564, %v3401
  %v3611 = vmul.f32 %v2565, %v3401
  %v3612 = vmul.f32 %v2566, %v3401
  %v3613 = vmul.f32 %v2567, %v3401
  %v3614 = vmul.f32 %v2568, %v3401
  %v3615 = vmul.f32 %v2569, %v3401
  %v3616 = vmul.f32 %v2570, %v3401
  %v3617 = vmul.f32 %v2571, %v3401
  %v3618 = vmul.f32 %v2572, %v3401
  %v3619 = vmul.f32 %v2573, %v3401
  %v3620 = vmul.f32 %v2574, %v3401
  %v3621 = vmul.f32 %v2575, %v3401
  %v3622 = vmul.f32 %v2576, %v3401
  %v3623 = vmul.f32 %v2577, %v3401
  %v3624 = vmul.f32 %v2578, %v3401
  %v3625 = vmul.f32 %v2579, %v3401
  %v3626 = vmul.f32 %v2580, %v3401
  %v3627 = vmul.f32 %v2581, %v3401
  %v3628 = vmul.f32 %v2582, %v3401
  %v3629 = vmul.f32 %v2583, %v3401
  %v3630 = vmul.f32 %v2584, %v3401
  %v3631 = vmul.f32 %v2585, %v3401
  %v3632 = vmul.f32 %v2586, %v3401
  %v3633 = vmul.f32 %v2587, %v3401
  %v3634 = vmul.f32 %v2588, %v3401
  %v3635 = vmul.f32 %v2589, %v3401
  %v3636 = vmul.f32 %v2590, %v3401
  %v3637 = vmul.f32 %v2591, %v3401
  %v3638 = vmul.f32 %v2592, %v3401
  %v3639 = vmul.f32 %v2593, %v3401
  %v3640 = vmul.f32 %v2594, %v3401
  %v3641 = vmul.f32 %v2595, %v3401
  %v3642 = vmul.f32 %v2596, %v3401
  %v3643 = vmul.f32 %v2597, %v3401
  %v3644 = vmul.f32 %v2598, %v3401
  %v3645 = vmul.f32 %v2599, %v3401
  %v3646 = vmul.f32 %v2600, %v3401
  %v3647 = vmul.f32 %v2601, %v3401
  %v3648 = vmul.f32 %v2602, %v3401
  %v3649 = vmul.f32 %v2603, %v3401
  %v3650 = vmul.f32 %v2604, %v3401
  %v3651 = vmul.f32 %v2605, %v3401
  %v3652 = vmul.f32 %v2606, %v3401
  %v3653 = vmul.f32 %v2607, %v3401
  %v3654 = vmul.f32 %v2608, %v3401
  %v3655 = vmul.f32 %v2609, %v3401
  %v3656 = vmul.f32 %v2610, %v3401
  %v3657 = vmul.f32 %v2611, %v3401
  %v3658 = vmul.f32 %v2612, %v3401
  %v3659 = vld [vmem:[%s3] sm:$0x1]
  %v3661 = vperm.slane %v3659, 0
  %v3663 = vadd.f32 %v3403, %v3661
  %v3664 = vadd.f32 %v3404, %v3661
  %v3665 = vadd.f32 %v3405, %v3661
  %v3666 = vadd.f32 %v3406, %v3661
  %v3667 = vadd.f32 %v3407, %v3661
  %v3668 = vadd.f32 %v3408, %v3661
  %v3669 = vadd.f32 %v3409, %v3661
  %v3670 = vadd.f32 %v3410, %v3661
  %v3671 = vadd.f32 %v3411, %v3661
  %v3672 = vadd.f32 %v3412, %v3661
  %v3673 = vadd.f32 %v3413, %v3661
  %v3674 = vadd.f32 %v3414, %v3661
  %v3675 = vadd.f32 %v3415, %v3661
  %v3676 = vadd.f32 %v3416, %v3661
  %v3677 = vadd.f32 %v3417, %v3661
  %v3678 = vadd.f32 %v3418, %v3661
  %v3679 = vadd.f32 %v3419, %v3661
  %v3680 = vadd.f32 %v3420, %v3661
  %v3681 = vadd.f32 %v3421, %v3661
  %v3682 = vadd.f32 %v3422, %v3661
  %v3683 = vadd.f32 %v3423, %v3661
  %v3684 = vadd.f32 %v3424, %v3661
  %v3685 = vadd.f32 %v3425, %v3661
  %v3686 = vadd.f32 %v3426, %v3661
  %v3687 = vadd.f32 %v3427, %v3661
  %v3688 = vadd.f32 %v3428, %v3661
  %v3689 = vadd.f32 %v3429, %v3661
  %v3690 = vadd.f32 %v3430, %v3661
  %v3691 = vadd.f32 %v3431, %v3661
  %v3692 = vadd.f32 %v3432, %v3661
  %v3693 = vadd.f32 %v3433, %v3661
  %v3694 = vadd.f32 %v3434, %v3661
  %v3695 = vadd.f32 %v3435, %v3661
  %v3696 = vadd.f32 %v3436, %v3661
  %v3697 = vadd.f32 %v3437, %v3661
  %v3698 = vadd.f32 %v3438, %v3661
  %v3699 = vadd.f32 %v3439, %v3661
  %v3700 = vadd.f32 %v3440, %v3661
  %v3701 = vadd.f32 %v3441, %v3661
  %v3702 = vadd.f32 %v3442, %v3661
  %v3703 = vadd.f32 %v3443, %v3661
  %v3704 = vadd.f32 %v3444, %v3661
  %v3705 = vadd.f32 %v3445, %v3661
  %v3706 = vadd.f32 %v3446, %v3661
  %v3707 = vadd.f32 %v3447, %v3661
  %v3708 = vadd.f32 %v3448, %v3661
  %v3709 = vadd.f32 %v3449, %v3661
  %v3710 = vadd.f32 %v3450, %v3661
  %v3711 = vadd.f32 %v3451, %v3661
  %v3712 = vadd.f32 %v3452, %v3661
  %v3713 = vadd.f32 %v3453, %v3661
  %v3714 = vadd.f32 %v3454, %v3661
  %v3715 = vadd.f32 %v3455, %v3661
  %v3716 = vadd.f32 %v3456, %v3661
  %v3717 = vadd.f32 %v3457, %v3661
  %v3718 = vadd.f32 %v3458, %v3661
  %v3719 = vadd.f32 %v3459, %v3661
  %v3720 = vadd.f32 %v3460, %v3661
  %v3721 = vadd.f32 %v3461, %v3661
  %v3722 = vadd.f32 %v3462, %v3661
  %v3723 = vadd.f32 %v3463, %v3661
  %v3724 = vadd.f32 %v3464, %v3661
  %v3725 = vadd.f32 %v3465, %v3661
  %v3726 = vadd.f32 %v3466, %v3661
  %v3727 = vadd.f32 %v3467, %v3661
  %v3728 = vadd.f32 %v3468, %v3661
  %v3729 = vadd.f32 %v3469, %v3661
  %v3730 = vadd.f32 %v3470, %v3661
  %v3731 = vadd.f32 %v3471, %v3661
  %v3732 = vadd.f32 %v3472, %v3661
  %v3733 = vadd.f32 %v3473, %v3661
  %v3734 = vadd.f32 %v3474, %v3661
  %v3735 = vadd.f32 %v3475, %v3661
  %v3736 = vadd.f32 %v3476, %v3661
  %v3737 = vadd.f32 %v3477, %v3661
  %v3738 = vadd.f32 %v3478, %v3661
  %v3739 = vadd.f32 %v3479, %v3661
  %v3740 = vadd.f32 %v3480, %v3661
  %v3741 = vadd.f32 %v3481, %v3661
  %v3742 = vadd.f32 %v3482, %v3661
  %v3743 = vadd.f32 %v3483, %v3661
  %v3744 = vadd.f32 %v3484, %v3661
  %v3745 = vadd.f32 %v3485, %v3661
  %v3746 = vadd.f32 %v3486, %v3661
  %v3747 = vadd.f32 %v3487, %v3661
  %v3748 = vadd.f32 %v3488, %v3661
  %v3749 = vadd.f32 %v3489, %v3661
  %v3750 = vadd.f32 %v3490, %v3661
  %v3751 = vadd.f32 %v3491, %v3661
  %v3752 = vadd.f32 %v3492, %v3661
  %v3753 = vadd.f32 %v3493, %v3661
  %v3754 = vadd.f32 %v3494, %v3661
  %v3755 = vadd.f32 %v3495, %v3661
  %v3756 = vadd.f32 %v3496, %v3661
  %v3757 = vadd.f32 %v3497, %v3661
  %v3758 = vadd.f32 %v3498, %v3661
  %v3759 = vadd.f32 %v3499, %v3661
  %v3760 = vadd.f32 %v3500, %v3661
  %v3761 = vadd.f32 %v3501, %v3661
  %v3762 = vadd.f32 %v3502, %v3661
  %v3763 = vadd.f32 %v3503, %v3661
  %v3764 = vadd.f32 %v3504, %v3661
  %v3765 = vadd.f32 %v3505, %v3661
  %v3766 = vadd.f32 %v3506, %v3661
  %v3767 = vadd.f32 %v3507, %v3661
  %v3768 = vadd.f32 %v3508, %v3661
  %v3769 = vadd.f32 %v3509, %v3661
  %v3770 = vadd.f32 %v3510, %v3661
  %v3771 = vadd.f32 %v3511, %v3661
  %v3772 = vadd.f32 %v3512, %v3661
  %v3773 = vadd.f32 %v3513, %v3661
  %v3774 = vadd.f32 %v3514, %v3661
  %v3775 = vadd.f32 %v3515, %v3661
  %v3776 = vadd.f32 %v3516, %v3661
  %v3777 = vadd.f32 %v3517, %v3661
  %v3778 = vadd.f32 %v3518, %v3661
  %v3779 = vadd.f32 %v3519, %v3661
  %v3780 = vadd.f32 %v3520, %v3661
  %v3781 = vadd.f32 %v3521, %v3661
  %v3782 = vadd.f32 %v3522, %v3661
  %v3783 = vadd.f32 %v3523, %v3661
  %v3784 = vadd.f32 %v3524, %v3661
  %v3785 = vadd.f32 %v3525, %v3661
  %v3786 = vadd.f32 %v3526, %v3661
  %v3787 = vadd.f32 %v3527, %v3661
  %v3788 = vadd.f32 %v3528, %v3661
  %v3789 = vadd.f32 %v3529, %v3661
  %v3790 = vadd.f32 %v3530, %v3661
  %v3791 = vadd.f32 %v3531, %v3661
  %v3792 = vadd.f32 %v3532, %v3661
  %v3793 = vadd.f32 %v3533, %v3661
  %v3794 = vadd.f32 %v3534, %v3661
  %v3795 = vadd.f32 %v3535, %v3661
  %v3796 = vadd.f32 %v3536, %v3661
  %v3797 = vadd.f32 %v3537, %v3661
  %v3798 = vadd.f32 %v3538, %v3661
  %v3799 = vadd.f32 %v3539, %v3661
  %v3800 = vadd.f32 %v3540, %v3661
  %v3801 = vadd.f32 %v3541, %v3661
  %v3802 = vadd.f32 %v3542, %v3661
  %v3803 = vadd.f32 %v3543, %v3661
  %v3804 = vadd.f32 %v3544, %v3661
  %v3805 = vadd.f32 %v3545, %v3661
  %v3806 = vadd.f32 %v3546, %v3661
  %v3807 = vadd.f32 %v3547, %v3661
  %v3808 = vadd.f32 %v3548, %v3661
  %v3809 = vadd.f32 %v3549, %v3661
  %v3810 = vadd.f32 %v3550, %v3661
  %v3811 = vadd.f32 %v3551, %v3661
  %v3812 = vadd.f32 %v3552, %v3661
  %v3813 = vadd.f32 %v3553, %v3661
  %v3814 = vadd.f32 %v3554, %v3661
  %v3815 = vadd.f32 %v3555, %v3661
  %v3816 = vadd.f32 %v3556, %v3661
  %v3817 = vadd.f32 %v3557, %v3661
  %v3818 = vadd.f32 %v3558, %v3661
  %v3819 = vadd.f32 %v3559, %v3661
  %v3820 = vadd.f32 %v3560, %v3661
  %v3821 = vadd.f32 %v3561, %v3661
  %v3822 = vadd.f32 %v3562, %v3661
  %v3823 = vadd.f32 %v3563, %v3661
  %v3824 = vadd.f32 %v3564, %v3661
  %v3825 = vadd.f32 %v3565, %v3661
  %v3826 = vadd.f32 %v3566, %v3661
  %v3827 = vadd.f32 %v3567, %v3661
  %v3828 = vadd.f32 %v3568, %v3661
  %v3829 = vadd.f32 %v3569, %v3661
  %v3830 = vadd.f32 %v3570, %v3661
  %v3831 = vadd.f32 %v3571, %v3661
  %v3832 = vadd.f32 %v3572, %v3661
  %v3833 = vadd.f32 %v3573, %v3661
  %v3834 = vadd.f32 %v3574, %v3661
  %v3835 = vadd.f32 %v3575, %v3661
  %v3836 = vadd.f32 %v3576, %v3661
  %v3837 = vadd.f32 %v3577, %v3661
  %v3838 = vadd.f32 %v3578, %v3661
  %v3839 = vadd.f32 %v3579, %v3661
  %v3840 = vadd.f32 %v3580, %v3661
  %v3841 = vadd.f32 %v3581, %v3661
  %v3842 = vadd.f32 %v3582, %v3661
  %v3843 = vadd.f32 %v3583, %v3661
  %v3844 = vadd.f32 %v3584, %v3661
  %v3845 = vadd.f32 %v3585, %v3661
  %v3846 = vadd.f32 %v3586, %v3661
  %v3847 = vadd.f32 %v3587, %v3661
  %v3848 = vadd.f32 %v3588, %v3661
  %v3849 = vadd.f32 %v3589, %v3661
  %v3850 = vadd.f32 %v3590, %v3661
  %v3851 = vadd.f32 %v3591, %v3661
  %v3852 = vadd.f32 %v3592, %v3661
  %v3853 = vadd.f32 %v3593, %v3661
  %v3854 = vadd.f32 %v3594, %v3661
  %v3855 = vadd.f32 %v3595, %v3661
  %v3856 = vadd.f32 %v3596, %v3661
  %v3857 = vadd.f32 %v3597, %v3661
  %v3858 = vadd.f32 %v3598, %v3661
  %v3859 = vadd.f32 %v3599, %v3661
  %v3860 = vadd.f32 %v3600, %v3661
  %v3861 = vadd.f32 %v3601, %v3661
  %v3862 = vadd.f32 %v3602, %v3661
  %v3863 = vadd.f32 %v3603, %v3661
  %v3864 = vadd.f32 %v3604, %v3661
  %v3865 = vadd.f32 %v3605, %v3661
  %v3866 = vadd.f32 %v3606, %v3661
  %v3867 = vadd.f32 %v3607, %v3661
  %v3868 = vadd.f32 %v3608, %v3661
  %v3869 = vadd.f32 %v3609, %v3661
  %v3870 = vadd.f32 %v3610, %v3661
  %v3871 = vadd.f32 %v3611, %v3661
  %v3872 = vadd.f32 %v3612, %v3661
  %v3873 = vadd.f32 %v3613, %v3661
  %v3874 = vadd.f32 %v3614, %v3661
  %v3875 = vadd.f32 %v3615, %v3661
  %v3876 = vadd.f32 %v3616, %v3661
  %v3877 = vadd.f32 %v3617, %v3661
  %v3878 = vadd.f32 %v3618, %v3661
  %v3879 = vadd.f32 %v3619, %v3661
  %v3880 = vadd.f32 %v3620, %v3661
  %v3881 = vadd.f32 %v3621, %v3661
  %v3882 = vadd.f32 %v3622, %v3661
  %v3883 = vadd.f32 %v3623, %v3661
  %v3884 = vadd.f32 %v3624, %v3661
  %v3885 = vadd.f32 %v3625, %v3661
  %v3886 = vadd.f32 %v3626, %v3661
  %v3887 = vadd.f32 %v3627, %v3661
  %v3888 = vadd.f32 %v3628, %v3661
  %v3889 = vadd.f32 %v3629, %v3661
  %v3890 = vadd.f32 %v3630, %v3661
  %v3891 = vadd.f32 %v3631, %v3661
  %v3892 = vadd.f32 %v3632, %v3661
  %v3893 = vadd.f32 %v3633, %v3661
  %v3894 = vadd.f32 %v3634, %v3661
  %v3895 = vadd.f32 %v3635, %v3661
  %v3896 = vadd.f32 %v3636, %v3661
  %v3897 = vadd.f32 %v3637, %v3661
  %v3898 = vadd.f32 %v3638, %v3661
  %v3899 = vadd.f32 %v3639, %v3661
  %v3900 = vadd.f32 %v3640, %v3661
  %v3901 = vadd.f32 %v3641, %v3661
  %v3902 = vadd.f32 %v3642, %v3661
  %v3903 = vadd.f32 %v3643, %v3661
  %v3904 = vadd.f32 %v3644, %v3661
  %v3905 = vadd.f32 %v3645, %v3661
  %v3906 = vadd.f32 %v3646, %v3661
  %v3907 = vadd.f32 %v3647, %v3661
  %v3908 = vadd.f32 %v3648, %v3661
  %v3909 = vadd.f32 %v3649, %v3661
  %v3910 = vadd.f32 %v3650, %v3661
  %v3911 = vadd.f32 %v3651, %v3661
  %v3912 = vadd.f32 %v3652, %v3661
  %v3913 = vadd.f32 %v3653, %v3661
  %v3914 = vadd.f32 %v3654, %v3661
  %v3915 = vadd.f32 %v3655, %v3661
  %v3916 = vadd.f32 %v3656, %v3661
  %v3917 = vadd.f32 %v3657, %v3661
  %v3918 = vadd.f32 %v3658, %v3661
  %v3919 = vmax.f32 %v3663, 0.0
  %v3920 = vmax.f32 %v3664, 0.0
  %v3921 = vmax.f32 %v3665, 0.0
  %v3922 = vmax.f32 %v3666, 0.0
  %v3923 = vmax.f32 %v3667, 0.0
  %v3924 = vmax.f32 %v3668, 0.0
  %v3925 = vmax.f32 %v3669, 0.0
  %v3926 = vmax.f32 %v3670, 0.0
  %v3927 = vmax.f32 %v3671, 0.0
  %v3928 = vmax.f32 %v3672, 0.0
  %v3929 = vmax.f32 %v3673, 0.0
  %v3930 = vmax.f32 %v3674, 0.0
  %v3931 = vmax.f32 %v3675, 0.0
  %v3932 = vmax.f32 %v3676, 0.0
  %v3933 = vmax.f32 %v3677, 0.0
  %v3934 = vmax.f32 %v3678, 0.0
  %v3935 = vmax.f32 %v3679, 0.0
  %v3936 = vmax.f32 %v3680, 0.0
  %v3937 = vmax.f32 %v3681, 0.0
  %v3938 = vmax.f32 %v3682, 0.0
  %v3939 = vmax.f32 %v3683, 0.0
  %v3940 = vmax.f32 %v3684, 0.0
  %v3941 = vmax.f32 %v3685, 0.0
  %v3942 = vmax.f32 %v3686, 0.0
  %v3943 = vmax.f32 %v3687, 0.0
  %v3944 = vmax.f32 %v3688, 0.0
  %v3945 = vmax.f32 %v3689, 0.0
  %v3946 = vmax.f32 %v3690, 0.0
  %v3947 = vmax.f32 %v3691, 0.0
  %v3948 = vmax.f32 %v3692, 0.0
  %v3949 = vmax.f32 %v3693, 0.0
  %v3950 = vmax.f32 %v3694, 0.0
  %v3951 = vmax.f32 %v3695, 0.0
  %v3952 = vmax.f32 %v3696, 0.0
  %v3953 = vmax.f32 %v3697, 0.0
  %v3954 = vmax.f32 %v3698, 0.0
  %v3955 = vmax.f32 %v3699, 0.0
  %v3956 = vmax.f32 %v3700, 0.0
  %v3957 = vmax.f32 %v3701, 0.0
  %v3958 = vmax.f32 %v3702, 0.0
  %v3959 = vmax.f32 %v3703, 0.0
  %v3960 = vmax.f32 %v3704, 0.0
  %v3961 = vmax.f32 %v3705, 0.0
  %v3962 = vmax.f32 %v3706, 0.0
  %v3963 = vmax.f32 %v3707, 0.0
  %v3964 = vmax.f32 %v3708, 0.0
  %v3965 = vmax.f32 %v3709, 0.0
  %v3966 = vmax.f32 %v3710, 0.0
  %v3967 = vmax.f32 %v3711, 0.0
  %v3968 = vmax.f32 %v3712, 0.0
  %v3969 = vmax.f32 %v3713, 0.0
  %v3970 = vmax.f32 %v3714, 0.0
  %v3971 = vmax.f32 %v3715, 0.0
  %v3972 = vmax.f32 %v3716, 0.0
  %v3973 = vmax.f32 %v3717, 0.0
  %v3974 = vmax.f32 %v3718, 0.0
  %v3975 = vmax.f32 %v3719, 0.0
  %v3976 = vmax.f32 %v3720, 0.0
  %v3977 = vmax.f32 %v3721, 0.0
  %v3978 = vmax.f32 %v3722, 0.0
  %v3979 = vmax.f32 %v3723, 0.0
  %v3980 = vmax.f32 %v3724, 0.0
  %v3981 = vmax.f32 %v3725, 0.0
  %v3982 = vmax.f32 %v3726, 0.0
  %v3983 = vmax.f32 %v3727, 0.0
  %v3984 = vmax.f32 %v3728, 0.0
  %v3985 = vmax.f32 %v3729, 0.0
  %v3986 = vmax.f32 %v3730, 0.0
  %v3987 = vmax.f32 %v3731, 0.0
  %v3988 = vmax.f32 %v3732, 0.0
  %v3989 = vmax.f32 %v3733, 0.0
  %v3990 = vmax.f32 %v3734, 0.0
  %v3991 = vmax.f32 %v3735, 0.0
  %v3992 = vmax.f32 %v3736, 0.0
  %v3993 = vmax.f32 %v3737, 0.0
  %v3994 = vmax.f32 %v3738, 0.0
  %v3995 = vmax.f32 %v3739, 0.0
  %v3996 = vmax.f32 %v3740, 0.0
  %v3997 = vmax.f32 %v3741, 0.0
  %v3998 = vmax.f32 %v3742, 0.0
  %v3999 = vmax.f32 %v3743, 0.0
  %v4000 = vmax.f32 %v3744, 0.0
  %v4001 = vmax.f32 %v3745, 0.0
  %v4002 = vmax.f32 %v3746, 0.0
  %v4003 = vmax.f32 %v3747, 0.0
  %v4004 = vmax.f32 %v3748, 0.0
  %v4005 = vmax.f32 %v3749, 0.0
  %v4006 = vmax.f32 %v3750, 0.0
  %v4007 = vmax.f32 %v3751, 0.0
  %v4008 = vmax.f32 %v3752, 0.0
  %v4009 = vmax.f32 %v3753, 0.0
  %v4010 = vmax.f32 %v3754, 0.0
  %v4011 = vmax.f32 %v3755, 0.0
  %v4012 = vmax.f32 %v3756, 0.0
  %v4013 = vmax.f32 %v3757, 0.0
  %v4014 = vmax.f32 %v3758, 0.0
  %v4015 = vmax.f32 %v3759, 0.0
  %v4016 = vmax.f32 %v3760, 0.0
  %v4017 = vmax.f32 %v3761, 0.0
  %v4018 = vmax.f32 %v3762, 0.0
  %v4019 = vmax.f32 %v3763, 0.0
  %v4020 = vmax.f32 %v3764, 0.0
  %v4021 = vmax.f32 %v3765, 0.0
  %v4022 = vmax.f32 %v3766, 0.0
  %v4023 = vmax.f32 %v3767, 0.0
  %v4024 = vmax.f32 %v3768, 0.0
  %v4025 = vmax.f32 %v3769, 0.0
  %v4026 = vmax.f32 %v3770, 0.0
  %v4027 = vmax.f32 %v3771, 0.0
  %v4028 = vmax.f32 %v3772, 0.0
  %v4029 = vmax.f32 %v3773, 0.0
  %v4030 = vmax.f32 %v3774, 0.0
  %v4031 = vmax.f32 %v3775, 0.0
  %v4032 = vmax.f32 %v3776, 0.0
  %v4033 = vmax.f32 %v3777, 0.0
  %v4034 = vmax.f32 %v3778, 0.0
  %v4035 = vmax.f32 %v3779, 0.0
  %v4036 = vmax.f32 %v3780, 0.0
  %v4037 = vmax.f32 %v3781, 0.0
  %v4038 = vmax.f32 %v3782, 0.0
  %v4039 = vmax.f32 %v3783, 0.0
  %v4040 = vmax.f32 %v3784, 0.0
  %v4041 = vmax.f32 %v3785, 0.0
  %v4042 = vmax.f32 %v3786, 0.0
  %v4043 = vmax.f32 %v3787, 0.0
  %v4044 = vmax.f32 %v3788, 0.0
  %v4045 = vmax.f32 %v3789, 0.0
  %v4046 = vmax.f32 %v3790, 0.0
  %v4047 = vmax.f32 %v3791, 0.0
  %v4048 = vmax.f32 %v3792, 0.0
  %v4049 = vmax.f32 %v3793, 0.0
  %v4050 = vmax.f32 %v3794, 0.0
  %v4051 = vmax.f32 %v3795, 0.0
  %v4052 = vmax.f32 %v3796, 0.0
  %v4053 = vmax.f32 %v3797, 0.0
  %v4054 = vmax.f32 %v3798, 0.0
  %v4055 = vmax.f32 %v3799, 0.0
  %v4056 = vmax.f32 %v3800, 0.0
  %v4057 = vmax.f32 %v3801, 0.0
  %v4058 = vmax.f32 %v3802, 0.0
  %v4059 = vmax.f32 %v3803, 0.0
  %v4060 = vmax.f32 %v3804, 0.0
  %v4061 = vmax.f32 %v3805, 0.0
  %v4062 = vmax.f32 %v3806, 0.0
  %v4063 = vmax.f32 %v3807, 0.0
  %v4064 = vmax.f32 %v3808, 0.0
  %v4065 = vmax.f32 %v3809, 0.0
  %v4066 = vmax.f32 %v3810, 0.0
  %v4067 = vmax.f32 %v3811, 0.0
  %v4068 = vmax.f32 %v3812, 0.0
  %v4069 = vmax.f32 %v3813, 0.0
  %v4070 = vmax.f32 %v3814, 0.0
  %v4071 = vmax.f32 %v3815, 0.0
  %v4072 = vmax.f32 %v3816, 0.0
  %v4073 = vmax.f32 %v3817, 0.0
  %v4074 = vmax.f32 %v3818, 0.0
  %v4075 = vmax.f32 %v3819, 0.0
  %v4076 = vmax.f32 %v3820, 0.0
  %v4077 = vmax.f32 %v3821, 0.0
  %v4078 = vmax.f32 %v3822, 0.0
  %v4079 = vmax.f32 %v3823, 0.0
  %v4080 = vmax.f32 %v3824, 0.0
  %v4081 = vmax.f32 %v3825, 0.0
  %v4082 = vmax.f32 %v3826, 0.0
  %v4083 = vmax.f32 %v3827, 0.0
  %v4084 = vmax.f32 %v3828, 0.0
  %v4085 = vmax.f32 %v3829, 0.0
  %v4086 = vmax.f32 %v3830, 0.0
  %v4087 = vmax.f32 %v3831, 0.0
  %v4088 = vmax.f32 %v3832, 0.0
  %v4089 = vmax.f32 %v3833, 0.0
  %v4090 = vmax.f32 %v3834, 0.0
  %v4091 = vmax.f32 %v3835, 0.0
  %v4092 = vmax.f32 %v3836, 0.0
  %v4093 = vmax.f32 %v3837, 0.0
  %v4094 = vmax.f32 %v3838, 0.0
  %v4095 = vmax.f32 %v3839, 0.0
  %v4096 = vmax.f32 %v3840, 0.0
  %v4097 = vmax.f32 %v3841, 0.0
  %v4098 = vmax.f32 %v3842, 0.0
  %v4099 = vmax.f32 %v3843, 0.0
  %v4100 = vmax.f32 %v3844, 0.0
  %v4101 = vmax.f32 %v3845, 0.0
  %v4102 = vmax.f32 %v3846, 0.0
  %v4103 = vmax.f32 %v3847, 0.0
  %v4104 = vmax.f32 %v3848, 0.0
  %v4105 = vmax.f32 %v3849, 0.0
  %v4106 = vmax.f32 %v3850, 0.0
  %v4107 = vmax.f32 %v3851, 0.0
  %v4108 = vmax.f32 %v3852, 0.0
  %v4109 = vmax.f32 %v3853, 0.0
  %v4110 = vmax.f32 %v3854, 0.0
  %v4111 = vmax.f32 %v3855, 0.0
  %v4112 = vmax.f32 %v3856, 0.0
  %v4113 = vmax.f32 %v3857, 0.0
  %v4114 = vmax.f32 %v3858, 0.0
  %v4115 = vmax.f32 %v3859, 0.0
  %v4116 = vmax.f32 %v3860, 0.0
  %v4117 = vmax.f32 %v3861, 0.0
  %v4118 = vmax.f32 %v3862, 0.0
  %v4119 = vmax.f32 %v3863, 0.0
  %v4120 = vmax.f32 %v3864, 0.0
  %v4121 = vmax.f32 %v3865, 0.0
  %v4122 = vmax.f32 %v3866, 0.0
  %v4123 = vmax.f32 %v3867, 0.0
  %v4124 = vmax.f32 %v3868, 0.0
  %v4125 = vmax.f32 %v3869, 0.0
  %v4126 = vmax.f32 %v3870, 0.0
  %v4127 = vmax.f32 %v3871, 0.0
  %v4128 = vmax.f32 %v3872, 0.0
  %v4129 = vmax.f32 %v3873, 0.0
  %v4130 = vmax.f32 %v3874, 0.0
  %v4131 = vmax.f32 %v3875, 0.0
  %v4132 = vmax.f32 %v3876, 0.0
  %v4133 = vmax.f32 %v3877, 0.0
  %v4134 = vmax.f32 %v3878, 0.0
  %v4135 = vmax.f32 %v3879, 0.0
  %v4136 = vmax.f32 %v3880, 0.0
  %v4137 = vmax.f32 %v3881, 0.0
  %v4138 = vmax.f32 %v3882, 0.0
  %v4139 = vmax.f32 %v3883, 0.0
  %v4140 = vmax.f32 %v3884, 0.0
  %v4141 = vmax.f32 %v3885, 0.0
  %v4142 = vmax.f32 %v3886, 0.0
  %v4143 = vmax.f32 %v3887, 0.0
  %v4144 = vmax.f32 %v3888, 0.0
  %v4145 = vmax.f32 %v3889, 0.0
  %v4146 = vmax.f32 %v3890, 0.0
  %v4147 = vmax.f32 %v3891, 0.0
  %v4148 = vmax.f32 %v3892, 0.0
  %v4149 = vmax.f32 %v3893, 0.0
  %v4150 = vmax.f32 %v3894, 0.0
  %v4151 = vmax.f32 %v3895, 0.0
  %v4152 = vmax.f32 %v3896, 0.0
  %v4153 = vmax.f32 %v3897, 0.0
  %v4154 = vmax.f32 %v3898, 0.0
  %v4155 = vmax.f32 %v3899, 0.0
  %v4156 = vmax.f32 %v3900, 0.0
  %v4157 = vmax.f32 %v3901, 0.0
  %v4158 = vmax.f32 %v3902, 0.0
  %v4159 = vmax.f32 %v3903, 0.0
  %v4160 = vmax.f32 %v3904, 0.0
  %v4161 = vmax.f32 %v3905, 0.0
  %v4162 = vmax.f32 %v3906, 0.0
  %v4163 = vmax.f32 %v3907, 0.0
  %v4164 = vmax.f32 %v3908, 0.0
  %v4165 = vmax.f32 %v3909, 0.0
  %v4166 = vmax.f32 %v3910, 0.0
  %v4167 = vmax.f32 %v3911, 0.0
  %v4168 = vmax.f32 %v3912, 0.0
  %v4169 = vmax.f32 %v3913, 0.0
  %v4170 = vmax.f32 %v3914, 0.0
  %v4171 = vmax.f32 %v3915, 0.0
  %v4172 = vmax.f32 %v3916, 0.0
  %v4173 = vmax.f32 %v3917, 0.0
  %v4174 = vmax.f32 %v3918, 0.0
  %4175 = vst.msk [vmem:[%s4] sm:$0xff] %vm1831, %v3919
  %4176 = vst.msk [vmem:[%s4 + $0x8] sm:$0xff] %vm1831, %v3920
  %4177 = vst.msk [vmem:[%s4 + $0x10] sm:$0xff] %vm1831, %v3921
  %4178 = vst.msk [vmem:[%s4 + $0x18] sm:$0xff] %vm1831, %v3922
  %4179 = vst.msk [vmem:[%s4 + $0x20] sm:$0xff] %vm1831, %v3923
  %4180 = vst.msk [vmem:[%s4 + $0x28] sm:$0xff] %vm1831, %v3924
  %4181 = vst.msk [vmem:[%s4 + $0x30] sm:$0xff] %vm1831, %v3925
  %4182 = vst.msk [vmem:[%s4 + $0x38] sm:$0xff] %vm1831, %v3926
  %4183 = vst.msk [vmem:[%s4 + $0x40] sm:$0xff] %vm1831, %v3927
  %4184 = vst.msk [vmem:[%s4 + $0x48] sm:$0xff] %vm1831, %v3928
  %4185 = vst.msk [vmem:[%s4 + $0x50] sm:$0xff] %vm1831, %v3929
  %4186 = vst.msk [vmem:[%s4 + $0x58] sm:$0xff] %vm1831, %v3930
  %4187 = vst.msk [vmem:[%s4 + $0x60] sm:$0xff] %vm1831, %v3931
  %4188 = vst.msk [vmem:[%s4 + $0x68] sm:$0xff] %vm1831, %v3932
  %4189 = vst.msk [vmem:[%s4 + $0x70] sm:$0xff] %vm1831, %v3933
  %4190 = vst.msk [vmem:[%s4 + $0x78] sm:$0xff] %vm1831, %v3934
  %4191 = vst.msk [vmem:[%s4 + $0x80] sm:$0xff] %vm1831, %v3935
  %4192 = vst.msk [vmem:[%s4 + $0x88] sm:$0xff] %vm1831, %v3936
  %4193 = vst.msk [vmem:[%s4 + $0x90] sm:$0xff] %vm1831, %v3937
  %4194 = vst.msk [vmem:[%s4 + $0x98] sm:$0xff] %vm1831, %v3938
  %4195 = vst.msk [vmem:[%s4 + $0xa0] sm:$0xff] %vm1831, %v3939
  %4196 = vst.msk [vmem:[%s4 + $0xa8] sm:$0xff] %vm1831, %v3940
  %4197 = vst.msk [vmem:[%s4 + $0xb0] sm:$0xff] %vm1831, %v3941
  %4198 = vst.msk [vmem:[%s4 + $0xb8] sm:$0xff] %vm1831, %v3942
  %4199 = vst.msk [vmem:[%s4 + $0xc0] sm:$0xff] %vm1831, %v3943
  %4200 = vst.msk [vmem:[%s4 + $0xc8] sm:$0xff] %vm1831, %v3944
  %4201 = vst.msk [vmem:[%s4 + $0xd0] sm:$0xff] %vm1831, %v3945
  %4202 = vst.msk [vmem:[%s4 + $0xd8] sm:$0xff] %vm1831, %v3946
  %4203 = vst.msk [vmem:[%s4 + $0xe0] sm:$0xff] %vm1831, %v3947
  %4204 = vst.msk [vmem:[%s4 + $0xe8] sm:$0xff] %vm1831, %v3948
  %4205 = vst.msk [vmem:[%s4 + $0xf0] sm:$0xff] %vm1831, %v3949
  %4206 = vst.msk [vmem:[%s4 + $0xf8] sm:$0xff] %vm1831, %v3950
  %4207 = vst.msk [vmem:[%s4 + $0x100] sm:$0xff] %vm1831, %v3951
  %4208 = vst.msk [vmem:[%s4 + $0x108] sm:$0xff] %vm1831, %v3952
  %4209 = vst.msk [vmem:[%s4 + $0x110] sm:$0xff] %vm1831, %v3953
  %4210 = vst.msk [vmem:[%s4 + $0x118] sm:$0xff] %vm1831, %v3954
  %4211 = vst.msk [vmem:[%s4 + $0x120] sm:$0xff] %vm1831, %v3955
  %4212 = vst.msk [vmem:[%s4 + $0x128] sm:$0xff] %vm1831, %v3956
  %4213 = vst.msk [vmem:[%s4 + $0x130] sm:$0xff] %vm1831, %v3957
  %4214 = vst.msk [vmem:[%s4 + $0x138] sm:$0xff] %vm1831, %v3958
  %4215 = vst.msk [vmem:[%s4 + $0x140] sm:$0xff] %vm1831, %v3959
  %4216 = vst.msk [vmem:[%s4 + $0x148] sm:$0xff] %vm1831, %v3960
  %4217 = vst.msk [vmem:[%s4 + $0x150] sm:$0xff] %vm1831, %v3961
  %4218 = vst.msk [vmem:[%s4 + $0x158] sm:$0xff] %vm1831, %v3962
  %4219 = vst.msk [vmem:[%s4 + $0x160] sm:$0xff] %vm1831, %v3963
  %4220 = vst.msk [vmem:[%s4 + $0x168] sm:$0xff] %vm1831, %v3964
  %4221 = vst.msk [vmem:[%s4 + $0x170] sm:$0xff] %vm1831, %v3965
  %4222 = vst.msk [vmem:[%s4 + $0x178] sm:$0xff] %vm1831, %v3966
  %4223 = vst.msk [vmem:[%s4 + $0x180] sm:$0xff] %vm1831, %v3967
  %4224 = vst.msk [vmem:[%s4 + $0x188] sm:$0xff] %vm1831, %v3968
  %4225 = vst.msk [vmem:[%s4 + $0x190] sm:$0xff] %vm1831, %v3969
  %4226 = vst.msk [vmem:[%s4 + $0x198] sm:$0xff] %vm1831, %v3970
  %4227 = vst.msk [vmem:[%s4 + $0x1a0] sm:$0xff] %vm1831, %v3971
  %4228 = vst.msk [vmem:[%s4 + $0x1a8] sm:$0xff] %vm1831, %v3972
  %4229 = vst.msk [vmem:[%s4 + $0x1b0] sm:$0xff] %vm1831, %v3973
  %4230 = vst.msk [vmem:[%s4 + $0x1b8] sm:$0xff] %vm1831, %v3974
  %4231 = vst.msk [vmem:[%s4 + $0x1c0] sm:$0xff] %vm1831, %v3975
  %4232 = vst.msk [vmem:[%s4 + $0x1c8] sm:$0xff] %vm1831, %v3976
  %4233 = vst.msk [vmem:[%s4 + $0x1d0] sm:$0xff] %vm1831, %v3977
  %4234 = vst.msk [vmem:[%s4 + $0x1d8] sm:$0xff] %vm1831, %v3978
  %4235 = vst.msk [vmem:[%s4 + $0x1e0] sm:$0xff] %vm1831, %v3979
  %4236 = vst.msk [vmem:[%s4 + $0x1e8] sm:$0xff] %vm1831, %v3980
  %4237 = vst.msk [vmem:[%s4 + $0x1f0] sm:$0xff] %vm1831, %v3981
  %4238 = vst.msk [vmem:[%s4 + $0x1f8] sm:$0xff] %vm1831, %v3982
  %4239 = vst.msk [vmem:[%s4 + $0x200] sm:$0xff] %vm1831, %v3983
  %4240 = vst.msk [vmem:[%s4 + $0x208] sm:$0xff] %vm1831, %v3984
  %4241 = vst.msk [vmem:[%s4 + $0x210] sm:$0xff] %vm1831, %v3985
  %4242 = vst.msk [vmem:[%s4 + $0x218] sm:$0xff] %vm1831, %v3986
  %4243 = vst.msk [vmem:[%s4 + $0x220] sm:$0xff] %vm1831, %v3987
  %4244 = vst.msk [vmem:[%s4 + $0x228] sm:$0xff] %vm1831, %v3988
  %4245 = vst.msk [vmem:[%s4 + $0x230] sm:$0xff] %vm1831, %v3989
  %4246 = vst.msk [vmem:[%s4 + $0x238] sm:$0xff] %vm1831, %v3990
  %4247 = vst.msk [vmem:[%s4 + $0x240] sm:$0xff] %vm1831, %v3991
  %4248 = vst.msk [vmem:[%s4 + $0x248] sm:$0xff] %vm1831, %v3992
  %4249 = vst.msk [vmem:[%s4 + $0x250] sm:$0xff] %vm1831, %v3993
  %4250 = vst.msk [vmem:[%s4 + $0x258] sm:$0xff] %vm1831, %v3994
  %4251 = vst.msk [vmem:[%s4 + $0x260] sm:$0xff] %vm1831, %v3995
  %4252 = vst.msk [vmem:[%s4 + $0x268] sm:$0xff] %vm1831, %v3996
  %4253 = vst.msk [vmem:[%s4 + $0x270] sm:$0xff] %vm1831, %v3997
  %4254 = vst.msk [vmem:[%s4 + $0x278] sm:$0xff] %vm1831, %v3998
  %4255 = vst.msk [vmem:[%s4 + $0x280] sm:$0xff] %vm1831, %v3999
  %4256 = vst.msk [vmem:[%s4 + $0x288] sm:$0xff] %vm1831, %v4000
  %4257 = vst.msk [vmem:[%s4 + $0x290] sm:$0xff] %vm1831, %v4001
  %4258 = vst.msk [vmem:[%s4 + $0x298] sm:$0xff] %vm1831, %v4002
  %4259 = vst.msk [vmem:[%s4 + $0x2a0] sm:$0xff] %vm1831, %v4003
  %4260 = vst.msk [vmem:[%s4 + $0x2a8] sm:$0xff] %vm1831, %v4004
  %4261 = vst.msk [vmem:[%s4 + $0x2b0] sm:$0xff] %vm1831, %v4005
  %4262 = vst.msk [vmem:[%s4 + $0x2b8] sm:$0xff] %vm1831, %v4006
  %4263 = vst.msk [vmem:[%s4 + $0x2c0] sm:$0xff] %vm1831, %v4007
  %4264 = vst.msk [vmem:[%s4 + $0x2c8] sm:$0xff] %vm1831, %v4008
  %4265 = vst.msk [vmem:[%s4 + $0x2d0] sm:$0xff] %vm1831, %v4009
  %4266 = vst.msk [vmem:[%s4 + $0x2d8] sm:$0xff] %vm1831, %v4010
  %4267 = vst.msk [vmem:[%s4 + $0x2e0] sm:$0xff] %vm1831, %v4011
  %4268 = vst.msk [vmem:[%s4 + $0x2e8] sm:$0xff] %vm1831, %v4012
  %4269 = vst.msk [vmem:[%s4 + $0x2f0] sm:$0xff] %vm1831, %v4013
  %4270 = vst.msk [vmem:[%s4 + $0x2f8] sm:$0xff] %vm1831, %v4014
  %4271 = vst.msk [vmem:[%s4 + $0x300] sm:$0xff] %vm1831, %v4015
  %4272 = vst.msk [vmem:[%s4 + $0x308] sm:$0xff] %vm1831, %v4016
  %4273 = vst.msk [vmem:[%s4 + $0x310] sm:$0xff] %vm1831, %v4017
  %4274 = vst.msk [vmem:[%s4 + $0x318] sm:$0xff] %vm1831, %v4018
  %4275 = vst.msk [vmem:[%s4 + $0x320] sm:$0xff] %vm1831, %v4019
  %4276 = vst.msk [vmem:[%s4 + $0x328] sm:$0xff] %vm1831, %v4020
  %4277 = vst.msk [vmem:[%s4 + $0x330] sm:$0xff] %vm1831, %v4021
  %4278 = vst.msk [vmem:[%s4 + $0x338] sm:$0xff] %vm1831, %v4022
  %4279 = vst.msk [vmem:[%s4 + $0x340] sm:$0xff] %vm1831, %v4023
  %4280 = vst.msk [vmem:[%s4 + $0x348] sm:$0xff] %vm1831, %v4024
  %4281 = vst.msk [vmem:[%s4 + $0x350] sm:$0xff] %vm1831, %v4025
  %4282 = vst.msk [vmem:[%s4 + $0x358] sm:$0xff] %vm1831, %v4026
  %4283 = vst.msk [vmem:[%s4 + $0x360] sm:$0xff] %vm1831, %v4027
  %4284 = vst.msk [vmem:[%s4 + $0x368] sm:$0xff] %vm1831, %v4028
  %4285 = vst.msk [vmem:[%s4 + $0x370] sm:$0xff] %vm1831, %v4029
  %4286 = vst.msk [vmem:[%s4 + $0x378] sm:$0xff] %vm1831, %v4030
  %4287 = vst.msk [vmem:[%s4 + $0x380] sm:$0xff] %vm1831, %v4031
  %4288 = vst.msk [vmem:[%s4 + $0x388] sm:$0xff] %vm1831, %v4032
  %4289 = vst.msk [vmem:[%s4 + $0x390] sm:$0xff] %vm1831, %v4033
  %4290 = vst.msk [vmem:[%s4 + $0x398] sm:$0xff] %vm1831, %v4034
  %4291 = vst.msk [vmem:[%s4 + $0x3a0] sm:$0xff] %vm1831, %v4035
  %4292 = vst.msk [vmem:[%s4 + $0x3a8] sm:$0xff] %vm1831, %v4036
  %4293 = vst.msk [vmem:[%s4 + $0x3b0] sm:$0xff] %vm1831, %v4037
  %4294 = vst.msk [vmem:[%s4 + $0x3b8] sm:$0xff] %vm1831, %v4038
  %4295 = vst.msk [vmem:[%s4 + $0x3c0] sm:$0xff] %vm1831, %v4039
  %4296 = vst.msk [vmem:[%s4 + $0x3c8] sm:$0xff] %vm1831, %v4040
  %4297 = vst.msk [vmem:[%s4 + $0x3d0] sm:$0xff] %vm1831, %v4041
  %4298 = vst.msk [vmem:[%s4 + $0x3d8] sm:$0xff] %vm1831, %v4042
  %4299 = vst.msk [vmem:[%s4 + $0x3e0] sm:$0xff] %vm1831, %v4043
  %4300 = vst.msk [vmem:[%s4 + $0x3e8] sm:$0xff] %vm1831, %v4044
  %4301 = vst.msk [vmem:[%s4 + $0x3f0] sm:$0xff] %vm1831, %v4045
  %4302 = vst.msk [vmem:[%s4 + $0x3f8] sm:$0xff] %vm1831, %v4046
  %4303 = vst.msk [vmem:[%s4 + $0x400] sm:$0xff] %vm1831, %v4047
  %4304 = vst.msk [vmem:[%s4 + $0x408] sm:$0xff] %vm1831, %v4048
  %4305 = vst.msk [vmem:[%s4 + $0x410] sm:$0xff] %vm1831, %v4049
  %4306 = vst.msk [vmem:[%s4 + $0x418] sm:$0xff] %vm1831, %v4050
  %4307 = vst.msk [vmem:[%s4 + $0x420] sm:$0xff] %vm1831, %v4051
  %4308 = vst.msk [vmem:[%s4 + $0x428] sm:$0xff] %vm1831, %v4052
  %4309 = vst.msk [vmem:[%s4 + $0x430] sm:$0xff] %vm1831, %v4053
  %4310 = vst.msk [vmem:[%s4 + $0x438] sm:$0xff] %vm1831, %v4054
  %4311 = vst.msk [vmem:[%s4 + $0x440] sm:$0xff] %vm1831, %v4055
  %4312 = vst.msk [vmem:[%s4 + $0x448] sm:$0xff] %vm1831, %v4056
  %4313 = vst.msk [vmem:[%s4 + $0x450] sm:$0xff] %vm1831, %v4057
  %4314 = vst.msk [vmem:[%s4 + $0x458] sm:$0xff] %vm1831, %v4058
  %4315 = vst.msk [vmem:[%s4 + $0x460] sm:$0xff] %vm1831, %v4059
  %4316 = vst.msk [vmem:[%s4 + $0x468] sm:$0xff] %vm1831, %v4060
  %4317 = vst.msk [vmem:[%s4 + $0x470] sm:$0xff] %vm1831, %v4061
  %4318 = vst.msk [vmem:[%s4 + $0x478] sm:$0xff] %vm1831, %v4062
  %4319 = vst.msk [vmem:[%s4 + $0x480] sm:$0xff] %vm1831, %v4063
  %4320 = vst.msk [vmem:[%s4 + $0x488] sm:$0xff] %vm1831, %v4064
  %4321 = vst.msk [vmem:[%s4 + $0x490] sm:$0xff] %vm1831, %v4065
  %4322 = vst.msk [vmem:[%s4 + $0x498] sm:$0xff] %vm1831, %v4066
  %4323 = vst.msk [vmem:[%s4 + $0x4a0] sm:$0xff] %vm1831, %v4067
  %4324 = vst.msk [vmem:[%s4 + $0x4a8] sm:$0xff] %vm1831, %v4068
  %4325 = vst.msk [vmem:[%s4 + $0x4b0] sm:$0xff] %vm1831, %v4069
  %4326 = vst.msk [vmem:[%s4 + $0x4b8] sm:$0xff] %vm1831, %v4070
  %4327 = vst.msk [vmem:[%s4 + $0x4c0] sm:$0xff] %vm1831, %v4071
  %4328 = vst.msk [vmem:[%s4 + $0x4c8] sm:$0xff] %vm1831, %v4072
  %4329 = vst.msk [vmem:[%s4 + $0x4d0] sm:$0xff] %vm1831, %v4073
  %4330 = vst.msk [vmem:[%s4 + $0x4d8] sm:$0xff] %vm1831, %v4074
  %4331 = vst.msk [vmem:[%s4 + $0x4e0] sm:$0xff] %vm1831, %v4075
  %4332 = vst.msk [vmem:[%s4 + $0x4e8] sm:$0xff] %vm1831, %v4076
  %4333 = vst.msk [vmem:[%s4 + $0x4f0] sm:$0xff] %vm1831, %v4077
  %4334 = vst.msk [vmem:[%s4 + $0x4f8] sm:$0xff] %vm1831, %v4078
  %4335 = vst.msk [vmem:[%s4 + $0x500] sm:$0xff] %vm1831, %v4079
  %4336 = vst.msk [vmem:[%s4 + $0x508] sm:$0xff] %vm1831, %v4080
  %4337 = vst.msk [vmem:[%s4 + $0x510] sm:$0xff] %vm1831, %v4081
  %4338 = vst.msk [vmem:[%s4 + $0x518] sm:$0xff] %vm1831, %v4082
  %4339 = vst.msk [vmem:[%s4 + $0x520] sm:$0xff] %vm1831, %v4083
  %4340 = vst.msk [vmem:[%s4 + $0x528] sm:$0xff] %vm1831, %v4084
  %4341 = vst.msk [vmem:[%s4 + $0x530] sm:$0xff] %vm1831, %v4085
  %4342 = vst.msk [vmem:[%s4 + $0x538] sm:$0xff] %vm1831, %v4086
  %4343 = vst.msk [vmem:[%s4 + $0x540] sm:$0xff] %vm1831, %v4087
  %4344 = vst.msk [vmem:[%s4 + $0x548] sm:$0xff] %vm1831, %v4088
  %4345 = vst.msk [vmem:[%s4 + $0x550] sm:$0xff] %vm1831, %v4089
  %4346 = vst.msk [vmem:[%s4 + $0x558] sm:$0xff] %vm1831, %v4090
  %4347 = vst.msk [vmem:[%s4 + $0x560] sm:$0xff] %vm1831, %v4091
  %4348 = vst.msk [vmem:[%s4 + $0x568] sm:$0xff] %vm1831, %v4092
  %4349 = vst.msk [vmem:[%s4 + $0x570] sm:$0xff] %vm1831, %v4093
  %4350 = vst.msk [vmem:[%s4 + $0x578] sm:$0xff] %vm1831, %v4094
  %4351 = vst.msk [vmem:[%s4 + $0x580] sm:$0xff] %vm1831, %v4095
  %4352 = vst.msk [vmem:[%s4 + $0x588] sm:$0xff] %vm1831, %v4096
  %4353 = vst.msk [vmem:[%s4 + $0x590] sm:$0xff] %vm1831, %v4097
  %4354 = vst.msk [vmem:[%s4 + $0x598] sm:$0xff] %vm1831, %v4098
  %4355 = vst.msk [vmem:[%s4 + $0x5a0] sm:$0xff] %vm1831, %v4099
  %4356 = vst.msk [vmem:[%s4 + $0x5a8] sm:$0xff] %vm1831, %v4100
  %4357 = vst.msk [vmem:[%s4 + $0x5b0] sm:$0xff] %vm1831, %v4101
  %4358 = vst.msk [vmem:[%s4 + $0x5b8] sm:$0xff] %vm1831, %v4102
  %4359 = vst.msk [vmem:[%s4 + $0x5c0] sm:$0xff] %vm1831, %v4103
  %4360 = vst.msk [vmem:[%s4 + $0x5c8] sm:$0xff] %vm1831, %v4104
  %4361 = vst.msk [vmem:[%s4 + $0x5d0] sm:$0xff] %vm1831, %v4105
  %4362 = vst.msk [vmem:[%s4 + $0x5d8] sm:$0xff] %vm1831, %v4106
  %4363 = vst.msk [vmem:[%s4 + $0x5e0] sm:$0xff] %vm1831, %v4107
  %4364 = vst.msk [vmem:[%s4 + $0x5e8] sm:$0xff] %vm1831, %v4108
  %4365 = vst.msk [vmem:[%s4 + $0x5f0] sm:$0xff] %vm1831, %v4109
  %4366 = vst.msk [vmem:[%s4 + $0x5f8] sm:$0xff] %vm1831, %v4110
  %4367 = vst.msk [vmem:[%s4 + $0x600] sm:$0xff] %vm1831, %v4111
  %4368 = vst.msk [vmem:[%s4 + $0x608] sm:$0xff] %vm1831, %v4112
  %4369 = vst.msk [vmem:[%s4 + $0x610] sm:$0xff] %vm1831, %v4113
  %4370 = vst.msk [vmem:[%s4 + $0x618] sm:$0xff] %vm1831, %v4114
  %4371 = vst.msk [vmem:[%s4 + $0x620] sm:$0xff] %vm1831, %v4115
  %4372 = vst.msk [vmem:[%s4 + $0x628] sm:$0xff] %vm1831, %v4116
  %4373 = vst.msk [vmem:[%s4 + $0x630] sm:$0xff] %vm1831, %v4117
  %4374 = vst.msk [vmem:[%s4 + $0x638] sm:$0xff] %vm1831, %v4118
  %4375 = vst.msk [vmem:[%s4 + $0x640] sm:$0xff] %vm1831, %v4119
  %4376 = vst.msk [vmem:[%s4 + $0x648] sm:$0xff] %vm1831, %v4120
  %4377 = vst.msk [vmem:[%s4 + $0x650] sm:$0xff] %vm1831, %v4121
  %4378 = vst.msk [vmem:[%s4 + $0x658] sm:$0xff] %vm1831, %v4122
  %4379 = vst.msk [vmem:[%s4 + $0x660] sm:$0xff] %vm1831, %v4123
  %4380 = vst.msk [vmem:[%s4 + $0x668] sm:$0xff] %vm1831, %v4124
  %4381 = vst.msk [vmem:[%s4 + $0x670] sm:$0xff] %vm1831, %v4125
  %4382 = vst.msk [vmem:[%s4 + $0x678] sm:$0xff] %vm1831, %v4126
  %4383 = vst.msk [vmem:[%s4 + $0x680] sm:$0xff] %vm1831, %v4127
  %4384 = vst.msk [vmem:[%s4 + $0x688] sm:$0xff] %vm1831, %v4128
  %4385 = vst.msk [vmem:[%s4 + $0x690] sm:$0xff] %vm1831, %v4129
  %4386 = vst.msk [vmem:[%s4 + $0x698] sm:$0xff] %vm1831, %v4130
  %4387 = vst.msk [vmem:[%s4 + $0x6a0] sm:$0xff] %vm1831, %v4131
  %4388 = vst.msk [vmem:[%s4 + $0x6a8] sm:$0xff] %vm1831, %v4132
  %4389 = vst.msk [vmem:[%s4 + $0x6b0] sm:$0xff] %vm1831, %v4133
  %4390 = vst.msk [vmem:[%s4 + $0x6b8] sm:$0xff] %vm1831, %v4134
  %4391 = vst.msk [vmem:[%s4 + $0x6c0] sm:$0xff] %vm1831, %v4135
  %4392 = vst.msk [vmem:[%s4 + $0x6c8] sm:$0xff] %vm1831, %v4136
  %4393 = vst.msk [vmem:[%s4 + $0x6d0] sm:$0xff] %vm1831, %v4137
  %4394 = vst.msk [vmem:[%s4 + $0x6d8] sm:$0xff] %vm1831, %v4138
  %4395 = vst.msk [vmem:[%s4 + $0x6e0] sm:$0xff] %vm1831, %v4139
  %4396 = vst.msk [vmem:[%s4 + $0x6e8] sm:$0xff] %vm1831, %v4140
  %4397 = vst.msk [vmem:[%s4 + $0x6f0] sm:$0xff] %vm1831, %v4141
  %4398 = vst.msk [vmem:[%s4 + $0x6f8] sm:$0xff] %vm1831, %v4142
  %4399 = vst.msk [vmem:[%s4 + $0x700] sm:$0xff] %vm1831, %v4143
  %4400 = vst.msk [vmem:[%s4 + $0x708] sm:$0xff] %vm1831, %v4144
  %4401 = vst.msk [vmem:[%s4 + $0x710] sm:$0xff] %vm1831, %v4145
  %4402 = vst.msk [vmem:[%s4 + $0x718] sm:$0xff] %vm1831, %v4146
  %4403 = vst.msk [vmem:[%s4 + $0x720] sm:$0xff] %vm1831, %v4147
  %4404 = vst.msk [vmem:[%s4 + $0x728] sm:$0xff] %vm1831, %v4148
  %4405 = vst.msk [vmem:[%s4 + $0x730] sm:$0xff] %vm1831, %v4149
  %4406 = vst.msk [vmem:[%s4 + $0x738] sm:$0xff] %vm1831, %v4150
  %4407 = vst.msk [vmem:[%s4 + $0x740] sm:$0xff] %vm1831, %v4151
  %4408 = vst.msk [vmem:[%s4 + $0x748] sm:$0xff] %vm1831, %v4152
  %4409 = vst.msk [vmem:[%s4 + $0x750] sm:$0xff] %vm1831, %v4153
  %4410 = vst.msk [vmem:[%s4 + $0x758] sm:$0xff] %vm1831, %v4154
  %4411 = vst.msk [vmem:[%s4 + $0x760] sm:$0xff] %vm1831, %v4155
  %4412 = vst.msk [vmem:[%s4 + $0x768] sm:$0xff] %vm1831, %v4156
  %4413 = vst.msk [vmem:[%s4 + $0x770] sm:$0xff] %vm1831, %v4157
  %4414 = vst.msk [vmem:[%s4 + $0x778] sm:$0xff] %vm1831, %v4158
  %4415 = vst.msk [vmem:[%s4 + $0x780] sm:$0xff] %vm1831, %v4159
  %4416 = vst.msk [vmem:[%s4 + $0x788] sm:$0xff] %vm1831, %v4160
  %4417 = vst.msk [vmem:[%s4 + $0x790] sm:$0xff] %vm1831, %v4161
  %4418 = vst.msk [vmem:[%s4 + $0x798] sm:$0xff] %vm1831, %v4162
  %4419 = vst.msk [vmem:[%s4 + $0x7a0] sm:$0xff] %vm1831, %v4163
  %4420 = vst.msk [vmem:[%s4 + $0x7a8] sm:$0xff] %vm1831, %v4164
  %4421 = vst.msk [vmem:[%s4 + $0x7b0] sm:$0xff] %vm1831, %v4165
  %4422 = vst.msk [vmem:[%s4 + $0x7b8] sm:$0xff] %vm1831, %v4166
  %4423 = vst.msk [vmem:[%s4 + $0x7c0] sm:$0xff] %vm1831, %v4167
  %4424 = vst.msk [vmem:[%s4 + $0x7c8] sm:$0xff] %vm1831, %v4168
  %4425 = vst.msk [vmem:[%s4 + $0x7d0] sm:$0xff] %vm1831, %v4169
  %4426 = vst.msk [vmem:[%s4 + $0x7d8] sm:$0xff] %vm1831, %v4170
  %4427 = vst.msk [vmem:[%s4 + $0x7e0] sm:$0xff] %vm1831, %v4171
  %4428 = vst.msk [vmem:[%s4 + $0x7e8] sm:$0xff] %vm1831, %v4172
  %4429 = vst.msk [vmem:[%s4 + $0x7f0] sm:$0xff] %vm1831, %v4173
  %4430 = vst.msk [vmem:[%s4 + $0x7f8] sm:$0xff] %vm1831, %v4174
  // Predicated region
  $region18: #{tpu_custom_call.1} parent=0 // pred_check
    _
  $region19: #{tpu_custom_call.1} parent=0 // pred_check_branch
    %4432 = sbr.rel (0) target = $region21
  $region20: #{tpu_custom_call.1} parent=0 // pred_region
    _
  $region21: #{tpu_custom_call.1} parent=0 // pred_fallthru
    _
  // Predicated region
  $region22: #{tpu_custom_call.1} parent=0 // pred_check
    _
  $region23: #{tpu_custom_call.1} parent=0 // pred_check_branch
    %4434 = sbr.rel (0) target = $region25
  $region24: #{tpu_custom_call.1} parent=0 // pred_region
    _
  $region25: #{tpu_custom_call.1} parent=0 // pred_fallthru
    _

</llo_original>
